<compile_context>
chip_gen: v5e
topology: v5e:2x2
jax: 0.10.0
libtpu: 0.0.40
codegen_flags: <defaults>
</compile_context>

<pallas_src>
import functools

import jax
import jax.numpy as jnp
from jax.experimental import pallas as pl
from jax.experimental.pallas import tpu as pltpu


# ----------------------------- model config --------------------------------
CLASSES = 10
CHANNELS = 1
IMG_SIZE = 16          # small spatial size for the demo (module default is 64)
LATENT_DIM = 100       # unused in the discriminator forward

IN_DIM = CLASSES + CHANNELS * IMG_SIZE * IMG_SIZE          # 266
HIDDEN = (1024, 512, 256, 128)
OUT_DIM = 1


def _round_up(x, m):
    return ((x + m - 1) // m) * m


# Input features padded only to a multiple of 16 (bf16 sublane granularity);
# the x block's last dim equals the full (padded) array dim, so the 128-lane
# BlockSpec rule is satisfied without padding all the way to 384.
IN_PAD = _round_up(IN_DIM, 16)        # 272
OUT_PAD = _round_up(OUT_DIM, 128)     # 128 (lane-dense output store)
MAX_TB = 256                          # batch tile upper bound


def _choose_tiling(batch):
    """Return (padded_batch, batch_tile).

    Small batches: single tile padded to a multiple of 16.
    Large batches: tiles of up to MAX_TB rows with at least 2 grid steps
    (one per v7x TensorCore); tail padded only up to the chosen tile size.
    """
    b_pad = _round_up(max(batch, 1), 16)
    if b_pad < 2 * 128:
        return b_pad, b_pad
    n_tiles = max(2, pl.cdiv(b_pad, MAX_TB))
    tb = _round_up(pl.cdiv(b_pad, n_tiles), 16)
    return tb * n_tiles, tb


# ------------------------------ Pallas kernel -------------------------------
def _leaky_relu(x, slope=0.2):
    # maximum(x, a*x) == LeakyReLU(a) for 0 < a < 1: 2 VPU ops instead of 3.
    return jnp.maximum(x, slope * x)


def _mlp_kernel(x_ref,
                w1_ref, b1_ref,
                w2_ref, b2_ref,
                w3_ref, b3_ref,
                w4_ref, b4_ref,
                w5_ref, b5_ref,
                out_ref):
    # Matmuls: bf16 x bf16 -> f32 accumulate on the MXU.
    # Hidden-layer epilogues (bias + LeakyReLU) run in bf16 (cheap on
    # v6e/v7x VALU, still correct on v5e); final bias + sigmoid in f32.
    x = x_ref[...]

    # Linear(in, 1024) + LeakyReLU(0.2)
    h = jnp.dot(x, w1_ref[...], preferred_element_type=jnp.float32)
    h = _leaky_relu(h.astype(jnp.bfloat16) + b1_ref[...])

    # Linear(1024, 512) + Dropout(identity) + LeakyReLU(0.2)
    h = jnp.dot(h, w2_ref[...], preferred_element_type=jnp.float32)
    h = _leaky_relu(h.astype(jnp.bfloat16) + b2_ref[...])

    # Linear(512, 256) + Dropout(identity) + LeakyReLU(0.2)
    h = jnp.dot(h, w3_ref[...], preferred_element_type=jnp.float32)
    h = _leaky_relu(h.astype(jnp.bfloat16) + b3_ref[...])

    # Linear(256, 128) (no activation)
    h = jnp.dot(h, w4_ref[...], preferred_element_type=jnp.float32)
    h = h.astype(jnp.bfloat16) + b4_ref[...]

    # Linear(128, 1) (padded to 128 output columns) + Sigmoid (EUP slot)
    logits = jnp.dot(h, w5_ref[...], preferred_element_type=jnp.float32) + b5_ref[...]
    out_ref[...] = jax.nn.sigmoid(logits)


@functools.partial(jax.jit, static_argnames=("tb",))
def _run_mlp(x_pad, w1, b1, w2, b2, w3, b3, w4, b4, w5, b5, *, tb):
    b_pad = x_pad.shape[0]
    assert b_pad % tb == 0
    grid = (b_pad // tb,)

    def resident(shape):
        # Same block index every grid step -> stays resident in VMEM.
        # Buffered(1): no pointless double-buffering of ~2 MiB of weights.
        return pl.BlockSpec(shape, lambda i: (0, 0), pipeline_mode=pl.Buffered(1))

    in_specs = [
        pl.BlockSpec((tb, IN_PAD), lambda i: (i, 0)),          # x tile (pipelined)
        resident((IN_PAD, HIDDEN[0])), resident((1, HIDDEN[0])),
        resident((HIDDEN[0], HIDDEN[1])), resident((1, HIDDEN[1])),
        resident((HIDDEN[1], HIDDEN[2])), resident((1, HIDDEN[2])),
        resident((HIDDEN[2], HIDDEN[3])), resident((1, HIDDEN[3])),
        resident((HIDDEN[3], OUT_PAD)), resident((1, OUT_PAD)),
    ]
    out_specs = pl.BlockSpec((tb, OUT_PAD), lambda i: (i, 0))

    return pl.pallas_call(
        _mlp_kernel,
        out_shape=jax.ShapeDtypeStruct((b_pad, OUT_PAD), jnp.float32),
        grid=grid,
        in_specs=in_specs,
        out_specs=out_specs,
        compiler_params=pltpu.CompilerParams(
            dimension_semantics=("parallel",),   # megacore sharding on v7x
            vmem_limit_bytes=32 << 20,           # ~2 MB weights + tiles << 32 MiB
        ),
    )(x_pad, w1, b1, w2, b2, w3, b3, w4, b4, w5, b5)


# --------------------------- parameter construction --------------------------
def init_params(key):
    """Deterministic init mimicking PyTorch defaults.

    Linear: W, b ~ U(-1/sqrt(fan_in), 1/sqrt(fan_in));  Embedding: N(0, 1).
    Weights stored as (in, out) bf16; rows/cols beyond the true dims are zero.
    Hidden biases stored (1, out) bf16 (added in the bf16 epilogue); the final
    bias stays f32 (added before the f32 sigmoid).
    """
    keys = jax.random.split(key, 11)
    params = {"emb": jax.random.normal(keys[0], (CLASSES, CLASSES), jnp.float32)}

    dims = [IN_DIM] + list(HIDDEN) + [OUT_DIM]
    pads = [IN_PAD] + list(HIDDEN) + [OUT_PAD]
    for li in range(5):
        fan_in, fan_out = dims[li], dims[li + 1]
        pin, pout = pads[li], pads[li + 1]
        bound = 1.0 / (fan_in ** 0.5)
        w = jax.random.uniform(keys[1 + 2 * li], (fan_in, fan_out),
                               jnp.float32, -bound, bound)
        b = jax.random.uniform(keys[2 + 2 * li], (fan_out,),
                               jnp.float32, -bound, bound)
        w_pad = jnp.zeros((pin, pout), jnp.float32).at[:fan_in, :fan_out].set(w)
        b_pad = jnp.zeros((1, pout), jnp.float32).at[0, :fan_out].set(b)
        params[f"w{li + 1}"] = w_pad.astype(jnp.bfloat16)
        params[f"b{li + 1}"] = b_pad if li == 4 else b_pad.astype(jnp.bfloat16)
    return params


# ------------------------------ forward wrapper ------------------------------
def discriminator_forward(params, image, labels):
    """image: (B, C, H, W) float32 (NCHW), labels: (B,) int32 -> (B, 1) float32."""
    batch = image.shape[0]
    flat = image.reshape(batch, -1)                       # (B, C*H*W)
    emb = params["emb"][labels]                           # (B, classes)
    x = jnp.concatenate([flat, emb], axis=-1)             # (B, IN_DIM), img first

    b_pad, tb = _choose_tiling(batch)
    x_pad = jnp.pad(x, ((0, b_pad - batch), (0, IN_PAD - IN_DIM))) \
               .astype(jnp.bfloat16)

    out_pad = _run_mlp(
        x_pad,
        params["w1"], params["b1"],
        params["w2"], params["b2"],
        params["w3"], params["b3"],
        params["w4"], params["b4"],
        params["w5"], params["b5"],
        tb=tb,
    )
    return out_pad[:batch, :OUT_DIM]                      # (B, 1)


# --------------------------------- reference ---------------------------------
def _reference_forward(params, image, labels):
    """Pure-JAX reference with identical bf16-in / f32-acc / bf16-epilogue math."""
    batch = image.shape[0]
    flat = image.reshape(batch, -1)
    emb = params["emb"][labels]
    x = jnp.concatenate([flat, emb], axis=-1)
    x = jnp.pad(x, ((0, 0), (0, IN_PAD - IN_DIM))).astype(jnp.bfloat16)

    def lin(h, w):
        return jnp.dot(h, w, preferred_element_type=jnp.float32)

    h = _leaky_relu(lin(x, params["w1"]).astype(jnp.bfloat16) + params["b1"])
    h = _leaky_relu(lin(h, params["w2"]).astype(jnp.bfloat16) + params["b2"])
    h = _leaky_relu(lin(h, params["w3"]).astype(jnp.bfloat16) + params["b3"])
    h = lin(h, params["w4"]).astype(jnp.bfloat16) + params["b4"]
    logits = lin(h, params["w5"]) + params["b5"]
    return jax.nn.sigmoid(logits)[:, :OUT_DIM]


# ----------------------------------- main ------------------------------------
if __name__ == "__main__":
    key = jax.random.PRNGKey(0)
    k_params, k_img, k_lbl = jax.random.split(key, 3)

    params = init_params(k_params)

    BATCH = 2
    image = jax.random.normal(k_img, (BATCH, CHANNELS, IMG_SIZE, IMG_SIZE),
                              jnp.float32)
    labels = jax.random.randint(k_lbl, (BATCH,), 0, CLASSES, jnp.int32)

    out = discriminator_forward(params, image, labels)
    out = jax.block_until_ready(out)

    ref = _reference_forward(params, image, labels)
    assert out.shape == (BATCH, 1), out.shape
    assert jnp.allclose(out, ref, atol=2e-3, rtol=2e-3), (out, ref)
    assert bool(jnp.all(jnp.isfinite(out))), out
    assert bool(jnp.all((out >= 0.0) & (out <= 1.0))), out

    print("KERNEL_OK")
</pallas_src>

<mosaic_0001>
module attributes {stable_mosaic.version = 11 : i64} {
  func.func @_mlp_kernel(%arg0: i32, %arg1: memref<16x272xbf16, #tpu.memory_space<vmem>>, %arg2: memref<272x1024xbf16, #tpu.memory_space<vmem>>, %arg3: memref<1x1024xbf16, #tpu.memory_space<vmem>>, %arg4: memref<1024x512xbf16, #tpu.memory_space<vmem>>, %arg5: memref<1x512xbf16, #tpu.memory_space<vmem>>, %arg6: memref<512x256xbf16, #tpu.memory_space<vmem>>, %arg7: memref<1x256xbf16, #tpu.memory_space<vmem>>, %arg8: memref<256x128xbf16, #tpu.memory_space<vmem>>, %arg9: memref<1x128xbf16, #tpu.memory_space<vmem>>, %arg10: memref<128x128xbf16, #tpu.memory_space<vmem>>, %arg11: memref<1x128xf32, #tpu.memory_space<vmem>>, %arg12: memref<16x128xf32, #tpu.memory_space<vmem>>) attributes {dimension_semantics = [#tpu.dimension_semantics<parallel>], iteration_bounds = array<i64: 1>, scalar_prefetch = 0 : i64, scratch_operands = 0 : i64, tpu.core_type = #tpu.core_type<tc>, window_params = [{transform_indices = @transform_0, window_bounds = array<i64: 16, 272>}, {pipeline_mode = #tpu.pipeline_mode<synchronous>, transform_indices = @transform_1, window_bounds = array<i64: 272, 1024>}, {pipeline_mode = #tpu.pipeline_mode<synchronous>, transform_indices = @transform_2, window_bounds = array<i64: 1, 1024>}, {pipeline_mode = #tpu.pipeline_mode<synchronous>, transform_indices = @transform_3, window_bounds = array<i64: 1024, 512>}, {pipeline_mode = #tpu.pipeline_mode<synchronous>, transform_indices = @transform_4, window_bounds = array<i64: 1, 512>}, {pipeline_mode = #tpu.pipeline_mode<synchronous>, transform_indices = @transform_5, window_bounds = array<i64: 512, 256>}, {pipeline_mode = #tpu.pipeline_mode<synchronous>, transform_indices = @transform_6, window_bounds = array<i64: 1, 256>}, {pipeline_mode = #tpu.pipeline_mode<synchronous>, transform_indices = @transform_7, window_bounds = array<i64: 256, 128>}, {pipeline_mode = #tpu.pipeline_mode<synchronous>, transform_indices = @transform_8, window_bounds = array<i64: 1, 128>}, {pipeline_mode = #tpu.pipeline_mode<synchronous>, transform_indices = @transform_9, window_bounds = array<i64: 128, 128>}, {pipeline_mode = #tpu.pipeline_mode<synchronous>, transform_indices = @transform_10, window_bounds = array<i64: 1, 128>}, {transform_indices = @transform_11, window_bounds = array<i64: 16, 128>}]} {
    %c0 = arith.constant 0 : index
    %c0_0 = arith.constant 0 : index
    %0 = vector.load %arg1[%c0, %c0_0] : memref<16x272xbf16, #tpu.memory_space<vmem>>, vector<16x272xbf16>
    %c0_1 = arith.constant 0 : index
    %c0_2 = arith.constant 0 : index
    %1 = vector.load %arg2[%c0_1, %c0_2] : memref<272x1024xbf16, #tpu.memory_space<vmem>>, vector<272x1024xbf16>
    %cst = arith.constant dense<0.000000e+00> : vector<16x1024xf32>
    %2 = tpu.matmul %0, %1, %cst {dimension_numbers = #tpu.dot_dimension_numbers<[1], [0], [0], [1], [0, 0, 1, 1], [], []>} : vector<16x272xbf16>, vector<272x1024xbf16>, vector<16x1024xf32> -> vector<16x1024xf32>
    %3 = arith.truncf %2 : vector<16x1024xf32> to vector<16x1024xbf16>
    %c0_3 = arith.constant 0 : index
    %c0_4 = arith.constant 0 : index
    %4 = vector.load %arg3[%c0_3, %c0_4] : memref<1x1024xbf16, #tpu.memory_space<vmem>>, vector<1x1024xbf16>
    %5 = vector.broadcast %4 : vector<1x1024xbf16> to vector<16x1024xbf16>
    %6 = arith.addf %3, %5 : vector<16x1024xbf16>
    %cst_5 = arith.constant 2.001950e-01 : bf16
    %7 = vector.broadcast %cst_5 : bf16 to vector<16x1024xbf16>
    %8 = arith.mulf %7, %6 : vector<16x1024xbf16>
    %9 = arith.maximumf %6, %8 : vector<16x1024xbf16>
    %c0_6 = arith.constant 0 : index
    %c0_7 = arith.constant 0 : index
    %10 = vector.load %arg4[%c0_6, %c0_7] : memref<1024x512xbf16, #tpu.memory_space<vmem>>, vector<1024x512xbf16>
    %cst_8 = arith.constant dense<0.000000e+00> : vector<16x512xf32>
    %11 = tpu.matmul %9, %10, %cst_8 {dimension_numbers = #tpu.dot_dimension_numbers<[1], [0], [0], [1], [0, 0, 1, 1], [], []>} : vector<16x1024xbf16>, vector<1024x512xbf16>, vector<16x512xf32> -> vector<16x512xf32>
    %12 = arith.truncf %11 : vector<16x512xf32> to vector<16x512xbf16>
    %c0_9 = arith.constant 0 : index
    %c0_10 = arith.constant 0 : index
    %13 = vector.load %arg5[%c0_9, %c0_10] : memref<1x512xbf16, #tpu.memory_space<vmem>>, vector<1x512xbf16>
    %14 = vector.broadcast %13 : vector<1x512xbf16> to vector<16x512xbf16>
    %15 = arith.addf %12, %14 : vector<16x512xbf16>
    %cst_11 = arith.constant 2.001950e-01 : bf16
    %16 = vector.broadcast %cst_11 : bf16 to vector<16x512xbf16>
    %17 = arith.mulf %16, %15 : vector<16x512xbf16>
    %18 = arith.maximumf %15, %17 : vector<16x512xbf16>
    %c0_12 = arith.constant 0 : index
    %c0_13 = arith.constant 0 : index
    %19 = vector.load %arg6[%c0_12, %c0_13] : memref<512x256xbf16, #tpu.memory_space<vmem>>, vector<512x256xbf16>
    %cst_14 = arith.constant dense<0.000000e+00> : vector<16x256xf32>
    %20 = tpu.matmul %18, %19, %cst_14 {dimension_numbers = #tpu.dot_dimension_numbers<[1], [0], [0], [1], [0, 0, 1, 1], [], []>} : vector<16x512xbf16>, vector<512x256xbf16>, vector<16x256xf32> -> vector<16x256xf32>
    %21 = arith.truncf %20 : vector<16x256xf32> to vector<16x256xbf16>
    %c0_15 = arith.constant 0 : index
    %c0_16 = arith.constant 0 : index
    %22 = vector.load %arg7[%c0_15, %c0_16] : memref<1x256xbf16, #tpu.memory_space<vmem>>, vector<1x256xbf16>
    %23 = vector.broadcast %22 : vector<1x256xbf16> to vector<16x256xbf16>
    %24 = arith.addf %21, %23 : vector<16x256xbf16>
    %cst_17 = arith.constant 2.001950e-01 : bf16
    %25 = vector.broadcast %cst_17 : bf16 to vector<16x256xbf16>
    %26 = arith.mulf %25, %24 : vector<16x256xbf16>
    %27 = arith.maximumf %24, %26 : vector<16x256xbf16>
    %c0_18 = arith.constant 0 : index
    %c0_19 = arith.constant 0 : index
    %28 = vector.load %arg8[%c0_18, %c0_19] : memref<256x128xbf16, #tpu.memory_space<vmem>>, vector<256x128xbf16>
    %cst_20 = arith.constant dense<0.000000e+00> : vector<16x128xf32>
    %29 = tpu.matmul %27, %28, %cst_20 {dimension_numbers = #tpu.dot_dimension_numbers<[1], [0], [0], [1], [0, 0, 1, 1], [], []>} : vector<16x256xbf16>, vector<256x128xbf16>, vector<16x128xf32> -> vector<16x128xf32>
    %30 = arith.truncf %29 : vector<16x128xf32> to vector<16x128xbf16>
    %c0_21 = arith.constant 0 : index
    %c0_22 = arith.constant 0 : index
    %31 = vector.load %arg9[%c0_21, %c0_22] : memref<1x128xbf16, #tpu.memory_space<vmem>>, vector<1x128xbf16>
    %32 = vector.broadcast %31 : vector<1x128xbf16> to vector<16x128xbf16>
    %33 = arith.addf %30, %32 : vector<16x128xbf16>
    %c0_23 = arith.constant 0 : index
    %c0_24 = arith.constant 0 : index
    %34 = vector.load %arg10[%c0_23, %c0_24] : memref<128x128xbf16, #tpu.memory_space<vmem>>, vector<128x128xbf16>
    %cst_25 = arith.constant dense<0.000000e+00> : vector<16x128xf32>
    %35 = tpu.matmul %33, %34, %cst_25 {dimension_numbers = #tpu.dot_dimension_numbers<[1], [0], [0], [1], [0, 0, 1, 1], [], []>} : vector<16x128xbf16>, vector<128x128xbf16>, vector<16x128xf32> -> vector<16x128xf32>
    %c0_26 = arith.constant 0 : index
    %c0_27 = arith.constant 0 : index
    %36 = vector.load %arg11[%c0_26, %c0_27] : memref<1x128xf32, #tpu.memory_space<vmem>>, vector<1x128xf32>
    %37 = vector.broadcast %36 : vector<1x128xf32> to vector<16x128xf32>
    %38 = arith.addf %35, %37 : vector<16x128xf32>
    %39 = arith.negf %38 : vector<16x128xf32>
    %40 = math.exp %39 : vector<16x128xf32>
    %cst_28 = arith.constant 1.000000e+00 : f32
    %41 = vector.broadcast %cst_28 : f32 to vector<16x128xf32>
    %42 = arith.addf %41, %40 : vector<16x128xf32>
    %43 = arith.divf %41, %42 : vector<16x128xf32>
    %c0_29 = arith.constant 0 : index
    %c0_30 = arith.constant 0 : index
    %44 = vector.load %arg12[%c0_29, %c0_30] : memref<16x128xf32, #tpu.memory_space<vmem>>, vector<16x128xf32>
    tpu.vector_store %arg12[%c0_29, %c0_30], %43 {strides = array<i32>} : memref<16x128xf32, #tpu.memory_space<vmem>>, vector<16x128xf32>,
    return
  }
  func.func @transform_0(%arg0: i32) -> (i32, i32) {
    %c0_i32 = arith.constant 0 : i32
    %c0_i32_0 = arith.constant 0 : i32
    return %arg0, %c0_i32 : i32, i32
  }
  func.func @transform_1(%arg0: i32) -> (i32, i32) {
    %c0_i32 = arith.constant 0 : i32
    %c0_i32_0 = arith.constant 0 : i32
    %c0_i32_1 = arith.constant 0 : i32
    return %c0_i32, %c0_i32_0 : i32, i32
  }
  func.func @transform_2(%arg0: i32) -> (i32, i32) {
    %c0_i32 = arith.constant 0 : i32
    %c0_i32_0 = arith.constant 0 : i32
    %c0_i32_1 = arith.constant 0 : i32
    return %c0_i32, %c0_i32_0 : i32, i32
  }
  func.func @transform_3(%arg0: i32) -> (i32, i32) {
    %c0_i32 = arith.constant 0 : i32
    %c0_i32_0 = arith.constant 0 : i32
    %c0_i32_1 = arith.constant 0 : i32
    return %c0_i32, %c0_i32_0 : i32, i32
  }
  func.func @transform_4(%arg0: i32) -> (i32, i32) {
    %c0_i32 = arith.constant 0 : i32
    %c0_i32_0 = arith.constant 0 : i32
    %c0_i32_1 = arith.constant 0 : i32
    return %c0_i32, %c0_i32_0 : i32, i32
  }
  func.func @transform_5(%arg0: i32) -> (i32, i32) {
    %c0_i32 = arith.constant 0 : i32
    %c0_i32_0 = arith.constant 0 : i32
    %c0_i32_1 = arith.constant 0 : i32
    return %c0_i32, %c0_i32_0 : i32, i32
  }
  func.func @transform_6(%arg0: i32) -> (i32, i32) {
    %c0_i32 = arith.constant 0 : i32
    %c0_i32_0 = arith.constant 0 : i32
    %c0_i32_1 = arith.constant 0 : i32
    return %c0_i32, %c0_i32_0 : i32, i32
  }
  func.func @transform_7(%arg0: i32) -> (i32, i32) {
    %c0_i32 = arith.constant 0 : i32
    %c0_i32_0 = arith.constant 0 : i32
    %c0_i32_1 = arith.constant 0 : i32
    return %c0_i32, %c0_i32_0 : i32, i32
  }
  func.func @transform_8(%arg0: i32) -> (i32, i32) {
    %c0_i32 = arith.constant 0 : i32
    %c0_i32_0 = arith.constant 0 : i32
    %c0_i32_1 = arith.constant 0 : i32
    return %c0_i32, %c0_i32_0 : i32, i32
  }
  func.func @transform_9(%arg0: i32) -> (i32, i32) {
    %c0_i32 = arith.constant 0 : i32
    %c0_i32_0 = arith.constant 0 : i32
    %c0_i32_1 = arith.constant 0 : i32
    return %c0_i32, %c0_i32_0 : i32, i32
  }
  func.func @transform_10(%arg0: i32) -> (i32, i32) {
    %c0_i32 = arith.constant 0 : i32
    %c0_i32_0 = arith.constant 0 : i32
    %c0_i32_1 = arith.constant 0 : i32
    return %c0_i32, %c0_i32_0 : i32, i32
  }
  func.func @transform_11(%arg0: i32) -> (i32, i32) {
    %c0_i32 = arith.constant 0 : i32
    %c0_i32_0 = arith.constant 0 : i32
    return %arg0, %c0_i32 : i32, i32
  }
}

</mosaic_0001>

<llo_original>
// kernel: _run_mlp.1
$region0: #{_run_mlp.1}
  #allocation0 [shape = 'u32[]', space=smem, size = 0x4, offset = 0x4, fixed_abs, tag = 'smem constant byte address 0x4 - core index']
  #allocation1 [shape = 'u32[72,128]{1,0:T(1,128)}', space=vmem, size = 0x9000, scoped, tag = 'internal scratch']
  %s0 = inlined_call_operand.hbm [shape: bf16[16,272], index: 0, kind: input, shape index: {}]
  %s1 = inlined_call_operand.hbm [shape: bf16[272,1024], index: 1, kind: input, shape index: {}]
  %s2 = inlined_call_operand.hbm [shape: bf16[1,1024], index: 2, kind: input, shape index: {}]
  %s3 = inlined_call_operand.hbm [shape: bf16[1024,512], index: 3, kind: input, shape index: {}]
  %s4 = inlined_call_operand.hbm [shape: bf16[1,512], index: 4, kind: input, shape index: {}]
  %s5 = inlined_call_operand.hbm [shape: bf16[512,256], index: 5, kind: input, shape index: {}]
  %s6 = inlined_call_operand.vmem [shape: bf16[1,256], index: 6, kind: input, shape index: {}]
  %s7 = inlined_call_operand.hbm [shape: bf16[256,128], index: 7, kind: input, shape index: {}]
  %s8 = inlined_call_operand.vmem [shape: bf16[1,128], index: 8, kind: input, shape index: {}]
  %s9 = inlined_call_operand.hbm [shape: bf16[128,128], index: 9, kind: input, shape index: {}]
  %s10 = inlined_call_operand.vmem [shape: f32[1,128], index: 10, kind: input, shape index: {}]
  %s11 = inlined_call_operand.hbm [shape: f32[16,128], index: 11, kind: output, shape index: {}]
  %s12 = sld [smem:[#allocation0]]
  $region86: #{_run_mlp.1} parent=0
    _
  %s14 = ssub.s32 1, %s12
  %s15 = scalar_select 0, %s14, %s12
  $region1: #{_run_mlp.1} parent=0
    #allocation2 [shape = 'u8[12288]{0}', space=vmem, size = 0x3000, scoped, tag = 'input window, operand 0, single buffered']
    #allocation3 [shape = 's32[1]{0}', space=sflag, size = 0x4, scoped, tag = 'scoped memory for _run_mlp.1']
    #allocation4 [shape = 's32[1]{0}', space=sflag, size = 0x4, scoped, tag = 'scoped memory for _run_mlp.1']
    #allocation5 [shape = 'u8[557056]{0}', space=vmem, size = 0x88000, scoped, tag = 'input window, operand 1, single buffered']
    #allocation6 [shape = 's32[1]{0}', space=sflag, size = 0x4, scoped, tag = 'scoped memory for _run_mlp.1']
    #allocation7 [shape = 'u8[4096]{0}', space=vmem, size = 0x1000, scoped, tag = 'input window, operand 2, single buffered']
    #allocation8 [shape = 'u8[1048576]{0}', space=vmem, size = 0x100000, scoped, tag = 'input window, operand 3, single buffered']
    #allocation9 [shape = 's32[1]{0}', space=sflag, size = 0x4, scoped, tag = 'scoped memory for _run_mlp.1']
    #allocation10 [shape = 'u8[2048]{0}', space=vmem, size = 0x800, scoped, tag = 'input window, operand 4, single buffered']
    #allocation11 [shape = 'u8[262144]{0}', space=vmem, size = 0x40000, scoped, tag = 'input window, operand 5, single buffered']
    #allocation12 [shape = 's32[1]{0}', space=sflag, size = 0x4, scoped, tag = 'scoped memory for _run_mlp.1']
    #allocation13 [shape = 'u8[65536]{0}', space=vmem, size = 0x10000, scoped, tag = 'input window, operand 7, single buffered']
    #allocation14 [shape = 'u8[32768]{0}', space=vmem, size = 0x8000, scoped, tag = 'input window, operand 9, single buffered']
    #allocation15 [shape = 's32[1]{0}', space=sflag, size = 0x4, scoped, tag = 'scoped memory for _run_mlp.1']
    #allocation16 [shape = 'u8[8192]{0}', space=vmem, size = 0x2000, scoped, tag = 'output window, operand 0, single buffered']
    %16 = vsyncpa [#allocation3], 0
    %17 = vsyncpa [#allocation6], 0
    %18 = vsyncpa [#allocation9], 0
    %19 = vsyncpa [#allocation12], 0
    %20 = vsyncpa [#allocation15], 0
    %21 = vsyncpa [#allocation4], 0
    // Predicated region
    $region2: #{_run_mlp.1} parent=1 // pred_check
      _
    $region3: #{_run_mlp.1} parent=1 // pred_check_branch
      %23 = sbr.rel (0) target = $region5
    $region4: #{_run_mlp.1} parent=1 // pred_region
      %25 = vsyncadd [#allocation3], 0
      %s26 = sshll.u32 %s0, 4
      %s27 = int_to_ptr.hbm [resolvable:$true] %s26
      %s28 = sshll.u32 [#allocation2], 4
      %s29 = int_to_ptr.vmem [resolvable:$true] %s28
      %34 = dma.hbm_to_vmem [thread:$0]  %s27, 384, %s29, [#allocation3], 192, 192, 12
    $region5: #{_run_mlp.1} parent=1 // pred_fallthru
      _
    // Predicated region
    $region6: #{_run_mlp.1} parent=1 // pred_check
      _
    $region7: #{_run_mlp.1} parent=1 // pred_check_branch
      %36 = sbr.rel (0) target = $region9
    $region8: #{_run_mlp.1} parent=1 // pred_region
      %38 = vsyncadd [#allocation6], 0
      %s39 = sshll.u32 %s1, 4
      %s40 = int_to_ptr.hbm [resolvable:$true] %s39
      %s41 = sshll.u32 [#allocation5], 4
      %s42 = int_to_ptr.vmem [resolvable:$true] %s41
      %47 = dma.hbm_to_vmem [thread:$0]  %s40, 17408, %s42, [#allocation6], 512, 512, 32
    $region9: #{_run_mlp.1} parent=1 // pred_fallthru
      _
    // Predicated region
    $region10: #{_run_mlp.1} parent=1 // pred_check
      _
    $region11: #{_run_mlp.1} parent=1 // pred_check_branch
      %49 = sbr.rel (0) target = $region13
    $region12: #{_run_mlp.1} parent=1 // pred_region
      %51 = vsyncadd [#allocation6], 0
      %s53 = sshll.u32 %s2, 4
      %s54 = int_to_ptr.hbm [resolvable:$true] %s53
      %s55 = sshll.u32 [#allocation7], 4
      %s56 = int_to_ptr.vmem [resolvable:$true] %s55
      %58 = dma.hbm_to_vmem [thread:$0]  %s54, 128, %s56, [#allocation6]
    $region13: #{_run_mlp.1} parent=1 // pred_fallthru
      _
    // Predicated region
    $region14: #{_run_mlp.1} parent=1 // pred_check
      _
    $region15: #{_run_mlp.1} parent=1 // pred_check_branch
      %60 = sbr.rel (0) target = $region17
    $region16: #{_run_mlp.1} parent=1 // pred_region
      %62 = vsyncadd [#allocation9], 0
      %s63 = sshll.u32 %s3, 4
      %s64 = int_to_ptr.hbm [resolvable:$true] %s63
      %s65 = sshll.u32 [#allocation8], 4
      %s66 = int_to_ptr.vmem [resolvable:$true] %s65
      %71 = dma.hbm_to_vmem [thread:$0]  %s64, 32768, %s66, [#allocation9], 256, 256, 16
    $region17: #{_run_mlp.1} parent=1 // pred_fallthru
      _
    // Predicated region
    $region18: #{_run_mlp.1} parent=1 // pred_check
      _
    $region19: #{_run_mlp.1} parent=1 // pred_check_branch
      %73 = sbr.rel (0) target = $region21
    $region20: #{_run_mlp.1} parent=1 // pred_region
      %75 = vsyncadd [#allocation9], 0
      %s77 = sshll.u32 %s4, 4
      %s78 = int_to_ptr.hbm [resolvable:$true] %s77
      %s79 = sshll.u32 [#allocation10], 4
      %s80 = int_to_ptr.vmem [resolvable:$true] %s79
      %82 = dma.hbm_to_vmem [thread:$0]  %s78, 64, %s80, [#allocation9]
    $region21: #{_run_mlp.1} parent=1 // pred_fallthru
      _
    // Predicated region
    $region22: #{_run_mlp.1} parent=1 // pred_check
      _
    $region23: #{_run_mlp.1} parent=1 // pred_check_branch
      %84 = sbr.rel (0) target = $region25
    $region24: #{_run_mlp.1} parent=1 // pred_region
      %86 = vsyncadd [#allocation12], 0
      %s87 = sshll.u32 %s5, 4
      %s88 = int_to_ptr.hbm [resolvable:$true] %s87
      %s89 = sshll.u32 [#allocation11], 4
      %s90 = int_to_ptr.vmem [resolvable:$true] %s89
      %95 = dma.hbm_to_vmem [thread:$0]  %s88, 8192, %s90, [#allocation12], 128, 128, 8
    $region25: #{_run_mlp.1} parent=1 // pred_fallthru
      _
    // Predicated region
    $region26: #{_run_mlp.1} parent=1 // pred_check
      _
    $region27: #{_run_mlp.1} parent=1 // pred_check_branch
      %97 = sbr.rel (0) target = $region29
    $region28: #{_run_mlp.1} parent=1 // pred_region
      _
    $region29: #{_run_mlp.1} parent=1 // pred_fallthru
      _
    // Predicated region
    $region30: #{_run_mlp.1} parent=1 // pred_check
      _
    $region31: #{_run_mlp.1} parent=1 // pred_check_branch
      %99 = sbr.rel (0) target = $region33
    $region32: #{_run_mlp.1} parent=1 // pred_region
      %101 = vsyncadd [#allocation12], 0
      %s102 = sshll.u32 %s7, 4
      %s103 = int_to_ptr.hbm [resolvable:$true] %s102
      %s104 = sshll.u32 [#allocation13], 4
      %s105 = int_to_ptr.vmem [resolvable:$true] %s104
      %110 = dma.hbm_to_vmem [thread:$0]  %s103, 2048, %s105, [#allocation12], 64, 64, 4
    $region33: #{_run_mlp.1} parent=1 // pred_fallthru
      _
    // Predicated region
    $region34: #{_run_mlp.1} parent=1 // pred_check
      _
    $region35: #{_run_mlp.1} parent=1 // pred_check_branch
      %112 = sbr.rel (0) target = $region37
    $region36: #{_run_mlp.1} parent=1 // pred_region
      _
    $region37: #{_run_mlp.1} parent=1 // pred_fallthru
      _
    // Predicated region
    $region38: #{_run_mlp.1} parent=1 // pred_check
      _
    $region39: #{_run_mlp.1} parent=1 // pred_check_branch
      %114 = sbr.rel (0) target = $region41
    $region40: #{_run_mlp.1} parent=1 // pred_region
      %116 = vsyncadd [#allocation15], 0
      %s117 = sshll.u32 %s9, 4
      %s118 = int_to_ptr.hbm [resolvable:$true] %s117
      %s119 = sshll.u32 [#allocation14], 4
      %s120 = int_to_ptr.vmem [resolvable:$true] %s119
      %125 = dma.hbm_to_vmem [thread:$0]  %s118, 1024, %s120, [#allocation15], 64, 64, 4
    $region41: #{_run_mlp.1} parent=1 // pred_fallthru
      _
    // Predicated region
    $region42: #{_run_mlp.1} parent=1 // pred_check
      _
    $region43: #{_run_mlp.1} parent=1 // pred_check_branch
      %127 = sbr.rel (0) target = $region45
    $region44: #{_run_mlp.1} parent=1 // pred_region
      _
    $region45: #{_run_mlp.1} parent=1 // pred_fallthru
      _
    // Predicated region
    $region46: #{_run_mlp.1} parent=1 // pred_check
      _
    $region47: #{_run_mlp.1} parent=1 // pred_check_branch
      %129 = sbr.rel (0) target = $region49
    $region48: #{_run_mlp.1} parent=1 // pred_region
      %131 = dma.done [#allocation3], 384
    $region49: #{_run_mlp.1} parent=1 // pred_fallthru
      _
    // Predicated region
    $region50: #{_run_mlp.1} parent=1 // pred_check
      _
    $region51: #{_run_mlp.1} parent=1 // pred_check_branch
      %133 = sbr.rel (0) target = $region53
    $region52: #{_run_mlp.1} parent=1 // pred_region
      %135 = dma.done [#allocation6], 17408
    $region53: #{_run_mlp.1} parent=1 // pred_fallthru
      _
    // Predicated region
    $region54: #{_run_mlp.1} parent=1 // pred_check
      _
    $region55: #{_run_mlp.1} parent=1 // pred_check_branch
      %137 = sbr.rel (0) target = $region57
    $region56: #{_run_mlp.1} parent=1 // pred_region
      %139 = dma.done [#allocation6], 128
    $region57: #{_run_mlp.1} parent=1 // pred_fallthru
      _
    // Predicated region
    $region58: #{_run_mlp.1} parent=1 // pred_check
      _
    $region59: #{_run_mlp.1} parent=1 // pred_check_branch
      %141 = sbr.rel (0) target = $region61
    $region60: #{_run_mlp.1} parent=1 // pred_region
      %143 = dma.done [#allocation9], 32768
    $region61: #{_run_mlp.1} parent=1 // pred_fallthru
      _
    // Predicated region
    $region62: #{_run_mlp.1} parent=1 // pred_check
      _
    $region63: #{_run_mlp.1} parent=1 // pred_check_branch
      %145 = sbr.rel (0) target = $region65
    $region64: #{_run_mlp.1} parent=1 // pred_region
      %147 = dma.done [#allocation9], 64
    $region65: #{_run_mlp.1} parent=1 // pred_fallthru
      _
    // Predicated region
    $region66: #{_run_mlp.1} parent=1 // pred_check
      _
    $region67: #{_run_mlp.1} parent=1 // pred_check_branch
      %149 = sbr.rel (0) target = $region69
    $region68: #{_run_mlp.1} parent=1 // pred_region
      %151 = dma.done [#allocation12], 8192
    $region69: #{_run_mlp.1} parent=1 // pred_fallthru
      _
    // Predicated region
    $region70: #{_run_mlp.1} parent=1 // pred_check
      _
    $region71: #{_run_mlp.1} parent=1 // pred_check_branch
      %153 = sbr.rel (0) target = $region73
    $region72: #{_run_mlp.1} parent=1 // pred_region
      %155 = dma.done [#allocation12], 2048
    $region73: #{_run_mlp.1} parent=1 // pred_fallthru
      _
    // Predicated region
    $region74: #{_run_mlp.1} parent=1 // pred_check
      _
    $region75: #{_run_mlp.1} parent=1 // pred_check_branch
      %157 = sbr.rel (0) target = $region77
    $region76: #{_run_mlp.1} parent=1 // pred_region
      %159 = dma.done [#allocation15], 1024
    $region77: #{_run_mlp.1} parent=1 // pred_fallthru
      _
    %v161 = vld [vmem:[#allocation2] sm:$0xff]
    %v162 = vld [vmem:[#allocation2 + $0x8] sm:$0xf]
    %v163 = vld [vmem:[#allocation2 + $0xc] sm:$0xff]
    %v164 = vld [vmem:[#allocation2 + $0x14] sm:$0xf]
    %v165 = vld [vmem:[#allocation5] sm:$0xff]
    %v166 = vld [vmem:[#allocation5 + $0x8] sm:$0xff]
    %v167 = vld [vmem:[#allocation5 + $0x10] sm:$0xff]
    %v168 = vld [vmem:[#allocation5 + $0x18] sm:$0xff]
    %v169 = vld [vmem:[#allocation5 + $0x20] sm:$0xff]
    %v170 = vld [vmem:[#allocation5 + $0x28] sm:$0xff]
    %v171 = vld [vmem:[#allocation5 + $0x30] sm:$0xff]
    %v172 = vld [vmem:[#allocation5 + $0x38] sm:$0xff]
    %v173 = vld [vmem:[#allocation5 + $0x40] sm:$0xff]
    %v174 = vld [vmem:[#allocation5 + $0x48] sm:$0xff]
    %v175 = vld [vmem:[#allocation5 + $0x50] sm:$0xff]
    %v176 = vld [vmem:[#allocation5 + $0x58] sm:$0xff]
    %v177 = vld [vmem:[#allocation5 + $0x60] sm:$0xff]
    %v178 = vld [vmem:[#allocation5 + $0x68] sm:$0xff]
    %v179 = vld [vmem:[#allocation5 + $0x70] sm:$0xff]
    %v180 = vld [vmem:[#allocation5 + $0x78] sm:$0xff]
    %v181 = vld [vmem:[#allocation5 + $0x80] sm:$0xff]
    %v182 = vld [vmem:[#allocation5 + $0x88] sm:$0xff]
    %v183 = vld [vmem:[#allocation5 + $0x90] sm:$0xff]
    %v184 = vld [vmem:[#allocation5 + $0x98] sm:$0xff]
    %v185 = vld [vmem:[#allocation5 + $0xa0] sm:$0xff]
    %v186 = vld [vmem:[#allocation5 + $0xa8] sm:$0xff]
    %v187 = vld [vmem:[#allocation5 + $0xb0] sm:$0xff]
    %v188 = vld [vmem:[#allocation5 + $0xb8] sm:$0xff]
    %v189 = vld [vmem:[#allocation5 + $0xc0] sm:$0xff]
    %v190 = vld [vmem:[#allocation5 + $0xc8] sm:$0xff]
    %v191 = vld [vmem:[#allocation5 + $0xd0] sm:$0xff]
    %v192 = vld [vmem:[#allocation5 + $0xd8] sm:$0xff]
    %v193 = vld [vmem:[#allocation5 + $0xe0] sm:$0xff]
    %v194 = vld [vmem:[#allocation5 + $0xe8] sm:$0xff]
    %v195 = vld [vmem:[#allocation5 + $0xf0] sm:$0xff]
    %v196 = vld [vmem:[#allocation5 + $0xf8] sm:$0xff]
    %v197 = vld [vmem:[#allocation5 + $0x100] sm:$0xff]
    %v198 = vld [vmem:[#allocation5 + $0x108] sm:$0xff]
    %v199 = vld [vmem:[#allocation5 + $0x110] sm:$0xff]
    %v200 = vld [vmem:[#allocation5 + $0x118] sm:$0xff]
    %v201 = vld [vmem:[#allocation5 + $0x120] sm:$0xff]
    %v202 = vld [vmem:[#allocation5 + $0x128] sm:$0xff]
    %v203 = vld [vmem:[#allocation5 + $0x130] sm:$0xff]
    %v204 = vld [vmem:[#allocation5 + $0x138] sm:$0xff]
    %v205 = vld [vmem:[#allocation5 + $0x140] sm:$0xff]
    %v206 = vld [vmem:[#allocation5 + $0x148] sm:$0xff]
    %v207 = vld [vmem:[#allocation5 + $0x150] sm:$0xff]
    %v208 = vld [vmem:[#allocation5 + $0x158] sm:$0xff]
    %v209 = vld [vmem:[#allocation5 + $0x160] sm:$0xff]
    %v210 = vld [vmem:[#allocation5 + $0x168] sm:$0xff]
    %v211 = vld [vmem:[#allocation5 + $0x170] sm:$0xff]
    %v212 = vld [vmem:[#allocation5 + $0x178] sm:$0xff]
    %v213 = vld [vmem:[#allocation5 + $0x180] sm:$0xff]
    %v214 = vld [vmem:[#allocation5 + $0x188] sm:$0xff]
    %v215 = vld [vmem:[#allocation5 + $0x190] sm:$0xff]
    %v216 = vld [vmem:[#allocation5 + $0x198] sm:$0xff]
    %v217 = vld [vmem:[#allocation5 + $0x1a0] sm:$0xff]
    %v218 = vld [vmem:[#allocation5 + $0x1a8] sm:$0xff]
    %v219 = vld [vmem:[#allocation5 + $0x1b0] sm:$0xff]
    %v220 = vld [vmem:[#allocation5 + $0x1b8] sm:$0xff]
    %v221 = vld [vmem:[#allocation5 + $0x1c0] sm:$0xff]
    %v222 = vld [vmem:[#allocation5 + $0x1c8] sm:$0xff]
    %v223 = vld [vmem:[#allocation5 + $0x1d0] sm:$0xff]
    %v224 = vld [vmem:[#allocation5 + $0x1d8] sm:$0xff]
    %v225 = vld [vmem:[#allocation5 + $0x1e0] sm:$0xff]
    %v226 = vld [vmem:[#allocation5 + $0x1e8] sm:$0xff]
    %v227 = vld [vmem:[#allocation5 + $0x1f0] sm:$0xff]
    %v228 = vld [vmem:[#allocation5 + $0x1f8] sm:$0xff]
    %v229 = vld [vmem:[#allocation5 + $0x200] sm:$0xff]
    %v230 = vld [vmem:[#allocation5 + $0x208] sm:$0xff]
    %v231 = vld [vmem:[#allocation5 + $0x210] sm:$0xff]
    %v232 = vld [vmem:[#allocation5 + $0x218] sm:$0xff]
    %v233 = vld [vmem:[#allocation5 + $0x220] sm:$0xff]
    %v234 = vld [vmem:[#allocation5 + $0x228] sm:$0xff]
    %v235 = vld [vmem:[#allocation5 + $0x230] sm:$0xff]
    %v236 = vld [vmem:[#allocation5 + $0x238] sm:$0xff]
    %v237 = vld [vmem:[#allocation5 + $0x240] sm:$0xff]
    %v238 = vld [vmem:[#allocation5 + $0x248] sm:$0xff]
    %v239 = vld [vmem:[#allocation5 + $0x250] sm:$0xff]
    %v240 = vld [vmem:[#allocation5 + $0x258] sm:$0xff]
    %v241 = vld [vmem:[#allocation5 + $0x260] sm:$0xff]
    %v242 = vld [vmem:[#allocation5 + $0x268] sm:$0xff]
    %v243 = vld [vmem:[#allocation5 + $0x270] sm:$0xff]
    %v244 = vld [vmem:[#allocation5 + $0x278] sm:$0xff]
    %v245 = vld [vmem:[#allocation5 + $0x280] sm:$0xff]
    %v246 = vld [vmem:[#allocation5 + $0x288] sm:$0xff]
    %v247 = vld [vmem:[#allocation5 + $0x290] sm:$0xff]
    %v248 = vld [vmem:[#allocation5 + $0x298] sm:$0xff]
    %v249 = vld [vmem:[#allocation5 + $0x2a0] sm:$0xff]
    %v250 = vld [vmem:[#allocation5 + $0x2a8] sm:$0xff]
    %v251 = vld [vmem:[#allocation5 + $0x2b0] sm:$0xff]
    %v252 = vld [vmem:[#allocation5 + $0x2b8] sm:$0xff]
    %v253 = vld [vmem:[#allocation5 + $0x2c0] sm:$0xff]
    %v254 = vld [vmem:[#allocation5 + $0x2c8] sm:$0xff]
    %v255 = vld [vmem:[#allocation5 + $0x2d0] sm:$0xff]
    %v256 = vld [vmem:[#allocation5 + $0x2d8] sm:$0xff]
    %v257 = vld [vmem:[#allocation5 + $0x2e0] sm:$0xff]
    %v258 = vld [vmem:[#allocation5 + $0x2e8] sm:$0xff]
    %v259 = vld [vmem:[#allocation5 + $0x2f0] sm:$0xff]
    %v260 = vld [vmem:[#allocation5 + $0x2f8] sm:$0xff]
    %v261 = vld [vmem:[#allocation5 + $0x300] sm:$0xff]
    %v262 = vld [vmem:[#allocation5 + $0x308] sm:$0xff]
    %v263 = vld [vmem:[#allocation5 + $0x310] sm:$0xff]
    %v264 = vld [vmem:[#allocation5 + $0x318] sm:$0xff]
    %v265 = vld [vmem:[#allocation5 + $0x320] sm:$0xff]
    %v266 = vld [vmem:[#allocation5 + $0x328] sm:$0xff]
    %v267 = vld [vmem:[#allocation5 + $0x330] sm:$0xff]
    %v268 = vld [vmem:[#allocation5 + $0x338] sm:$0xff]
    %v269 = vld [vmem:[#allocation5 + $0x340] sm:$0xff]
    %v270 = vld [vmem:[#allocation5 + $0x348] sm:$0xff]
    %v271 = vld [vmem:[#allocation5 + $0x350] sm:$0xff]
    %v272 = vld [vmem:[#allocation5 + $0x358] sm:$0xff]
    %v273 = vld [vmem:[#allocation5 + $0x360] sm:$0xff]
    %v274 = vld [vmem:[#allocation5 + $0x368] sm:$0xff]
    %v275 = vld [vmem:[#allocation5 + $0x370] sm:$0xff]
    %v276 = vld [vmem:[#allocation5 + $0x378] sm:$0xff]
    %v277 = vld [vmem:[#allocation5 + $0x380] sm:$0xff]
    %v278 = vld [vmem:[#allocation5 + $0x388] sm:$0xff]
    %v279 = vld [vmem:[#allocation5 + $0x390] sm:$0xff]
    %v280 = vld [vmem:[#allocation5 + $0x398] sm:$0xff]
    %v281 = vld [vmem:[#allocation5 + $0x3a0] sm:$0xff]
    %v282 = vld [vmem:[#allocation5 + $0x3a8] sm:$0xff]
    %v283 = vld [vmem:[#allocation5 + $0x3b0] sm:$0xff]
    %v284 = vld [vmem:[#allocation5 + $0x3b8] sm:$0xff]
    %v285 = vld [vmem:[#allocation5 + $0x3c0] sm:$0xff]
    %v286 = vld [vmem:[#allocation5 + $0x3c8] sm:$0xff]
    %v287 = vld [vmem:[#allocation5 + $0x3d0] sm:$0xff]
    %v288 = vld [vmem:[#allocation5 + $0x3d8] sm:$0xff]
    %v289 = vld [vmem:[#allocation5 + $0x3e0] sm:$0xff]
    %v290 = vld [vmem:[#allocation5 + $0x3e8] sm:$0xff]
    %v291 = vld [vmem:[#allocation5 + $0x3f0] sm:$0xff]
    %v292 = vld [vmem:[#allocation5 + $0x3f8] sm:$0xff]
    %v293 = vld [vmem:[#allocation5 + $0x400] sm:$0xff]
    %v294 = vld [vmem:[#allocation5 + $0x408] sm:$0xff]
    %v295 = vld [vmem:[#allocation5 + $0x410] sm:$0xff]
    %v296 = vld [vmem:[#allocation5 + $0x418] sm:$0xff]
    %v297 = vld [vmem:[#allocation5 + $0x420] sm:$0xff]
    %v298 = vld [vmem:[#allocation5 + $0x428] sm:$0xff]
    %v299 = vld [vmem:[#allocation5 + $0x430] sm:$0xff]
    %v300 = vld [vmem:[#allocation5 + $0x438] sm:$0xff]
    %v305 = vunpack.c.l.b16 %v161
    %v306 = vunpack.c.h.b16 %v161
    %v307 = vunpack.c.l.b16 %v162
    %v308 = vunpack.c.l.b16 %v163
    %v309 = vunpack.c.h.b16 %v163
    %v310 = vunpack.c.l.b16 %v164
    %v311 = vpack.c.b16 %v308, %v305
    %v312 = vpack.c.b16 %v309, %v306
    %v313 = vpack.c.b16 %v310, %v307
    %v452 = vunpack.c.l.b16 %v165
    %v453 = vunpack.c.h.b16 %v165
    %v454 = vunpack.c.l.b16 %v166
    %v455 = vunpack.c.h.b16 %v166
    %v456 = vunpack.c.l.b16 %v167
    %v457 = vunpack.c.h.b16 %v167
    %v458 = vunpack.c.l.b16 %v168
    %v459 = vunpack.c.h.b16 %v168
    %v460 = vunpack.c.l.b16 %v169
    %v461 = vunpack.c.h.b16 %v169
    %v462 = vunpack.c.l.b16 %v170
    %v463 = vunpack.c.h.b16 %v170
    %v464 = vunpack.c.l.b16 %v171
    %v465 = vunpack.c.h.b16 %v171
    %v466 = vunpack.c.l.b16 %v172
    %v467 = vunpack.c.h.b16 %v172
    %v468 = vunpack.c.l.b16 %v173
    %v469 = vunpack.c.h.b16 %v173
    %v470 = vunpack.c.l.b16 %v174
    %v471 = vunpack.c.h.b16 %v174
    %v472 = vunpack.c.l.b16 %v175
    %v473 = vunpack.c.h.b16 %v175
    %v474 = vunpack.c.l.b16 %v176
    %v475 = vunpack.c.h.b16 %v176
    %v476 = vunpack.c.l.b16 %v177
    %v477 = vunpack.c.h.b16 %v177
    %v478 = vunpack.c.l.b16 %v178
    %v479 = vunpack.c.h.b16 %v178
    %v480 = vunpack.c.l.b16 %v179
    %v481 = vunpack.c.h.b16 %v179
    %v482 = vunpack.c.l.b16 %v180
    %v483 = vunpack.c.h.b16 %v180
    %v484 = vunpack.c.l.b16 %v181
    %v485 = vunpack.c.h.b16 %v181
    %v486 = vunpack.c.l.b16 %v182
    %v487 = vunpack.c.h.b16 %v182
    %v488 = vunpack.c.l.b16 %v183
    %v489 = vunpack.c.h.b16 %v183
    %v490 = vunpack.c.l.b16 %v184
    %v491 = vunpack.c.h.b16 %v184
    %v492 = vunpack.c.l.b16 %v185
    %v493 = vunpack.c.h.b16 %v185
    %v494 = vunpack.c.l.b16 %v186
    %v495 = vunpack.c.h.b16 %v186
    %v496 = vunpack.c.l.b16 %v187
    %v497 = vunpack.c.h.b16 %v187
    %v498 = vunpack.c.l.b16 %v188
    %v499 = vunpack.c.h.b16 %v188
    %v500 = vunpack.c.l.b16 %v189
    %v501 = vunpack.c.h.b16 %v189
    %v502 = vunpack.c.l.b16 %v190
    %v503 = vunpack.c.h.b16 %v190
    %v504 = vunpack.c.l.b16 %v191
    %v505 = vunpack.c.h.b16 %v191
    %v506 = vunpack.c.l.b16 %v192
    %v507 = vunpack.c.h.b16 %v192
    %v508 = vunpack.c.l.b16 %v193
    %v509 = vunpack.c.h.b16 %v193
    %v510 = vunpack.c.l.b16 %v194
    %v511 = vunpack.c.h.b16 %v194
    %v512 = vunpack.c.l.b16 %v195
    %v513 = vunpack.c.h.b16 %v195
    %v514 = vunpack.c.l.b16 %v196
    %v515 = vunpack.c.h.b16 %v196
    %v516 = vunpack.c.l.b16 %v197
    %v517 = vunpack.c.h.b16 %v197
    %v518 = vunpack.c.l.b16 %v198
    %v519 = vunpack.c.h.b16 %v198
    %v520 = vunpack.c.l.b16 %v199
    %v521 = vunpack.c.h.b16 %v199
    %v522 = vunpack.c.l.b16 %v200
    %v523 = vunpack.c.h.b16 %v200
    %v524 = vunpack.c.l.b16 %v201
    %v525 = vunpack.c.h.b16 %v201
    %v526 = vunpack.c.l.b16 %v202
    %v527 = vunpack.c.h.b16 %v202
    %v528 = vunpack.c.l.b16 %v203
    %v529 = vunpack.c.h.b16 %v203
    %v530 = vunpack.c.l.b16 %v204
    %v531 = vunpack.c.h.b16 %v204
    %v532 = vunpack.c.l.b16 %v205
    %v533 = vunpack.c.h.b16 %v205
    %v534 = vunpack.c.l.b16 %v206
    %v535 = vunpack.c.h.b16 %v206
    %v536 = vunpack.c.l.b16 %v207
    %v537 = vunpack.c.h.b16 %v207
    %v538 = vunpack.c.l.b16 %v208
    %v539 = vunpack.c.h.b16 %v208
    %v540 = vunpack.c.l.b16 %v209
    %v541 = vunpack.c.h.b16 %v209
    %v542 = vunpack.c.l.b16 %v210
    %v543 = vunpack.c.h.b16 %v210
    %v544 = vunpack.c.l.b16 %v211
    %v545 = vunpack.c.h.b16 %v211
    %v546 = vunpack.c.l.b16 %v212
    %v547 = vunpack.c.h.b16 %v212
    %v548 = vunpack.c.l.b16 %v213
    %v549 = vunpack.c.h.b16 %v213
    %v550 = vunpack.c.l.b16 %v214
    %v551 = vunpack.c.h.b16 %v214
    %v552 = vunpack.c.l.b16 %v215
    %v553 = vunpack.c.h.b16 %v215
    %v554 = vunpack.c.l.b16 %v216
    %v555 = vunpack.c.h.b16 %v216
    %v556 = vunpack.c.l.b16 %v217
    %v557 = vunpack.c.h.b16 %v217
    %v558 = vunpack.c.l.b16 %v218
    %v559 = vunpack.c.h.b16 %v218
    %v560 = vunpack.c.l.b16 %v219
    %v561 = vunpack.c.h.b16 %v219
    %v562 = vunpack.c.l.b16 %v220
    %v563 = vunpack.c.h.b16 %v220
    %v564 = vunpack.c.l.b16 %v221
    %v565 = vunpack.c.h.b16 %v221
    %v566 = vunpack.c.l.b16 %v222
    %v567 = vunpack.c.h.b16 %v222
    %v568 = vunpack.c.l.b16 %v223
    %v569 = vunpack.c.h.b16 %v223
    %v570 = vunpack.c.l.b16 %v224
    %v571 = vunpack.c.h.b16 %v224
    %v572 = vunpack.c.l.b16 %v225
    %v573 = vunpack.c.h.b16 %v225
    %v574 = vunpack.c.l.b16 %v226
    %v575 = vunpack.c.h.b16 %v226
    %v576 = vunpack.c.l.b16 %v227
    %v577 = vunpack.c.h.b16 %v227
    %v578 = vunpack.c.l.b16 %v228
    %v579 = vunpack.c.h.b16 %v228
    %v580 = vunpack.c.l.b16 %v229
    %v581 = vunpack.c.h.b16 %v229
    %v582 = vunpack.c.l.b16 %v230
    %v583 = vunpack.c.h.b16 %v230
    %v584 = vunpack.c.l.b16 %v231
    %v585 = vunpack.c.h.b16 %v231
    %v586 = vunpack.c.l.b16 %v232
    %v587 = vunpack.c.h.b16 %v232
    %v588 = vunpack.c.l.b16 %v233
    %v589 = vunpack.c.h.b16 %v233
    %v590 = vunpack.c.l.b16 %v234
    %v591 = vunpack.c.h.b16 %v234
    %v592 = vunpack.c.l.b16 %v235
    %v593 = vunpack.c.h.b16 %v235
    %v594 = vunpack.c.l.b16 %v236
    %v595 = vunpack.c.h.b16 %v236
    %v596 = vunpack.c.l.b16 %v237
    %v597 = vunpack.c.h.b16 %v237
    %v598 = vunpack.c.l.b16 %v238
    %v599 = vunpack.c.h.b16 %v238
    %v600 = vunpack.c.l.b16 %v239
    %v601 = vunpack.c.h.b16 %v239
    %v602 = vunpack.c.l.b16 %v240
    %v603 = vunpack.c.h.b16 %v240
    %v604 = vunpack.c.l.b16 %v241
    %v605 = vunpack.c.h.b16 %v241
    %v606 = vunpack.c.l.b16 %v242
    %v607 = vunpack.c.h.b16 %v242
    %v608 = vunpack.c.l.b16 %v243
    %v609 = vunpack.c.h.b16 %v243
    %v610 = vunpack.c.l.b16 %v244
    %v611 = vunpack.c.h.b16 %v244
    %v612 = vunpack.c.l.b16 %v245
    %v613 = vunpack.c.h.b16 %v245
    %v614 = vunpack.c.l.b16 %v246
    %v615 = vunpack.c.h.b16 %v246
    %v616 = vunpack.c.l.b16 %v247
    %v617 = vunpack.c.h.b16 %v247
    %v618 = vunpack.c.l.b16 %v248
    %v619 = vunpack.c.h.b16 %v248
    %v620 = vunpack.c.l.b16 %v249
    %v621 = vunpack.c.h.b16 %v249
    %v622 = vunpack.c.l.b16 %v250
    %v623 = vunpack.c.h.b16 %v250
    %v624 = vunpack.c.l.b16 %v251
    %v625 = vunpack.c.h.b16 %v251
    %v626 = vunpack.c.l.b16 %v252
    %v627 = vunpack.c.h.b16 %v252
    %v628 = vunpack.c.l.b16 %v253
    %v629 = vunpack.c.h.b16 %v253
    %v630 = vunpack.c.l.b16 %v254
    %v631 = vunpack.c.h.b16 %v254
    %v632 = vunpack.c.l.b16 %v255
    %v633 = vunpack.c.h.b16 %v255
    %v634 = vunpack.c.l.b16 %v256
    %v635 = vunpack.c.h.b16 %v256
    %v636 = vunpack.c.l.b16 %v257
    %v637 = vunpack.c.h.b16 %v257
    %v638 = vunpack.c.l.b16 %v258
    %v639 = vunpack.c.h.b16 %v258
    %v640 = vunpack.c.l.b16 %v259
    %v641 = vunpack.c.h.b16 %v259
    %v642 = vunpack.c.l.b16 %v260
    %v643 = vunpack.c.h.b16 %v260
    %v644 = vunpack.c.l.b16 %v261
    %v645 = vunpack.c.h.b16 %v261
    %v646 = vunpack.c.l.b16 %v262
    %v647 = vunpack.c.h.b16 %v262
    %v648 = vunpack.c.l.b16 %v263
    %v649 = vunpack.c.h.b16 %v263
    %v650 = vunpack.c.l.b16 %v264
    %v651 = vunpack.c.h.b16 %v264
    %v652 = vunpack.c.l.b16 %v265
    %v653 = vunpack.c.h.b16 %v265
    %v654 = vunpack.c.l.b16 %v266
    %v655 = vunpack.c.h.b16 %v266
    %v656 = vunpack.c.l.b16 %v267
    %v657 = vunpack.c.h.b16 %v267
    %v658 = vunpack.c.l.b16 %v268
    %v659 = vunpack.c.h.b16 %v268
    %v660 = vunpack.c.l.b16 %v269
    %v661 = vunpack.c.h.b16 %v269
    %v662 = vunpack.c.l.b16 %v270
    %v663 = vunpack.c.h.b16 %v270
    %v664 = vunpack.c.l.b16 %v271
    %v665 = vunpack.c.h.b16 %v271
    %v666 = vunpack.c.l.b16 %v272
    %v667 = vunpack.c.h.b16 %v272
    %v668 = vunpack.c.l.b16 %v273
    %v669 = vunpack.c.h.b16 %v273
    %v670 = vunpack.c.l.b16 %v274
    %v671 = vunpack.c.h.b16 %v274
    %v672 = vunpack.c.l.b16 %v275
    %v673 = vunpack.c.h.b16 %v275
    %v674 = vunpack.c.l.b16 %v276
    %v675 = vunpack.c.h.b16 %v276
    %v676 = vunpack.c.l.b16 %v277
    %v677 = vunpack.c.h.b16 %v277
    %v678 = vunpack.c.l.b16 %v278
    %v679 = vunpack.c.h.b16 %v278
    %v680 = vunpack.c.l.b16 %v279
    %v681 = vunpack.c.h.b16 %v279
    %v682 = vunpack.c.l.b16 %v280
    %v683 = vunpack.c.h.b16 %v280
    %v684 = vunpack.c.l.b16 %v281
    %v685 = vunpack.c.h.b16 %v281
    %v686 = vunpack.c.l.b16 %v282
    %v687 = vunpack.c.h.b16 %v282
    %v688 = vunpack.c.l.b16 %v283
    %v689 = vunpack.c.h.b16 %v283
    %v690 = vunpack.c.l.b16 %v284
    %v691 = vunpack.c.h.b16 %v284
    %v692 = vunpack.c.l.b16 %v285
    %v693 = vunpack.c.h.b16 %v285
    %v694 = vunpack.c.l.b16 %v286
    %v695 = vunpack.c.h.b16 %v286
    %v696 = vunpack.c.l.b16 %v287
    %v697 = vunpack.c.h.b16 %v287
    %v698 = vunpack.c.l.b16 %v288
    %v699 = vunpack.c.h.b16 %v288
    %v700 = vunpack.c.l.b16 %v289
    %v701 = vunpack.c.h.b16 %v289
    %v702 = vunpack.c.l.b16 %v290
    %v703 = vunpack.c.h.b16 %v290
    %v704 = vunpack.c.l.b16 %v291
    %v705 = vunpack.c.h.b16 %v291
    %v706 = vunpack.c.l.b16 %v292
    %v707 = vunpack.c.h.b16 %v292
    %v708 = vunpack.c.l.b16 %v293
    %v709 = vunpack.c.h.b16 %v293
    %v710 = vunpack.c.l.b16 %v294
    %v711 = vunpack.c.h.b16 %v294
    %v712 = vunpack.c.l.b16 %v295
    %v713 = vunpack.c.h.b16 %v295
    %v714 = vunpack.c.l.b16 %v296
    %v715 = vunpack.c.h.b16 %v296
    %v716 = vunpack.c.l.b16 %v297
    %v717 = vunpack.c.h.b16 %v297
    %v718 = vunpack.c.l.b16 %v298
    %v719 = vunpack.c.h.b16 %v298
    %v720 = vunpack.c.l.b16 %v299
    %v721 = vunpack.c.h.b16 %v299
    %v722 = vunpack.c.l.b16 %v300
    %v723 = vunpack.c.h.b16 %v300
    %v724 = vpack.c.b16 %v460, %v452
    %v725 = vpack.c.b16 %v461, %v453
    %v726 = vpack.c.b16 %v462, %v454
    %v727 = vpack.c.b16 %v463, %v455
    %v728 = vpack.c.b16 %v464, %v456
    %v729 = vpack.c.b16 %v465, %v457
    %v730 = vpack.c.b16 %v466, %v458
    %v731 = vpack.c.b16 %v467, %v459
    %v732 = vpack.c.b16 %v476, %v468
    %v733 = vpack.c.b16 %v477, %v469
    %v734 = vpack.c.b16 %v478, %v470
    %v735 = vpack.c.b16 %v479, %v471
    %v736 = vpack.c.b16 %v480, %v472
    %v737 = vpack.c.b16 %v481, %v473
    %v738 = vpack.c.b16 %v482, %v474
    %v739 = vpack.c.b16 %v483, %v475
    %v740 = vpack.c.b16 %v492, %v484
    %v741 = vpack.c.b16 %v493, %v485
    %v742 = vpack.c.b16 %v494, %v486
    %v743 = vpack.c.b16 %v495, %v487
    %v744 = vpack.c.b16 %v496, %v488
    %v745 = vpack.c.b16 %v497, %v489
    %v746 = vpack.c.b16 %v498, %v490
    %v747 = vpack.c.b16 %v499, %v491
    %v748 = vpack.c.b16 %v508, %v500
    %v749 = vpack.c.b16 %v509, %v501
    %v750 = vpack.c.b16 %v510, %v502
    %v751 = vpack.c.b16 %v511, %v503
    %v752 = vpack.c.b16 %v512, %v504
    %v753 = vpack.c.b16 %v513, %v505
    %v754 = vpack.c.b16 %v514, %v506
    %v755 = vpack.c.b16 %v515, %v507
    %v756 = vpack.c.b16 %v524, %v516
    %v757 = vpack.c.b16 %v525, %v517
    %v758 = vpack.c.b16 %v526, %v518
    %v759 = vpack.c.b16 %v527, %v519
    %v760 = vpack.c.b16 %v528, %v520
    %v761 = vpack.c.b16 %v529, %v521
    %v762 = vpack.c.b16 %v530, %v522
    %v763 = vpack.c.b16 %v531, %v523
    %v764 = vpack.c.b16 %v540, %v532
    %v765 = vpack.c.b16 %v541, %v533
    %v766 = vpack.c.b16 %v542, %v534
    %v767 = vpack.c.b16 %v543, %v535
    %v768 = vpack.c.b16 %v544, %v536
    %v769 = vpack.c.b16 %v545, %v537
    %v770 = vpack.c.b16 %v546, %v538
    %v771 = vpack.c.b16 %v547, %v539
    %v772 = vpack.c.b16 %v556, %v548
    %v773 = vpack.c.b16 %v557, %v549
    %v774 = vpack.c.b16 %v558, %v550
    %v775 = vpack.c.b16 %v559, %v551
    %v776 = vpack.c.b16 %v560, %v552
    %v777 = vpack.c.b16 %v561, %v553
    %v778 = vpack.c.b16 %v562, %v554
    %v779 = vpack.c.b16 %v563, %v555
    %v780 = vpack.c.b16 %v572, %v564
    %v781 = vpack.c.b16 %v573, %v565
    %v782 = vpack.c.b16 %v574, %v566
    %v783 = vpack.c.b16 %v575, %v567
    %v784 = vpack.c.b16 %v576, %v568
    %v785 = vpack.c.b16 %v577, %v569
    %v786 = vpack.c.b16 %v578, %v570
    %v787 = vpack.c.b16 %v579, %v571
    %v788 = vpack.c.b16 %v588, %v580
    %v789 = vpack.c.b16 %v589, %v581
    %v790 = vpack.c.b16 %v590, %v582
    %v791 = vpack.c.b16 %v591, %v583
    %v792 = vpack.c.b16 %v592, %v584
    %v793 = vpack.c.b16 %v593, %v585
    %v794 = vpack.c.b16 %v594, %v586
    %v795 = vpack.c.b16 %v595, %v587
    %v796 = vpack.c.b16 %v604, %v596
    %v797 = vpack.c.b16 %v605, %v597
    %v798 = vpack.c.b16 %v606, %v598
    %v799 = vpack.c.b16 %v607, %v599
    %v800 = vpack.c.b16 %v608, %v600
    %v801 = vpack.c.b16 %v609, %v601
    %v802 = vpack.c.b16 %v610, %v602
    %v803 = vpack.c.b16 %v611, %v603
    %v804 = vpack.c.b16 %v620, %v612
    %v805 = vpack.c.b16 %v621, %v613
    %v806 = vpack.c.b16 %v622, %v614
    %v807 = vpack.c.b16 %v623, %v615
    %v808 = vpack.c.b16 %v624, %v616
    %v809 = vpack.c.b16 %v625, %v617
    %v810 = vpack.c.b16 %v626, %v618
    %v811 = vpack.c.b16 %v627, %v619
    %v812 = vpack.c.b16 %v636, %v628
    %v813 = vpack.c.b16 %v637, %v629
    %v814 = vpack.c.b16 %v638, %v630
    %v815 = vpack.c.b16 %v639, %v631
    %v816 = vpack.c.b16 %v640, %v632
    %v817 = vpack.c.b16 %v641, %v633
    %v818 = vpack.c.b16 %v642, %v634
    %v819 = vpack.c.b16 %v643, %v635
    %v820 = vpack.c.b16 %v652, %v644
    %v821 = vpack.c.b16 %v653, %v645
    %v822 = vpack.c.b16 %v654, %v646
    %v823 = vpack.c.b16 %v655, %v647
    %v824 = vpack.c.b16 %v656, %v648
    %v825 = vpack.c.b16 %v657, %v649
    %v826 = vpack.c.b16 %v658, %v650
    %v827 = vpack.c.b16 %v659, %v651
    %v828 = vpack.c.b16 %v668, %v660
    %v829 = vpack.c.b16 %v669, %v661
    %v830 = vpack.c.b16 %v670, %v662
    %v831 = vpack.c.b16 %v671, %v663
    %v832 = vpack.c.b16 %v672, %v664
    %v833 = vpack.c.b16 %v673, %v665
    %v834 = vpack.c.b16 %v674, %v666
    %v835 = vpack.c.b16 %v675, %v667
    %v836 = vpack.c.b16 %v684, %v676
    %v837 = vpack.c.b16 %v685, %v677
    %v838 = vpack.c.b16 %v686, %v678
    %v839 = vpack.c.b16 %v687, %v679
    %v840 = vpack.c.b16 %v688, %v680
    %v841 = vpack.c.b16 %v689, %v681
    %v842 = vpack.c.b16 %v690, %v682
    %v843 = vpack.c.b16 %v691, %v683
    %v844 = vpack.c.b16 %v700, %v692
    %v845 = vpack.c.b16 %v701, %v693
    %v846 = vpack.c.b16 %v702, %v694
    %v847 = vpack.c.b16 %v703, %v695
    %v848 = vpack.c.b16 %v704, %v696
    %v849 = vpack.c.b16 %v705, %v697
    %v850 = vpack.c.b16 %v706, %v698
    %v851 = vpack.c.b16 %v707, %v699
    %v852 = vpack.c.b16 %v716, %v708
    %v853 = vpack.c.b16 %v717, %v709
    %v854 = vpack.c.b16 %v718, %v710
    %v855 = vpack.c.b16 %v719, %v711
    %v856 = vpack.c.b16 %v720, %v712
    %v857 = vpack.c.b16 %v721, %v713
    %v858 = vpack.c.b16 %v722, %v714
    %v859 = vpack.c.b16 %v723, %v715
    %vm996 = vcmask 130048
    %v998 = vsel %vm996, %v313, 0
    %1000 = vmatpush.bf16.msra.mxu0 %v780
    %1001 = vmatpush.bf16.msra.mxu0 %v772
    %1002 = vmatpush.bf16.msra.mxu0 %v764
    %1003 = vmatpush.bf16.msra.mxu0 %v756
    %1004 = vmatpush.bf16.msra.mxu0 %v748
    %1005 = vmatpush.bf16.msra.mxu0 %v740
    %1006 = vmatpush.bf16.msra.mxu0 %v732
    %1007 = vmatpush.bf16.msra.mxu0 %v724
    %1008 = vmatmul.bf16.gmra.mxu0 %v311
    %v1009 = vpop.f32.mrf.mxu0
    %v1010 = vadd.f32 0.0, %v1009
    %v1011 = vpop.f32.mrf.mxu0
    %v1012 = vadd.f32 0.0, %v1011
    %1013 = vdwg.mxu0
    %1014 = vmatpush.bf16.msra.mxu0 %v844
    %1015 = vmatpush.bf16.msra.mxu0 %v836
    %1016 = vmatpush.bf16.msra.mxu0 %v828
    %1017 = vmatpush.bf16.msra.mxu0 %v820
    %1018 = vmatpush.bf16.msra.mxu0 %v812
    %1019 = vmatpush.bf16.msra.mxu0 %v804
    %1020 = vmatpush.bf16.msra.mxu0 %v796
    %1021 = vmatpush.bf16.msra.mxu0 %v788
    %1022 = vmatmul.bf16.gmra.mxu0 %v312
    %v1023 = vpop.f32.mrf.mxu0
    %v1024 = vadd.f32 %v1010, %v1023
    %v1025 = vpop.f32.mrf.mxu0
    %v1026 = vadd.f32 %v1012, %v1025
    %1027 = vdwg.mxu0
    %1028 = vmatpush.bf16.msra.mxu0 0
    %1029 = vmatpush.bf16.msra.mxu0 0
    %1030 = vmatpush.bf16.msra.mxu0 0
    %1031 = vmatpush.bf16.msra.mxu0 0
    %1032 = vmatpush.bf16.msra.mxu0 0
    %1033 = vmatpush.bf16.msra.mxu0 0
    %1034 = vmatpush.bf16.msra.mxu0 0
    %1035 = vmatpush.bf16.msra.mxu0 %v852
    %1036 = vmatmul.bf16.gmra.mxu0 %v998
    %v1037 = vpop.f32.mrf.mxu0
    %v1038 = vadd.f32 %v1024, %v1037
    %v1039 = vpop.f32.mrf.mxu0
    %v1040 = vadd.f32 %v1026, %v1039
    %1041 = vdwg.mxu0
    %1042 = vmatpush.bf16.msra.mxu0 %v781
    %1043 = vmatpush.bf16.msra.mxu0 %v773
    %1044 = vmatpush.bf16.msra.mxu0 %v765
    %1045 = vmatpush.bf16.msra.mxu0 %v757
    %1046 = vmatpush.bf16.msra.mxu0 %v749
    %1047 = vmatpush.bf16.msra.mxu0 %v741
    %1048 = vmatpush.bf16.msra.mxu0 %v733
    %1049 = vmatpush.bf16.msra.mxu0 %v725
    %1050 = vmatmul.bf16.gmra.mxu0 %v311
    %v1051 = vpop.f32.mrf.mxu0
    %v1052 = vadd.f32 0.0, %v1051
    %v1053 = vpop.f32.mrf.mxu0
    %v1054 = vadd.f32 0.0, %v1053
    %1055 = vdwg.mxu0
    %1056 = vmatpush.bf16.msra.mxu0 %v845
    %1057 = vmatpush.bf16.msra.mxu0 %v837
    %1058 = vmatpush.bf16.msra.mxu0 %v829
    %1059 = vmatpush.bf16.msra.mxu0 %v821
    %1060 = vmatpush.bf16.msra.mxu0 %v813
    %1061 = vmatpush.bf16.msra.mxu0 %v805
    %1062 = vmatpush.bf16.msra.mxu0 %v797
    %1063 = vmatpush.bf16.msra.mxu0 %v789
    %1064 = vmatmul.bf16.gmra.mxu0 %v312
    %v1065 = vpop.f32.mrf.mxu0
    %v1066 = vadd.f32 %v1052, %v1065
    %v1067 = vpop.f32.mrf.mxu0
    %v1068 = vadd.f32 %v1054, %v1067
    %1069 = vdwg.mxu0
    %1070 = vmatpush.bf16.msra.mxu0 0
    %1071 = vmatpush.bf16.msra.mxu0 0
    %1072 = vmatpush.bf16.msra.mxu0 0
    %1073 = vmatpush.bf16.msra.mxu0 0
    %1074 = vmatpush.bf16.msra.mxu0 0
    %1075 = vmatpush.bf16.msra.mxu0 0
    %1076 = vmatpush.bf16.msra.mxu0 0
    %1077 = vmatpush.bf16.msra.mxu0 %v853
    %1078 = vmatmul.bf16.gmra.mxu0 %v998
    %v1079 = vpop.f32.mrf.mxu0
    %v1080 = vadd.f32 %v1066, %v1079
    %v1081 = vpop.f32.mrf.mxu0
    %v1082 = vadd.f32 %v1068, %v1081
    %1083 = vdwg.mxu0
    %1084 = vmatpush.bf16.msra.mxu0 %v782
    %1085 = vmatpush.bf16.msra.mxu0 %v774
    %1086 = vmatpush.bf16.msra.mxu0 %v766
    %1087 = vmatpush.bf16.msra.mxu0 %v758
    %1088 = vmatpush.bf16.msra.mxu0 %v750
    %1089 = vmatpush.bf16.msra.mxu0 %v742
    %1090 = vmatpush.bf16.msra.mxu0 %v734
    %1091 = vmatpush.bf16.msra.mxu0 %v726
    %1092 = vmatmul.bf16.gmra.mxu0 %v311
    %v1093 = vpop.f32.mrf.mxu0
    %v1094 = vadd.f32 0.0, %v1093
    %v1095 = vpop.f32.mrf.mxu0
    %v1096 = vadd.f32 0.0, %v1095
    %1097 = vdwg.mxu0
    %1098 = vmatpush.bf16.msra.mxu0 %v846
    %1099 = vmatpush.bf16.msra.mxu0 %v838
    %1100 = vmatpush.bf16.msra.mxu0 %v830
    %1101 = vmatpush.bf16.msra.mxu0 %v822
    %1102 = vmatpush.bf16.msra.mxu0 %v814
    %1103 = vmatpush.bf16.msra.mxu0 %v806
    %1104 = vmatpush.bf16.msra.mxu0 %v798
    %1105 = vmatpush.bf16.msra.mxu0 %v790
    %1106 = vmatmul.bf16.gmra.mxu0 %v312
    %v1107 = vpop.f32.mrf.mxu0
    %v1108 = vadd.f32 %v1094, %v1107
    %v1109 = vpop.f32.mrf.mxu0
    %v1110 = vadd.f32 %v1096, %v1109
    %1111 = vdwg.mxu0
    %1112 = vmatpush.bf16.msra.mxu0 0
    %1113 = vmatpush.bf16.msra.mxu0 0
    %1114 = vmatpush.bf16.msra.mxu0 0
    %1115 = vmatpush.bf16.msra.mxu0 0
    %1116 = vmatpush.bf16.msra.mxu0 0
    %1117 = vmatpush.bf16.msra.mxu0 0
    %1118 = vmatpush.bf16.msra.mxu0 0
    %1119 = vmatpush.bf16.msra.mxu0 %v854
    %1120 = vmatmul.bf16.gmra.mxu0 %v998
    %v1121 = vpop.f32.mrf.mxu0
    %v1122 = vadd.f32 %v1108, %v1121
    %v1123 = vpop.f32.mrf.mxu0
    %v1124 = vadd.f32 %v1110, %v1123
    %1125 = vdwg.mxu0
    %1126 = vmatpush.bf16.msra.mxu0 %v783
    %1127 = vmatpush.bf16.msra.mxu0 %v775
    %1128 = vmatpush.bf16.msra.mxu0 %v767
    %1129 = vmatpush.bf16.msra.mxu0 %v759
    %1130 = vmatpush.bf16.msra.mxu0 %v751
    %1131 = vmatpush.bf16.msra.mxu0 %v743
    %1132 = vmatpush.bf16.msra.mxu0 %v735
    %1133 = vmatpush.bf16.msra.mxu0 %v727
    %1134 = vmatmul.bf16.gmra.mxu0 %v311
    %v1135 = vpop.f32.mrf.mxu0
    %v1136 = vadd.f32 0.0, %v1135
    %v1137 = vpop.f32.mrf.mxu0
    %v1138 = vadd.f32 0.0, %v1137
    %1139 = vdwg.mxu0
    %1140 = vmatpush.bf16.msra.mxu0 %v847
    %1141 = vmatpush.bf16.msra.mxu0 %v839
    %1142 = vmatpush.bf16.msra.mxu0 %v831
    %1143 = vmatpush.bf16.msra.mxu0 %v823
    %1144 = vmatpush.bf16.msra.mxu0 %v815
    %1145 = vmatpush.bf16.msra.mxu0 %v807
    %1146 = vmatpush.bf16.msra.mxu0 %v799
    %1147 = vmatpush.bf16.msra.mxu0 %v791
    %1148 = vmatmul.bf16.gmra.mxu0 %v312
    %v1149 = vpop.f32.mrf.mxu0
    %v1150 = vadd.f32 %v1136, %v1149
    %v1151 = vpop.f32.mrf.mxu0
    %v1152 = vadd.f32 %v1138, %v1151
    %1153 = vdwg.mxu0
    %1154 = vmatpush.bf16.msra.mxu0 0
    %1155 = vmatpush.bf16.msra.mxu0 0
    %1156 = vmatpush.bf16.msra.mxu0 0
    %1157 = vmatpush.bf16.msra.mxu0 0
    %1158 = vmatpush.bf16.msra.mxu0 0
    %1159 = vmatpush.bf16.msra.mxu0 0
    %1160 = vmatpush.bf16.msra.mxu0 0
    %1161 = vmatpush.bf16.msra.mxu0 %v855
    %1162 = vmatmul.bf16.gmra.mxu0 %v998
    %v1163 = vpop.f32.mrf.mxu0
    %v1164 = vadd.f32 %v1150, %v1163
    %v1165 = vpop.f32.mrf.mxu0
    %v1166 = vadd.f32 %v1152, %v1165
    %1167 = vdwg.mxu0
    %1168 = vmatpush.bf16.msra.mxu0 %v784
    %1169 = vmatpush.bf16.msra.mxu0 %v776
    %1170 = vmatpush.bf16.msra.mxu0 %v768
    %1171 = vmatpush.bf16.msra.mxu0 %v760
    %1172 = vmatpush.bf16.msra.mxu0 %v752
    %1173 = vmatpush.bf16.msra.mxu0 %v744
    %1174 = vmatpush.bf16.msra.mxu0 %v736
    %1175 = vmatpush.bf16.msra.mxu0 %v728
    %1176 = vmatmul.bf16.gmra.mxu0 %v311
    %v1177 = vpop.f32.mrf.mxu0
    %v1178 = vadd.f32 0.0, %v1177
    %v1179 = vpop.f32.mrf.mxu0
    %v1180 = vadd.f32 0.0, %v1179
    %1181 = vdwg.mxu0
    %1182 = vmatpush.bf16.msra.mxu0 %v848
    %1183 = vmatpush.bf16.msra.mxu0 %v840
    %1184 = vmatpush.bf16.msra.mxu0 %v832
    %1185 = vmatpush.bf16.msra.mxu0 %v824
    %1186 = vmatpush.bf16.msra.mxu0 %v816
    %1187 = vmatpush.bf16.msra.mxu0 %v808
    %1188 = vmatpush.bf16.msra.mxu0 %v800
    %1189 = vmatpush.bf16.msra.mxu0 %v792
    %1190 = vmatmul.bf16.gmra.mxu0 %v312
    %v1191 = vpop.f32.mrf.mxu0
    %v1192 = vadd.f32 %v1178, %v1191
    %v1193 = vpop.f32.mrf.mxu0
    %v1194 = vadd.f32 %v1180, %v1193
    %1195 = vdwg.mxu0
    %1196 = vmatpush.bf16.msra.mxu0 0
    %1197 = vmatpush.bf16.msra.mxu0 0
    %1198 = vmatpush.bf16.msra.mxu0 0
    %1199 = vmatpush.bf16.msra.mxu0 0
    %1200 = vmatpush.bf16.msra.mxu0 0
    %1201 = vmatpush.bf16.msra.mxu0 0
    %1202 = vmatpush.bf16.msra.mxu0 0
    %1203 = vmatpush.bf16.msra.mxu0 %v856
    %1204 = vmatmul.bf16.gmra.mxu0 %v998
    %v1205 = vpop.f32.mrf.mxu0
    %v1206 = vadd.f32 %v1192, %v1205
    %v1207 = vpop.f32.mrf.mxu0
    %v1208 = vadd.f32 %v1194, %v1207
    %1209 = vdwg.mxu0
    %1210 = vmatpush.bf16.msra.mxu0 %v785
    %1211 = vmatpush.bf16.msra.mxu0 %v777
    %1212 = vmatpush.bf16.msra.mxu0 %v769
    %1213 = vmatpush.bf16.msra.mxu0 %v761
    %1214 = vmatpush.bf16.msra.mxu0 %v753
    %1215 = vmatpush.bf16.msra.mxu0 %v745
    %1216 = vmatpush.bf16.msra.mxu0 %v737
    %1217 = vmatpush.bf16.msra.mxu0 %v729
    %1218 = vmatmul.bf16.gmra.mxu0 %v311
    %v1219 = vpop.f32.mrf.mxu0
    %v1220 = vadd.f32 0.0, %v1219
    %v1221 = vpop.f32.mrf.mxu0
    %v1222 = vadd.f32 0.0, %v1221
    %1223 = vdwg.mxu0
    %1224 = vmatpush.bf16.msra.mxu0 %v849
    %1225 = vmatpush.bf16.msra.mxu0 %v841
    %1226 = vmatpush.bf16.msra.mxu0 %v833
    %1227 = vmatpush.bf16.msra.mxu0 %v825
    %1228 = vmatpush.bf16.msra.mxu0 %v817
    %1229 = vmatpush.bf16.msra.mxu0 %v809
    %1230 = vmatpush.bf16.msra.mxu0 %v801
    %1231 = vmatpush.bf16.msra.mxu0 %v793
    %1232 = vmatmul.bf16.gmra.mxu0 %v312
    %v1233 = vpop.f32.mrf.mxu0
    %v1234 = vadd.f32 %v1220, %v1233
    %v1235 = vpop.f32.mrf.mxu0
    %v1236 = vadd.f32 %v1222, %v1235
    %1237 = vdwg.mxu0
    %1238 = vmatpush.bf16.msra.mxu0 0
    %1239 = vmatpush.bf16.msra.mxu0 0
    %1240 = vmatpush.bf16.msra.mxu0 0
    %1241 = vmatpush.bf16.msra.mxu0 0
    %1242 = vmatpush.bf16.msra.mxu0 0
    %1243 = vmatpush.bf16.msra.mxu0 0
    %1244 = vmatpush.bf16.msra.mxu0 0
    %1245 = vmatpush.bf16.msra.mxu0 %v857
    %1246 = vmatmul.bf16.gmra.mxu0 %v998
    %v1247 = vpop.f32.mrf.mxu0
    %v1248 = vadd.f32 %v1234, %v1247
    %v1249 = vpop.f32.mrf.mxu0
    %v1250 = vadd.f32 %v1236, %v1249
    %1251 = vdwg.mxu0
    %1252 = vmatpush.bf16.msra.mxu0 %v786
    %1253 = vmatpush.bf16.msra.mxu0 %v778
    %1254 = vmatpush.bf16.msra.mxu0 %v770
    %1255 = vmatpush.bf16.msra.mxu0 %v762
    %1256 = vmatpush.bf16.msra.mxu0 %v754
    %1257 = vmatpush.bf16.msra.mxu0 %v746
    %1258 = vmatpush.bf16.msra.mxu0 %v738
    %1259 = vmatpush.bf16.msra.mxu0 %v730
    %1260 = vmatmul.bf16.gmra.mxu0 %v311
    %v1261 = vpop.f32.mrf.mxu0
    %v1262 = vadd.f32 0.0, %v1261
    %v1263 = vpop.f32.mrf.mxu0
    %v1264 = vadd.f32 0.0, %v1263
    %1265 = vdwg.mxu0
    %1266 = vmatpush.bf16.msra.mxu0 %v850
    %1267 = vmatpush.bf16.msra.mxu0 %v842
    %1268 = vmatpush.bf16.msra.mxu0 %v834
    %1269 = vmatpush.bf16.msra.mxu0 %v826
    %1270 = vmatpush.bf16.msra.mxu0 %v818
    %1271 = vmatpush.bf16.msra.mxu0 %v810
    %1272 = vmatpush.bf16.msra.mxu0 %v802
    %1273 = vmatpush.bf16.msra.mxu0 %v794
    %1274 = vmatmul.bf16.gmra.mxu0 %v312
    %v1275 = vpop.f32.mrf.mxu0
    %v1276 = vadd.f32 %v1262, %v1275
    %v1277 = vpop.f32.mrf.mxu0
    %v1278 = vadd.f32 %v1264, %v1277
    %1279 = vdwg.mxu0
    %1280 = vmatpush.bf16.msra.mxu0 0
    %1281 = vmatpush.bf16.msra.mxu0 0
    %1282 = vmatpush.bf16.msra.mxu0 0
    %1283 = vmatpush.bf16.msra.mxu0 0
    %1284 = vmatpush.bf16.msra.mxu0 0
    %1285 = vmatpush.bf16.msra.mxu0 0
    %1286 = vmatpush.bf16.msra.mxu0 0
    %1287 = vmatpush.bf16.msra.mxu0 %v858
    %1288 = vmatmul.bf16.gmra.mxu0 %v998
    %v1289 = vpop.f32.mrf.mxu0
    %v1290 = vadd.f32 %v1276, %v1289
    %v1291 = vpop.f32.mrf.mxu0
    %v1292 = vadd.f32 %v1278, %v1291
    %1293 = vdwg.mxu0
    %1294 = vmatpush.bf16.msra.mxu0 %v787
    %1295 = vmatpush.bf16.msra.mxu0 %v779
    %1296 = vmatpush.bf16.msra.mxu0 %v771
    %1297 = vmatpush.bf16.msra.mxu0 %v763
    %1298 = vmatpush.bf16.msra.mxu0 %v755
    %1299 = vmatpush.bf16.msra.mxu0 %v747
    %1300 = vmatpush.bf16.msra.mxu0 %v739
    %1301 = vmatpush.bf16.msra.mxu0 %v731
    %1302 = vmatmul.bf16.gmra.mxu0 %v311
    %v1303 = vpop.f32.mrf.mxu0
    %v1304 = vadd.f32 0.0, %v1303
    %v1305 = vpop.f32.mrf.mxu0
    %v1306 = vadd.f32 0.0, %v1305
    %1307 = vdwg.mxu0
    %1308 = vmatpush.bf16.msra.mxu0 %v851
    %1309 = vmatpush.bf16.msra.mxu0 %v843
    %1310 = vmatpush.bf16.msra.mxu0 %v835
    %1311 = vmatpush.bf16.msra.mxu0 %v827
    %1312 = vmatpush.bf16.msra.mxu0 %v819
    %1313 = vmatpush.bf16.msra.mxu0 %v811
    %1314 = vmatpush.bf16.msra.mxu0 %v803
    %1315 = vmatpush.bf16.msra.mxu0 %v795
    %1316 = vmatmul.bf16.gmra.mxu0 %v312
    %v1317 = vpop.f32.mrf.mxu0
    %v1318 = vadd.f32 %v1304, %v1317
    %v1319 = vpop.f32.mrf.mxu0
    %v1320 = vadd.f32 %v1306, %v1319
    %1321 = vdwg.mxu0
    %1322 = vmatpush.bf16.msra.mxu0 0
    %1323 = vmatpush.bf16.msra.mxu0 0
    %1324 = vmatpush.bf16.msra.mxu0 0
    %1325 = vmatpush.bf16.msra.mxu0 0
    %1326 = vmatpush.bf16.msra.mxu0 0
    %1327 = vmatpush.bf16.msra.mxu0 0
    %1328 = vmatpush.bf16.msra.mxu0 0
    %1329 = vmatpush.bf16.msra.mxu0 %v859
    %1330 = vmatmul.bf16.gmra.mxu0 %v998
    %v1331 = vpop.f32.mrf.mxu0
    %v1332 = vadd.f32 %v1318, %v1331
    %v1333 = vpop.f32.mrf.mxu0
    %v1334 = vadd.f32 %v1320, %v1333
    %1335 = vdwg.mxu0
    %v1336 = vpack.c.bf16 %v1080, %v1038
    %v1337 = vpack.c.bf16 %v1164, %v1122
    %v1338 = vpack.c.bf16 %v1248, %v1206
    %v1339 = vpack.c.bf16 %v1332, %v1290
    %v1340 = vpack.c.bf16 %v1082, %v1040
    %v1341 = vpack.c.bf16 %v1166, %v1124
    %v1342 = vpack.c.bf16 %v1250, %v1208
    %v1343 = vpack.c.bf16 %v1334, %v1292
    %v1344 = vld [vmem:[#allocation7] sm:$0xff]
    %1346 = vst [vmem:[#allocation1] ss:$9 sm:$0xff] %v1344
    %v1347 = vld [vmem:[#allocation1] sm:$0xff]
    %v1348 = vld [vmem:[#allocation1 + $0x9] sm:$0xff]
    %v1349 = vld [vmem:[#allocation1 + $0x12] sm:$0xff]
    %v1350 = vld [vmem:[#allocation1 + $0x1b] sm:$0xff]
    %v1351 = vld [vmem:[#allocation1 + $0x24] sm:$0xff]
    %v1352 = vld [vmem:[#allocation1 + $0x2d] sm:$0xff]
    %v1353 = vld [vmem:[#allocation1 + $0x36] sm:$0xff]
    %v1354 = vld [vmem:[#allocation1 + $0x3f] sm:$0xff]
    %v1355 = vpack.i.b16 %v1347, %v1347
    %v1357 = vperm.slane %v1355, 0
    %v1358 = vpack.i.b16 %v1348, %v1348
    %v1360 = vperm.slane %v1358, 0
    %v1361 = vpack.i.b16 %v1349, %v1349
    %v1363 = vperm.slane %v1361, 0
    %v1364 = vpack.i.b16 %v1350, %v1350
    %v1366 = vperm.slane %v1364, 0
    %v1367 = vpack.i.b16 %v1351, %v1351
    %v1369 = vperm.slane %v1367, 0
    %v1370 = vpack.i.b16 %v1352, %v1352
    %v1372 = vperm.slane %v1370, 0
    %v1373 = vpack.i.b16 %v1353, %v1353
    %v1375 = vperm.slane %v1373, 0
    %v1376 = vpack.i.b16 %v1354, %v1354
    %v1378 = vperm.slane %v1376, 0
    %v1379 = vunpack.c.l.bf16 %v1336
    %v1380 = vunpack.c.h.bf16 %v1336
    %v1381 = vunpack.c.l.bf16 %v1337
    %v1382 = vunpack.c.h.bf16 %v1337
    %v1383 = vunpack.c.l.bf16 %v1338
    %v1384 = vunpack.c.h.bf16 %v1338
    %v1385 = vunpack.c.l.bf16 %v1339
    %v1386 = vunpack.c.h.bf16 %v1339
    %v1387 = vunpack.c.l.bf16 %v1340
    %v1388 = vunpack.c.h.bf16 %v1340
    %v1389 = vunpack.c.l.bf16 %v1341
    %v1390 = vunpack.c.h.bf16 %v1341
    %v1391 = vunpack.c.l.bf16 %v1342
    %v1392 = vunpack.c.h.bf16 %v1342
    %v1393 = vunpack.c.l.bf16 %v1343
    %v1394 = vunpack.c.h.bf16 %v1343
    %v1395 = vunpack.c.l.bf16 %v1357
    %v1396 = vunpack.c.l.bf16 %v1360
    %v1397 = vunpack.c.l.bf16 %v1363
    %v1398 = vunpack.c.l.bf16 %v1366
    %v1399 = vunpack.c.l.bf16 %v1369
    %v1400 = vunpack.c.l.bf16 %v1372
    %v1401 = vunpack.c.l.bf16 %v1375
    %v1402 = vunpack.c.l.bf16 %v1378
    %v1403 = vadd.f32 %v1379, %v1395
    %v1404 = vadd.f32 %v1380, %v1396
    %v1405 = vadd.f32 %v1381, %v1397
    %v1406 = vadd.f32 %v1382, %v1398
    %v1407 = vadd.f32 %v1383, %v1399
    %v1408 = vadd.f32 %v1384, %v1400
    %v1409 = vadd.f32 %v1385, %v1401
    %v1410 = vadd.f32 %v1386, %v1402
    %v1411 = vadd.f32 %v1387, %v1395
    %v1412 = vadd.f32 %v1388, %v1396
    %v1413 = vadd.f32 %v1389, %v1397
    %v1414 = vadd.f32 %v1390, %v1398
    %v1415 = vadd.f32 %v1391, %v1399
    %v1416 = vadd.f32 %v1392, %v1400
    %v1417 = vadd.f32 %v1393, %v1401
    %v1418 = vadd.f32 %v1394, %v1402
    %v1419 = vpack.c.bf16 %v1404, %v1403
    %v1420 = vpack.c.bf16 %v1406, %v1405
    %v1421 = vpack.c.bf16 %v1408, %v1407
    %v1422 = vpack.c.bf16 %v1410, %v1409
    %v1423 = vpack.c.bf16 %v1412, %v1411
    %v1424 = vpack.c.bf16 %v1414, %v1413
    %v1425 = vpack.c.bf16 %v1416, %v1415
    %v1426 = vpack.c.bf16 %v1418, %v1417
    %v1427 = vunpack.c.l.bf16 %v1419
    %v1428 = vunpack.c.h.bf16 %v1419
    %v1429 = vunpack.c.l.bf16 %v1420
    %v1430 = vunpack.c.h.bf16 %v1420
    %v1431 = vunpack.c.l.bf16 %v1421
    %v1432 = vunpack.c.h.bf16 %v1421
    %v1433 = vunpack.c.l.bf16 %v1422
    %v1434 = vunpack.c.h.bf16 %v1422
    %v1435 = vunpack.c.l.bf16 %v1423
    %v1436 = vunpack.c.h.bf16 %v1423
    %v1437 = vunpack.c.l.bf16 %v1424
    %v1438 = vunpack.c.h.bf16 %v1424
    %v1439 = vunpack.c.l.bf16 %v1425
    %v1440 = vunpack.c.h.bf16 %v1425
    %v1441 = vunpack.c.l.bf16 %v1426
    %v1442 = vunpack.c.h.bf16 %v1426
    %v1443 = vmul.f32 %v1427, 0.20019531
    %v1444 = vmul.f32 %v1428, 0.20019531
    %v1445 = vmul.f32 %v1429, 0.20019531
    %v1446 = vmul.f32 %v1430, 0.20019531
    %v1447 = vmul.f32 %v1431, 0.20019531
    %v1448 = vmul.f32 %v1432, 0.20019531
    %v1449 = vmul.f32 %v1433, 0.20019531
    %v1450 = vmul.f32 %v1434, 0.20019531
    %v1451 = vmul.f32 %v1435, 0.20019531
    %v1452 = vmul.f32 %v1436, 0.20019531
    %v1453 = vmul.f32 %v1437, 0.20019531
    %v1454 = vmul.f32 %v1438, 0.20019531
    %v1455 = vmul.f32 %v1439, 0.20019531
    %v1456 = vmul.f32 %v1440, 0.20019531
    %v1457 = vmul.f32 %v1441, 0.20019531
    %v1458 = vmul.f32 %v1442, 0.20019531
    %v1459 = vpack.c.bf16 %v1444, %v1443
    %v1460 = vpack.c.bf16 %v1446, %v1445
    %v1461 = vpack.c.bf16 %v1448, %v1447
    %v1462 = vpack.c.bf16 %v1450, %v1449
    %v1463 = vpack.c.bf16 %v1452, %v1451
    %v1464 = vpack.c.bf16 %v1454, %v1453
    %v1465 = vpack.c.bf16 %v1456, %v1455
    %v1466 = vpack.c.bf16 %v1458, %v1457
    %v1467 = vunpack.c.l.bf16 %v1459
    %v1468 = vunpack.c.h.bf16 %v1459
    %v1469 = vunpack.c.l.bf16 %v1460
    %v1470 = vunpack.c.h.bf16 %v1460
    %v1471 = vunpack.c.l.bf16 %v1461
    %v1472 = vunpack.c.h.bf16 %v1461
    %v1473 = vunpack.c.l.bf16 %v1462
    %v1474 = vunpack.c.h.bf16 %v1462
    %v1475 = vunpack.c.l.bf16 %v1463
    %v1476 = vunpack.c.h.bf16 %v1463
    %v1477 = vunpack.c.l.bf16 %v1464
    %v1478 = vunpack.c.h.bf16 %v1464
    %v1479 = vunpack.c.l.bf16 %v1465
    %v1480 = vunpack.c.h.bf16 %v1465
    %v1481 = vunpack.c.l.bf16 %v1466
    %v1482 = vunpack.c.h.bf16 %v1466
    %v1483 = vmax.f32 %v1427, %v1467
    %v1484 = vmax.f32 %v1428, %v1468
    %v1485 = vmax.f32 %v1429, %v1469
    %v1486 = vmax.f32 %v1430, %v1470
    %v1487 = vmax.f32 %v1431, %v1471
    %v1488 = vmax.f32 %v1432, %v1472
    %v1489 = vmax.f32 %v1433, %v1473
    %v1490 = vmax.f32 %v1434, %v1474
    %v1491 = vmax.f32 %v1435, %v1475
    %v1492 = vmax.f32 %v1436, %v1476
    %v1493 = vmax.f32 %v1437, %v1477
    %v1494 = vmax.f32 %v1438, %v1478
    %v1495 = vmax.f32 %v1439, %v1479
    %v1496 = vmax.f32 %v1440, %v1480
    %v1497 = vmax.f32 %v1441, %v1481
    %v1498 = vmax.f32 %v1442, %v1482
    %v1499 = vpack.c.bf16 %v1491, %v1483
    %v1500 = vpack.c.bf16 %v1492, %v1484
    %v1501 = vpack.c.bf16 %v1493, %v1485
    %v1502 = vpack.c.bf16 %v1494, %v1486
    %v1503 = vpack.c.bf16 %v1495, %v1487
    %v1504 = vpack.c.bf16 %v1496, %v1488
    %v1505 = vpack.c.bf16 %v1497, %v1489
    %v1506 = vpack.c.bf16 %v1498, %v1490
    %v1507 = vld [vmem:[#allocation8] sm:$0xff]
    %v1508 = vld [vmem:[#allocation8 + $0x8] sm:$0xff]
    %v1509 = vld [vmem:[#allocation8 + $0x10] sm:$0xff]
    %v1510 = vld [vmem:[#allocation8 + $0x18] sm:$0xff]
    %v1511 = vld [vmem:[#allocation8 + $0x20] sm:$0xff]
    %v1512 = vld [vmem:[#allocation8 + $0x28] sm:$0xff]
    %v1513 = vld [vmem:[#allocation8 + $0x30] sm:$0xff]
    %v1514 = vld [vmem:[#allocation8 + $0x38] sm:$0xff]
    %v1515 = vld [vmem:[#allocation8 + $0x40] sm:$0xff]
    %v1516 = vld [vmem:[#allocation8 + $0x48] sm:$0xff]
    %v1517 = vld [vmem:[#allocation8 + $0x50] sm:$0xff]
    %v1518 = vld [vmem:[#allocation8 + $0x58] sm:$0xff]
    %v1519 = vld [vmem:[#allocation8 + $0x60] sm:$0xff]
    %v1520 = vld [vmem:[#allocation8 + $0x68] sm:$0xff]
    %v1521 = vld [vmem:[#allocation8 + $0x70] sm:$0xff]
    %v1522 = vld [vmem:[#allocation8 + $0x78] sm:$0xff]
    %v1523 = vld [vmem:[#allocation8 + $0x80] sm:$0xff]
    %v1524 = vld [vmem:[#allocation8 + $0x88] sm:$0xff]
    %v1525 = vld [vmem:[#allocation8 + $0x90] sm:$0xff]
    %v1526 = vld [vmem:[#allocation8 + $0x98] sm:$0xff]
    %v1527 = vld [vmem:[#allocation8 + $0xa0] sm:$0xff]
    %v1528 = vld [vmem:[#allocation8 + $0xa8] sm:$0xff]
    %v1529 = vld [vmem:[#allocation8 + $0xb0] sm:$0xff]
    %v1530 = vld [vmem:[#allocation8 + $0xb8] sm:$0xff]
    %v1531 = vld [vmem:[#allocation8 + $0xc0] sm:$0xff]
    %v1532 = vld [vmem:[#allocation8 + $0xc8] sm:$0xff]
    %v1533 = vld [vmem:[#allocation8 + $0xd0] sm:$0xff]
    %v1534 = vld [vmem:[#allocation8 + $0xd8] sm:$0xff]
    %v1535 = vld [vmem:[#allocation8 + $0xe0] sm:$0xff]
    %v1536 = vld [vmem:[#allocation8 + $0xe8] sm:$0xff]
    %v1537 = vld [vmem:[#allocation8 + $0xf0] sm:$0xff]
    %v1538 = vld [vmem:[#allocation8 + $0xf8] sm:$0xff]
    %v1539 = vld [vmem:[#allocation8 + $0x100] sm:$0xff]
    %v1540 = vld [vmem:[#allocation8 + $0x108] sm:$0xff]
    %v1541 = vld [vmem:[#allocation8 + $0x110] sm:$0xff]
    %v1542 = vld [vmem:[#allocation8 + $0x118] sm:$0xff]
    %v1543 = vld [vmem:[#allocation8 + $0x120] sm:$0xff]
    %v1544 = vld [vmem:[#allocation8 + $0x128] sm:$0xff]
    %v1545 = vld [vmem:[#allocation8 + $0x130] sm:$0xff]
    %v1546 = vld [vmem:[#allocation8 + $0x138] sm:$0xff]
    %v1547 = vld [vmem:[#allocation8 + $0x140] sm:$0xff]
    %v1548 = vld [vmem:[#allocation8 + $0x148] sm:$0xff]
    %v1549 = vld [vmem:[#allocation8 + $0x150] sm:$0xff]
    %v1550 = vld [vmem:[#allocation8 + $0x158] sm:$0xff]
    %v1551 = vld [vmem:[#allocation8 + $0x160] sm:$0xff]
    %v1552 = vld [vmem:[#allocation8 + $0x168] sm:$0xff]
    %v1553 = vld [vmem:[#allocation8 + $0x170] sm:$0xff]
    %v1554 = vld [vmem:[#allocation8 + $0x178] sm:$0xff]
    %v1555 = vld [vmem:[#allocation8 + $0x180] sm:$0xff]
    %v1556 = vld [vmem:[#allocation8 + $0x188] sm:$0xff]
    %v1557 = vld [vmem:[#allocation8 + $0x190] sm:$0xff]
    %v1558 = vld [vmem:[#allocation8 + $0x198] sm:$0xff]
    %v1559 = vld [vmem:[#allocation8 + $0x1a0] sm:$0xff]
    %v1560 = vld [vmem:[#allocation8 + $0x1a8] sm:$0xff]
    %v1561 = vld [vmem:[#allocation8 + $0x1b0] sm:$0xff]
    %v1562 = vld [vmem:[#allocation8 + $0x1b8] sm:$0xff]
    %v1563 = vld [vmem:[#allocation8 + $0x1c0] sm:$0xff]
    %v1564 = vld [vmem:[#allocation8 + $0x1c8] sm:$0xff]
    %v1565 = vld [vmem:[#allocation8 + $0x1d0] sm:$0xff]
    %v1566 = vld [vmem:[#allocation8 + $0x1d8] sm:$0xff]
    %v1567 = vld [vmem:[#allocation8 + $0x1e0] sm:$0xff]
    %v1568 = vld [vmem:[#allocation8 + $0x1e8] sm:$0xff]
    %v1569 = vld [vmem:[#allocation8 + $0x1f0] sm:$0xff]
    %v1570 = vld [vmem:[#allocation8 + $0x1f8] sm:$0xff]
    %v1571 = vld [vmem:[#allocation8 + $0x200] sm:$0xff]
    %v1572 = vld [vmem:[#allocation8 + $0x208] sm:$0xff]
    %v1573 = vld [vmem:[#allocation8 + $0x210] sm:$0xff]
    %v1574 = vld [vmem:[#allocation8 + $0x218] sm:$0xff]
    %v1575 = vld [vmem:[#allocation8 + $0x220] sm:$0xff]
    %v1576 = vld [vmem:[#allocation8 + $0x228] sm:$0xff]
    %v1577 = vld [vmem:[#allocation8 + $0x230] sm:$0xff]
    %v1578 = vld [vmem:[#allocation8 + $0x238] sm:$0xff]
    %v1579 = vld [vmem:[#allocation8 + $0x240] sm:$0xff]
    %v1580 = vld [vmem:[#allocation8 + $0x248] sm:$0xff]
    %v1581 = vld [vmem:[#allocation8 + $0x250] sm:$0xff]
    %v1582 = vld [vmem:[#allocation8 + $0x258] sm:$0xff]
    %v1583 = vld [vmem:[#allocation8 + $0x260] sm:$0xff]
    %v1584 = vld [vmem:[#allocation8 + $0x268] sm:$0xff]
    %v1585 = vld [vmem:[#allocation8 + $0x270] sm:$0xff]
    %v1586 = vld [vmem:[#allocation8 + $0x278] sm:$0xff]
    %v1587 = vld [vmem:[#allocation8 + $0x280] sm:$0xff]
    %v1588 = vld [vmem:[#allocation8 + $0x288] sm:$0xff]
    %v1589 = vld [vmem:[#allocation8 + $0x290] sm:$0xff]
    %v1590 = vld [vmem:[#allocation8 + $0x298] sm:$0xff]
    %v1591 = vld [vmem:[#allocation8 + $0x2a0] sm:$0xff]
    %v1592 = vld [vmem:[#allocation8 + $0x2a8] sm:$0xff]
    %v1593 = vld [vmem:[#allocation8 + $0x2b0] sm:$0xff]
    %v1594 = vld [vmem:[#allocation8 + $0x2b8] sm:$0xff]
    %v1595 = vld [vmem:[#allocation8 + $0x2c0] sm:$0xff]
    %v1596 = vld [vmem:[#allocation8 + $0x2c8] sm:$0xff]
    %v1597 = vld [vmem:[#allocation8 + $0x2d0] sm:$0xff]
    %v1598 = vld [vmem:[#allocation8 + $0x2d8] sm:$0xff]
    %v1599 = vld [vmem:[#allocation8 + $0x2e0] sm:$0xff]
    %v1600 = vld [vmem:[#allocation8 + $0x2e8] sm:$0xff]
    %v1601 = vld [vmem:[#allocation8 + $0x2f0] sm:$0xff]
    %v1602 = vld [vmem:[#allocation8 + $0x2f8] sm:$0xff]
    %v1603 = vld [vmem:[#allocation8 + $0x300] sm:$0xff]
    %v1604 = vld [vmem:[#allocation8 + $0x308] sm:$0xff]
    %v1605 = vld [vmem:[#allocation8 + $0x310] sm:$0xff]
    %v1606 = vld [vmem:[#allocation8 + $0x318] sm:$0xff]
    %v1607 = vld [vmem:[#allocation8 + $0x320] sm:$0xff]
    %v1608 = vld [vmem:[#allocation8 + $0x328] sm:$0xff]
    %v1609 = vld [vmem:[#allocation8 + $0x330] sm:$0xff]
    %v1610 = vld [vmem:[#allocation8 + $0x338] sm:$0xff]
    %v1611 = vld [vmem:[#allocation8 + $0x340] sm:$0xff]
    %v1612 = vld [vmem:[#allocation8 + $0x348] sm:$0xff]
    %v1613 = vld [vmem:[#allocation8 + $0x350] sm:$0xff]
    %v1614 = vld [vmem:[#allocation8 + $0x358] sm:$0xff]
    %v1615 = vld [vmem:[#allocation8 + $0x360] sm:$0xff]
    %v1616 = vld [vmem:[#allocation8 + $0x368] sm:$0xff]
    %v1617 = vld [vmem:[#allocation8 + $0x370] sm:$0xff]
    %v1618 = vld [vmem:[#allocation8 + $0x378] sm:$0xff]
    %v1619 = vld [vmem:[#allocation8 + $0x380] sm:$0xff]
    %v1620 = vld [vmem:[#allocation8 + $0x388] sm:$0xff]
    %v1621 = vld [vmem:[#allocation8 + $0x390] sm:$0xff]
    %v1622 = vld [vmem:[#allocation8 + $0x398] sm:$0xff]
    %v1623 = vld [vmem:[#allocation8 + $0x3a0] sm:$0xff]
    %v1624 = vld [vmem:[#allocation8 + $0x3a8] sm:$0xff]
    %v1625 = vld [vmem:[#allocation8 + $0x3b0] sm:$0xff]
    %v1626 = vld [vmem:[#allocation8 + $0x3b8] sm:$0xff]
    %v1627 = vld [vmem:[#allocation8 + $0x3c0] sm:$0xff]
    %v1628 = vld [vmem:[#allocation8 + $0x3c8] sm:$0xff]
    %v1629 = vld [vmem:[#allocation8 + $0x3d0] sm:$0xff]
    %v1630 = vld [vmem:[#allocation8 + $0x3d8] sm:$0xff]
    %v1631 = vld [vmem:[#allocation8 + $0x3e0] sm:$0xff]
    %v1632 = vld [vmem:[#allocation8 + $0x3e8] sm:$0xff]
    %v1633 = vld [vmem:[#allocation8 + $0x3f0] sm:$0xff]
    %v1634 = vld [vmem:[#allocation8 + $0x3f8] sm:$0xff]
    %v1635 = vld [vmem:[#allocation8 + $0x400] sm:$0xff]
    %v1636 = vld [vmem:[#allocation8 + $0x408] sm:$0xff]
    %v1637 = vld [vmem:[#allocation8 + $0x410] sm:$0xff]
    %v1638 = vld [vmem:[#allocation8 + $0x418] sm:$0xff]
    %v1639 = vld [vmem:[#allocation8 + $0x420] sm:$0xff]
    %v1640 = vld [vmem:[#allocation8 + $0x428] sm:$0xff]
    %v1641 = vld [vmem:[#allocation8 + $0x430] sm:$0xff]
    %v1642 = vld [vmem:[#allocation8 + $0x438] sm:$0xff]
    %v1643 = vld [vmem:[#allocation8 + $0x440] sm:$0xff]
    %v1644 = vld [vmem:[#allocation8 + $0x448] sm:$0xff]
    %v1645 = vld [vmem:[#allocation8 + $0x450] sm:$0xff]
    %v1646 = vld [vmem:[#allocation8 + $0x458] sm:$0xff]
    %v1647 = vld [vmem:[#allocation8 + $0x460] sm:$0xff]
    %v1648 = vld [vmem:[#allocation8 + $0x468] sm:$0xff]
    %v1649 = vld [vmem:[#allocation8 + $0x470] sm:$0xff]
    %v1650 = vld [vmem:[#allocation8 + $0x478] sm:$0xff]
    %v1651 = vld [vmem:[#allocation8 + $0x480] sm:$0xff]
    %v1652 = vld [vmem:[#allocation8 + $0x488] sm:$0xff]
    %v1653 = vld [vmem:[#allocation8 + $0x490] sm:$0xff]
    %v1654 = vld [vmem:[#allocation8 + $0x498] sm:$0xff]
    %v1655 = vld [vmem:[#allocation8 + $0x4a0] sm:$0xff]
    %v1656 = vld [vmem:[#allocation8 + $0x4a8] sm:$0xff]
    %v1657 = vld [vmem:[#allocation8 + $0x4b0] sm:$0xff]
    %v1658 = vld [vmem:[#allocation8 + $0x4b8] sm:$0xff]
    %v1659 = vld [vmem:[#allocation8 + $0x4c0] sm:$0xff]
    %v1660 = vld [vmem:[#allocation8 + $0x4c8] sm:$0xff]
    %v1661 = vld [vmem:[#allocation8 + $0x4d0] sm:$0xff]
    %v1662 = vld [vmem:[#allocation8 + $0x4d8] sm:$0xff]
    %v1663 = vld [vmem:[#allocation8 + $0x4e0] sm:$0xff]
    %v1664 = vld [vmem:[#allocation8 + $0x4e8] sm:$0xff]
    %v1665 = vld [vmem:[#allocation8 + $0x4f0] sm:$0xff]
    %v1666 = vld [vmem:[#allocation8 + $0x4f8] sm:$0xff]
    %v1667 = vld [vmem:[#allocation8 + $0x500] sm:$0xff]
    %v1668 = vld [vmem:[#allocation8 + $0x508] sm:$0xff]
    %v1669 = vld [vmem:[#allocation8 + $0x510] sm:$0xff]
    %v1670 = vld [vmem:[#allocation8 + $0x518] sm:$0xff]
    %v1671 = vld [vmem:[#allocation8 + $0x520] sm:$0xff]
    %v1672 = vld [vmem:[#allocation8 + $0x528] sm:$0xff]
    %v1673 = vld [vmem:[#allocation8 + $0x530] sm:$0xff]
    %v1674 = vld [vmem:[#allocation8 + $0x538] sm:$0xff]
    %v1675 = vld [vmem:[#allocation8 + $0x540] sm:$0xff]
    %v1676 = vld [vmem:[#allocation8 + $0x548] sm:$0xff]
    %v1677 = vld [vmem:[#allocation8 + $0x550] sm:$0xff]
    %v1678 = vld [vmem:[#allocation8 + $0x558] sm:$0xff]
    %v1679 = vld [vmem:[#allocation8 + $0x560] sm:$0xff]
    %v1680 = vld [vmem:[#allocation8 + $0x568] sm:$0xff]
    %v1681 = vld [vmem:[#allocation8 + $0x570] sm:$0xff]
    %v1682 = vld [vmem:[#allocation8 + $0x578] sm:$0xff]
    %v1683 = vld [vmem:[#allocation8 + $0x580] sm:$0xff]
    %v1684 = vld [vmem:[#allocation8 + $0x588] sm:$0xff]
    %v1685 = vld [vmem:[#allocation8 + $0x590] sm:$0xff]
    %v1686 = vld [vmem:[#allocation8 + $0x598] sm:$0xff]
    %v1687 = vld [vmem:[#allocation8 + $0x5a0] sm:$0xff]
    %v1688 = vld [vmem:[#allocation8 + $0x5a8] sm:$0xff]
    %v1689 = vld [vmem:[#allocation8 + $0x5b0] sm:$0xff]
    %v1690 = vld [vmem:[#allocation8 + $0x5b8] sm:$0xff]
    %v1691 = vld [vmem:[#allocation8 + $0x5c0] sm:$0xff]
    %v1692 = vld [vmem:[#allocation8 + $0x5c8] sm:$0xff]
    %v1693 = vld [vmem:[#allocation8 + $0x5d0] sm:$0xff]
    %v1694 = vld [vmem:[#allocation8 + $0x5d8] sm:$0xff]
    %v1695 = vld [vmem:[#allocation8 + $0x5e0] sm:$0xff]
    %v1696 = vld [vmem:[#allocation8 + $0x5e8] sm:$0xff]
    %v1697 = vld [vmem:[#allocation8 + $0x5f0] sm:$0xff]
    %v1698 = vld [vmem:[#allocation8 + $0x5f8] sm:$0xff]
    %v1699 = vld [vmem:[#allocation8 + $0x600] sm:$0xff]
    %v1700 = vld [vmem:[#allocation8 + $0x608] sm:$0xff]
    %v1701 = vld [vmem:[#allocation8 + $0x610] sm:$0xff]
    %v1702 = vld [vmem:[#allocation8 + $0x618] sm:$0xff]
    %v1703 = vld [vmem:[#allocation8 + $0x620] sm:$0xff]
    %v1704 = vld [vmem:[#allocation8 + $0x628] sm:$0xff]
    %v1705 = vld [vmem:[#allocation8 + $0x630] sm:$0xff]
    %v1706 = vld [vmem:[#allocation8 + $0x638] sm:$0xff]
    %v1707 = vld [vmem:[#allocation8 + $0x640] sm:$0xff]
    %v1708 = vld [vmem:[#allocation8 + $0x648] sm:$0xff]
    %v1709 = vld [vmem:[#allocation8 + $0x650] sm:$0xff]
    %v1710 = vld [vmem:[#allocation8 + $0x658] sm:$0xff]
    %v1711 = vld [vmem:[#allocation8 + $0x660] sm:$0xff]
    %v1712 = vld [vmem:[#allocation8 + $0x668] sm:$0xff]
    %v1713 = vld [vmem:[#allocation8 + $0x670] sm:$0xff]
    %v1714 = vld [vmem:[#allocation8 + $0x678] sm:$0xff]
    %v1715 = vld [vmem:[#allocation8 + $0x680] sm:$0xff]
    %v1716 = vld [vmem:[#allocation8 + $0x688] sm:$0xff]
    %v1717 = vld [vmem:[#allocation8 + $0x690] sm:$0xff]
    %v1718 = vld [vmem:[#allocation8 + $0x698] sm:$0xff]
    %v1719 = vld [vmem:[#allocation8 + $0x6a0] sm:$0xff]
    %v1720 = vld [vmem:[#allocation8 + $0x6a8] sm:$0xff]
    %v1721 = vld [vmem:[#allocation8 + $0x6b0] sm:$0xff]
    %v1722 = vld [vmem:[#allocation8 + $0x6b8] sm:$0xff]
    %v1723 = vld [vmem:[#allocation8 + $0x6c0] sm:$0xff]
    %v1724 = vld [vmem:[#allocation8 + $0x6c8] sm:$0xff]
    %v1725 = vld [vmem:[#allocation8 + $0x6d0] sm:$0xff]
    %v1726 = vld [vmem:[#allocation8 + $0x6d8] sm:$0xff]
    %v1727 = vld [vmem:[#allocation8 + $0x6e0] sm:$0xff]
    %v1728 = vld [vmem:[#allocation8 + $0x6e8] sm:$0xff]
    %v1729 = vld [vmem:[#allocation8 + $0x6f0] sm:$0xff]
    %v1730 = vld [vmem:[#allocation8 + $0x6f8] sm:$0xff]
    %v1731 = vld [vmem:[#allocation8 + $0x700] sm:$0xff]
    %v1732 = vld [vmem:[#allocation8 + $0x708] sm:$0xff]
    %v1733 = vld [vmem:[#allocation8 + $0x710] sm:$0xff]
    %v1734 = vld [vmem:[#allocation8 + $0x718] sm:$0xff]
    %v1735 = vld [vmem:[#allocation8 + $0x720] sm:$0xff]
    %v1736 = vld [vmem:[#allocation8 + $0x728] sm:$0xff]
    %v1737 = vld [vmem:[#allocation8 + $0x730] sm:$0xff]
    %v1738 = vld [vmem:[#allocation8 + $0x738] sm:$0xff]
    %v1739 = vld [vmem:[#allocation8 + $0x740] sm:$0xff]
    %v1740 = vld [vmem:[#allocation8 + $0x748] sm:$0xff]
    %v1741 = vld [vmem:[#allocation8 + $0x750] sm:$0xff]
    %v1742 = vld [vmem:[#allocation8 + $0x758] sm:$0xff]
    %v1743 = vld [vmem:[#allocation8 + $0x760] sm:$0xff]
    %v1744 = vld [vmem:[#allocation8 + $0x768] sm:$0xff]
    %v1745 = vld [vmem:[#allocation8 + $0x770] sm:$0xff]
    %v1746 = vld [vmem:[#allocation8 + $0x778] sm:$0xff]
    %v1747 = vld [vmem:[#allocation8 + $0x780] sm:$0xff]
    %v1748 = vld [vmem:[#allocation8 + $0x788] sm:$0xff]
    %v1749 = vld [vmem:[#allocation8 + $0x790] sm:$0xff]
    %v1750 = vld [vmem:[#allocation8 + $0x798] sm:$0xff]
    %v1751 = vld [vmem:[#allocation8 + $0x7a0] sm:$0xff]
    %v1752 = vld [vmem:[#allocation8 + $0x7a8] sm:$0xff]
    %v1753 = vld [vmem:[#allocation8 + $0x7b0] sm:$0xff]
    %v1754 = vld [vmem:[#allocation8 + $0x7b8] sm:$0xff]
    %v1755 = vld [vmem:[#allocation8 + $0x7c0] sm:$0xff]
    %v1756 = vld [vmem:[#allocation8 + $0x7c8] sm:$0xff]
    %v1757 = vld [vmem:[#allocation8 + $0x7d0] sm:$0xff]
    %v1758 = vld [vmem:[#allocation8 + $0x7d8] sm:$0xff]
    %v1759 = vld [vmem:[#allocation8 + $0x7e0] sm:$0xff]
    %v1760 = vld [vmem:[#allocation8 + $0x7e8] sm:$0xff]
    %v1761 = vld [vmem:[#allocation8 + $0x7f0] sm:$0xff]
    %v1762 = vld [vmem:[#allocation8 + $0x7f8] sm:$0xff]
    %v2019 = vunpack.c.l.b16 %v1507
    %v2020 = vunpack.c.h.b16 %v1507
    %v2021 = vunpack.c.l.b16 %v1508
    %v2022 = vunpack.c.h.b16 %v1508
    %v2023 = vunpack.c.l.b16 %v1509
    %v2024 = vunpack.c.h.b16 %v1509
    %v2025 = vunpack.c.l.b16 %v1510
    %v2026 = vunpack.c.h.b16 %v1510
    %v2027 = vunpack.c.l.b16 %v1511
    %v2028 = vunpack.c.h.b16 %v1511
    %v2029 = vunpack.c.l.b16 %v1512
    %v2030 = vunpack.c.h.b16 %v1512
    %v2031 = vunpack.c.l.b16 %v1513
    %v2032 = vunpack.c.h.b16 %v1513
    %v2033 = vunpack.c.l.b16 %v1514
    %v2034 = vunpack.c.h.b16 %v1514
    %v2035 = vunpack.c.l.b16 %v1515
    %v2036 = vunpack.c.h.b16 %v1515
    %v2037 = vunpack.c.l.b16 %v1516
    %v2038 = vunpack.c.h.b16 %v1516
    %v2039 = vunpack.c.l.b16 %v1517
    %v2040 = vunpack.c.h.b16 %v1517
    %v2041 = vunpack.c.l.b16 %v1518
    %v2042 = vunpack.c.h.b16 %v1518
    %v2043 = vunpack.c.l.b16 %v1519
    %v2044 = vunpack.c.h.b16 %v1519
    %v2045 = vunpack.c.l.b16 %v1520
    %v2046 = vunpack.c.h.b16 %v1520
    %v2047 = vunpack.c.l.b16 %v1521
    %v2048 = vunpack.c.h.b16 %v1521
    %v2049 = vunpack.c.l.b16 %v1522
    %v2050 = vunpack.c.h.b16 %v1522
    %v2051 = vunpack.c.l.b16 %v1523
    %v2052 = vunpack.c.h.b16 %v1523
    %v2053 = vunpack.c.l.b16 %v1524
    %v2054 = vunpack.c.h.b16 %v1524
    %v2055 = vunpack.c.l.b16 %v1525
    %v2056 = vunpack.c.h.b16 %v1525
    %v2057 = vunpack.c.l.b16 %v1526
    %v2058 = vunpack.c.h.b16 %v1526
    %v2059 = vunpack.c.l.b16 %v1527
    %v2060 = vunpack.c.h.b16 %v1527
    %v2061 = vunpack.c.l.b16 %v1528
    %v2062 = vunpack.c.h.b16 %v1528
    %v2063 = vunpack.c.l.b16 %v1529
    %v2064 = vunpack.c.h.b16 %v1529
    %v2065 = vunpack.c.l.b16 %v1530
    %v2066 = vunpack.c.h.b16 %v1530
    %v2067 = vunpack.c.l.b16 %v1531
    %v2068 = vunpack.c.h.b16 %v1531
    %v2069 = vunpack.c.l.b16 %v1532
    %v2070 = vunpack.c.h.b16 %v1532
    %v2071 = vunpack.c.l.b16 %v1533
    %v2072 = vunpack.c.h.b16 %v1533
    %v2073 = vunpack.c.l.b16 %v1534
    %v2074 = vunpack.c.h.b16 %v1534
    %v2075 = vunpack.c.l.b16 %v1535
    %v2076 = vunpack.c.h.b16 %v1535
    %v2077 = vunpack.c.l.b16 %v1536
    %v2078 = vunpack.c.h.b16 %v1536
    %v2079 = vunpack.c.l.b16 %v1537
    %v2080 = vunpack.c.h.b16 %v1537
    %v2081 = vunpack.c.l.b16 %v1538
    %v2082 = vunpack.c.h.b16 %v1538
    %v2083 = vunpack.c.l.b16 %v1539
    %v2084 = vunpack.c.h.b16 %v1539
    %v2085 = vunpack.c.l.b16 %v1540
    %v2086 = vunpack.c.h.b16 %v1540
    %v2087 = vunpack.c.l.b16 %v1541
    %v2088 = vunpack.c.h.b16 %v1541
    %v2089 = vunpack.c.l.b16 %v1542
    %v2090 = vunpack.c.h.b16 %v1542
    %v2091 = vunpack.c.l.b16 %v1543
    %v2092 = vunpack.c.h.b16 %v1543
    %v2093 = vunpack.c.l.b16 %v1544
    %v2094 = vunpack.c.h.b16 %v1544
    %v2095 = vunpack.c.l.b16 %v1545
    %v2096 = vunpack.c.h.b16 %v1545
    %v2097 = vunpack.c.l.b16 %v1546
    %v2098 = vunpack.c.h.b16 %v1546
    %v2099 = vunpack.c.l.b16 %v1547
    %v2100 = vunpack.c.h.b16 %v1547
    %v2101 = vunpack.c.l.b16 %v1548
    %v2102 = vunpack.c.h.b16 %v1548
    %v2103 = vunpack.c.l.b16 %v1549
    %v2104 = vunpack.c.h.b16 %v1549
    %v2105 = vunpack.c.l.b16 %v1550
    %v2106 = vunpack.c.h.b16 %v1550
    %v2107 = vunpack.c.l.b16 %v1551
    %v2108 = vunpack.c.h.b16 %v1551
    %v2109 = vunpack.c.l.b16 %v1552
    %v2110 = vunpack.c.h.b16 %v1552
    %v2111 = vunpack.c.l.b16 %v1553
    %v2112 = vunpack.c.h.b16 %v1553
    %v2113 = vunpack.c.l.b16 %v1554
    %v2114 = vunpack.c.h.b16 %v1554
    %v2115 = vunpack.c.l.b16 %v1555
    %v2116 = vunpack.c.h.b16 %v1555
    %v2117 = vunpack.c.l.b16 %v1556
    %v2118 = vunpack.c.h.b16 %v1556
    %v2119 = vunpack.c.l.b16 %v1557
    %v2120 = vunpack.c.h.b16 %v1557
    %v2121 = vunpack.c.l.b16 %v1558
    %v2122 = vunpack.c.h.b16 %v1558
    %v2123 = vunpack.c.l.b16 %v1559
    %v2124 = vunpack.c.h.b16 %v1559
    %v2125 = vunpack.c.l.b16 %v1560
    %v2126 = vunpack.c.h.b16 %v1560
    %v2127 = vunpack.c.l.b16 %v1561
    %v2128 = vunpack.c.h.b16 %v1561
    %v2129 = vunpack.c.l.b16 %v1562
    %v2130 = vunpack.c.h.b16 %v1562
    %v2131 = vunpack.c.l.b16 %v1563
    %v2132 = vunpack.c.h.b16 %v1563
    %v2133 = vunpack.c.l.b16 %v1564
    %v2134 = vunpack.c.h.b16 %v1564
    %v2135 = vunpack.c.l.b16 %v1565
    %v2136 = vunpack.c.h.b16 %v1565
    %v2137 = vunpack.c.l.b16 %v1566
    %v2138 = vunpack.c.h.b16 %v1566
    %v2139 = vunpack.c.l.b16 %v1567
    %v2140 = vunpack.c.h.b16 %v1567
    %v2141 = vunpack.c.l.b16 %v1568
    %v2142 = vunpack.c.h.b16 %v1568
    %v2143 = vunpack.c.l.b16 %v1569
    %v2144 = vunpack.c.h.b16 %v1569
    %v2145 = vunpack.c.l.b16 %v1570
    %v2146 = vunpack.c.h.b16 %v1570
    %v2147 = vunpack.c.l.b16 %v1571
    %v2148 = vunpack.c.h.b16 %v1571
    %v2149 = vunpack.c.l.b16 %v1572
    %v2150 = vunpack.c.h.b16 %v1572
    %v2151 = vunpack.c.l.b16 %v1573
    %v2152 = vunpack.c.h.b16 %v1573
    %v2153 = vunpack.c.l.b16 %v1574
    %v2154 = vunpack.c.h.b16 %v1574
    %v2155 = vunpack.c.l.b16 %v1575
    %v2156 = vunpack.c.h.b16 %v1575
    %v2157 = vunpack.c.l.b16 %v1576
    %v2158 = vunpack.c.h.b16 %v1576
    %v2159 = vunpack.c.l.b16 %v1577
    %v2160 = vunpack.c.h.b16 %v1577
    %v2161 = vunpack.c.l.b16 %v1578
    %v2162 = vunpack.c.h.b16 %v1578
    %v2163 = vunpack.c.l.b16 %v1579
    %v2164 = vunpack.c.h.b16 %v1579
    %v2165 = vunpack.c.l.b16 %v1580
    %v2166 = vunpack.c.h.b16 %v1580
    %v2167 = vunpack.c.l.b16 %v1581
    %v2168 = vunpack.c.h.b16 %v1581
    %v2169 = vunpack.c.l.b16 %v1582
    %v2170 = vunpack.c.h.b16 %v1582
    %v2171 = vunpack.c.l.b16 %v1583
    %v2172 = vunpack.c.h.b16 %v1583
    %v2173 = vunpack.c.l.b16 %v1584
    %v2174 = vunpack.c.h.b16 %v1584
    %v2175 = vunpack.c.l.b16 %v1585
    %v2176 = vunpack.c.h.b16 %v1585
    %v2177 = vunpack.c.l.b16 %v1586
    %v2178 = vunpack.c.h.b16 %v1586
    %v2179 = vunpack.c.l.b16 %v1587
    %v2180 = vunpack.c.h.b16 %v1587
    %v2181 = vunpack.c.l.b16 %v1588
    %v2182 = vunpack.c.h.b16 %v1588
    %v2183 = vunpack.c.l.b16 %v1589
    %v2184 = vunpack.c.h.b16 %v1589
    %v2185 = vunpack.c.l.b16 %v1590
    %v2186 = vunpack.c.h.b16 %v1590
    %v2187 = vunpack.c.l.b16 %v1591
    %v2188 = vunpack.c.h.b16 %v1591
    %v2189 = vunpack.c.l.b16 %v1592
    %v2190 = vunpack.c.h.b16 %v1592
    %v2191 = vunpack.c.l.b16 %v1593
    %v2192 = vunpack.c.h.b16 %v1593
    %v2193 = vunpack.c.l.b16 %v1594
    %v2194 = vunpack.c.h.b16 %v1594
    %v2195 = vunpack.c.l.b16 %v1595
    %v2196 = vunpack.c.h.b16 %v1595
    %v2197 = vunpack.c.l.b16 %v1596
    %v2198 = vunpack.c.h.b16 %v1596
    %v2199 = vunpack.c.l.b16 %v1597
    %v2200 = vunpack.c.h.b16 %v1597
    %v2201 = vunpack.c.l.b16 %v1598
    %v2202 = vunpack.c.h.b16 %v1598
    %v2203 = vunpack.c.l.b16 %v1599
    %v2204 = vunpack.c.h.b16 %v1599
    %v2205 = vunpack.c.l.b16 %v1600
    %v2206 = vunpack.c.h.b16 %v1600
    %v2207 = vunpack.c.l.b16 %v1601
    %v2208 = vunpack.c.h.b16 %v1601
    %v2209 = vunpack.c.l.b16 %v1602
    %v2210 = vunpack.c.h.b16 %v1602
    %v2211 = vunpack.c.l.b16 %v1603
    %v2212 = vunpack.c.h.b16 %v1603
    %v2213 = vunpack.c.l.b16 %v1604
    %v2214 = vunpack.c.h.b16 %v1604
    %v2215 = vunpack.c.l.b16 %v1605
    %v2216 = vunpack.c.h.b16 %v1605
    %v2217 = vunpack.c.l.b16 %v1606
    %v2218 = vunpack.c.h.b16 %v1606
    %v2219 = vunpack.c.l.b16 %v1607
    %v2220 = vunpack.c.h.b16 %v1607
    %v2221 = vunpack.c.l.b16 %v1608
    %v2222 = vunpack.c.h.b16 %v1608
    %v2223 = vunpack.c.l.b16 %v1609
    %v2224 = vunpack.c.h.b16 %v1609
    %v2225 = vunpack.c.l.b16 %v1610
    %v2226 = vunpack.c.h.b16 %v1610
    %v2227 = vunpack.c.l.b16 %v1611
    %v2228 = vunpack.c.h.b16 %v1611
    %v2229 = vunpack.c.l.b16 %v1612
    %v2230 = vunpack.c.h.b16 %v1612
    %v2231 = vunpack.c.l.b16 %v1613
    %v2232 = vunpack.c.h.b16 %v1613
    %v2233 = vunpack.c.l.b16 %v1614
    %v2234 = vunpack.c.h.b16 %v1614
    %v2235 = vunpack.c.l.b16 %v1615
    %v2236 = vunpack.c.h.b16 %v1615
    %v2237 = vunpack.c.l.b16 %v1616
    %v2238 = vunpack.c.h.b16 %v1616
    %v2239 = vunpack.c.l.b16 %v1617
    %v2240 = vunpack.c.h.b16 %v1617
    %v2241 = vunpack.c.l.b16 %v1618
    %v2242 = vunpack.c.h.b16 %v1618
    %v2243 = vunpack.c.l.b16 %v1619
    %v2244 = vunpack.c.h.b16 %v1619
    %v2245 = vunpack.c.l.b16 %v1620
    %v2246 = vunpack.c.h.b16 %v1620
    %v2247 = vunpack.c.l.b16 %v1621
    %v2248 = vunpack.c.h.b16 %v1621
    %v2249 = vunpack.c.l.b16 %v1622
    %v2250 = vunpack.c.h.b16 %v1622
    %v2251 = vunpack.c.l.b16 %v1623
    %v2252 = vunpack.c.h.b16 %v1623
    %v2253 = vunpack.c.l.b16 %v1624
    %v2254 = vunpack.c.h.b16 %v1624
    %v2255 = vunpack.c.l.b16 %v1625
    %v2256 = vunpack.c.h.b16 %v1625
    %v2257 = vunpack.c.l.b16 %v1626
    %v2258 = vunpack.c.h.b16 %v1626
    %v2259 = vunpack.c.l.b16 %v1627
    %v2260 = vunpack.c.h.b16 %v1627
    %v2261 = vunpack.c.l.b16 %v1628
    %v2262 = vunpack.c.h.b16 %v1628
    %v2263 = vunpack.c.l.b16 %v1629
    %v2264 = vunpack.c.h.b16 %v1629
    %v2265 = vunpack.c.l.b16 %v1630
    %v2266 = vunpack.c.h.b16 %v1630
    %v2267 = vunpack.c.l.b16 %v1631
    %v2268 = vunpack.c.h.b16 %v1631
    %v2269 = vunpack.c.l.b16 %v1632
    %v2270 = vunpack.c.h.b16 %v1632
    %v2271 = vunpack.c.l.b16 %v1633
    %v2272 = vunpack.c.h.b16 %v1633
    %v2273 = vunpack.c.l.b16 %v1634
    %v2274 = vunpack.c.h.b16 %v1634
    %v2275 = vunpack.c.l.b16 %v1635
    %v2276 = vunpack.c.h.b16 %v1635
    %v2277 = vunpack.c.l.b16 %v1636
    %v2278 = vunpack.c.h.b16 %v1636
    %v2279 = vunpack.c.l.b16 %v1637
    %v2280 = vunpack.c.h.b16 %v1637
    %v2281 = vunpack.c.l.b16 %v1638
    %v2282 = vunpack.c.h.b16 %v1638
    %v2283 = vunpack.c.l.b16 %v1639
    %v2284 = vunpack.c.h.b16 %v1639
    %v2285 = vunpack.c.l.b16 %v1640
    %v2286 = vunpack.c.h.b16 %v1640
    %v2287 = vunpack.c.l.b16 %v1641
    %v2288 = vunpack.c.h.b16 %v1641
    %v2289 = vunpack.c.l.b16 %v1642
    %v2290 = vunpack.c.h.b16 %v1642
    %v2291 = vunpack.c.l.b16 %v1643
    %v2292 = vunpack.c.h.b16 %v1643
    %v2293 = vunpack.c.l.b16 %v1644
    %v2294 = vunpack.c.h.b16 %v1644
    %v2295 = vunpack.c.l.b16 %v1645
    %v2296 = vunpack.c.h.b16 %v1645
    %v2297 = vunpack.c.l.b16 %v1646
    %v2298 = vunpack.c.h.b16 %v1646
    %v2299 = vunpack.c.l.b16 %v1647
    %v2300 = vunpack.c.h.b16 %v1647
    %v2301 = vunpack.c.l.b16 %v1648
    %v2302 = vunpack.c.h.b16 %v1648
    %v2303 = vunpack.c.l.b16 %v1649
    %v2304 = vunpack.c.h.b16 %v1649
    %v2305 = vunpack.c.l.b16 %v1650
    %v2306 = vunpack.c.h.b16 %v1650
    %v2307 = vunpack.c.l.b16 %v1651
    %v2308 = vunpack.c.h.b16 %v1651
    %v2309 = vunpack.c.l.b16 %v1652
    %v2310 = vunpack.c.h.b16 %v1652
    %v2311 = vunpack.c.l.b16 %v1653
    %v2312 = vunpack.c.h.b16 %v1653
    %v2313 = vunpack.c.l.b16 %v1654
    %v2314 = vunpack.c.h.b16 %v1654
    %v2315 = vunpack.c.l.b16 %v1655
    %v2316 = vunpack.c.h.b16 %v1655
    %v2317 = vunpack.c.l.b16 %v1656
    %v2318 = vunpack.c.h.b16 %v1656
    %v2319 = vunpack.c.l.b16 %v1657
    %v2320 = vunpack.c.h.b16 %v1657
    %v2321 = vunpack.c.l.b16 %v1658
    %v2322 = vunpack.c.h.b16 %v1658
    %v2323 = vunpack.c.l.b16 %v1659
    %v2324 = vunpack.c.h.b16 %v1659
    %v2325 = vunpack.c.l.b16 %v1660
    %v2326 = vunpack.c.h.b16 %v1660
    %v2327 = vunpack.c.l.b16 %v1661
    %v2328 = vunpack.c.h.b16 %v1661
    %v2329 = vunpack.c.l.b16 %v1662
    %v2330 = vunpack.c.h.b16 %v1662
    %v2331 = vunpack.c.l.b16 %v1663
    %v2332 = vunpack.c.h.b16 %v1663
    %v2333 = vunpack.c.l.b16 %v1664
    %v2334 = vunpack.c.h.b16 %v1664
    %v2335 = vunpack.c.l.b16 %v1665
    %v2336 = vunpack.c.h.b16 %v1665
    %v2337 = vunpack.c.l.b16 %v1666
    %v2338 = vunpack.c.h.b16 %v1666
    %v2339 = vunpack.c.l.b16 %v1667
    %v2340 = vunpack.c.h.b16 %v1667
    %v2341 = vunpack.c.l.b16 %v1668
    %v2342 = vunpack.c.h.b16 %v1668
    %v2343 = vunpack.c.l.b16 %v1669
    %v2344 = vunpack.c.h.b16 %v1669
    %v2345 = vunpack.c.l.b16 %v1670
    %v2346 = vunpack.c.h.b16 %v1670
    %v2347 = vunpack.c.l.b16 %v1671
    %v2348 = vunpack.c.h.b16 %v1671
    %v2349 = vunpack.c.l.b16 %v1672
    %v2350 = vunpack.c.h.b16 %v1672
    %v2351 = vunpack.c.l.b16 %v1673
    %v2352 = vunpack.c.h.b16 %v1673
    %v2353 = vunpack.c.l.b16 %v1674
    %v2354 = vunpack.c.h.b16 %v1674
    %v2355 = vunpack.c.l.b16 %v1675
    %v2356 = vunpack.c.h.b16 %v1675
    %v2357 = vunpack.c.l.b16 %v1676
    %v2358 = vunpack.c.h.b16 %v1676
    %v2359 = vunpack.c.l.b16 %v1677
    %v2360 = vunpack.c.h.b16 %v1677
    %v2361 = vunpack.c.l.b16 %v1678
    %v2362 = vunpack.c.h.b16 %v1678
    %v2363 = vunpack.c.l.b16 %v1679
    %v2364 = vunpack.c.h.b16 %v1679
    %v2365 = vunpack.c.l.b16 %v1680
    %v2366 = vunpack.c.h.b16 %v1680
    %v2367 = vunpack.c.l.b16 %v1681
    %v2368 = vunpack.c.h.b16 %v1681
    %v2369 = vunpack.c.l.b16 %v1682
    %v2370 = vunpack.c.h.b16 %v1682
    %v2371 = vunpack.c.l.b16 %v1683
    %v2372 = vunpack.c.h.b16 %v1683
    %v2373 = vunpack.c.l.b16 %v1684
    %v2374 = vunpack.c.h.b16 %v1684
    %v2375 = vunpack.c.l.b16 %v1685
    %v2376 = vunpack.c.h.b16 %v1685
    %v2377 = vunpack.c.l.b16 %v1686
    %v2378 = vunpack.c.h.b16 %v1686
    %v2379 = vunpack.c.l.b16 %v1687
    %v2380 = vunpack.c.h.b16 %v1687
    %v2381 = vunpack.c.l.b16 %v1688
    %v2382 = vunpack.c.h.b16 %v1688
    %v2383 = vunpack.c.l.b16 %v1689
    %v2384 = vunpack.c.h.b16 %v1689
    %v2385 = vunpack.c.l.b16 %v1690
    %v2386 = vunpack.c.h.b16 %v1690
    %v2387 = vunpack.c.l.b16 %v1691
    %v2388 = vunpack.c.h.b16 %v1691
    %v2389 = vunpack.c.l.b16 %v1692
    %v2390 = vunpack.c.h.b16 %v1692
    %v2391 = vunpack.c.l.b16 %v1693
    %v2392 = vunpack.c.h.b16 %v1693
    %v2393 = vunpack.c.l.b16 %v1694
    %v2394 = vunpack.c.h.b16 %v1694
    %v2395 = vunpack.c.l.b16 %v1695
    %v2396 = vunpack.c.h.b16 %v1695
    %v2397 = vunpack.c.l.b16 %v1696
    %v2398 = vunpack.c.h.b16 %v1696
    %v2399 = vunpack.c.l.b16 %v1697
    %v2400 = vunpack.c.h.b16 %v1697
    %v2401 = vunpack.c.l.b16 %v1698
    %v2402 = vunpack.c.h.b16 %v1698
    %v2403 = vunpack.c.l.b16 %v1699
    %v2404 = vunpack.c.h.b16 %v1699
    %v2405 = vunpack.c.l.b16 %v1700
    %v2406 = vunpack.c.h.b16 %v1700
    %v2407 = vunpack.c.l.b16 %v1701
    %v2408 = vunpack.c.h.b16 %v1701
    %v2409 = vunpack.c.l.b16 %v1702
    %v2410 = vunpack.c.h.b16 %v1702
    %v2411 = vunpack.c.l.b16 %v1703
    %v2412 = vunpack.c.h.b16 %v1703
    %v2413 = vunpack.c.l.b16 %v1704
    %v2414 = vunpack.c.h.b16 %v1704
    %v2415 = vunpack.c.l.b16 %v1705
    %v2416 = vunpack.c.h.b16 %v1705
    %v2417 = vunpack.c.l.b16 %v1706
    %v2418 = vunpack.c.h.b16 %v1706
    %v2419 = vunpack.c.l.b16 %v1707
    %v2420 = vunpack.c.h.b16 %v1707
    %v2421 = vunpack.c.l.b16 %v1708
    %v2422 = vunpack.c.h.b16 %v1708
    %v2423 = vunpack.c.l.b16 %v1709
    %v2424 = vunpack.c.h.b16 %v1709
    %v2425 = vunpack.c.l.b16 %v1710
    %v2426 = vunpack.c.h.b16 %v1710
    %v2427 = vunpack.c.l.b16 %v1711
    %v2428 = vunpack.c.h.b16 %v1711
    %v2429 = vunpack.c.l.b16 %v1712
    %v2430 = vunpack.c.h.b16 %v1712
    %v2431 = vunpack.c.l.b16 %v1713
    %v2432 = vunpack.c.h.b16 %v1713
    %v2433 = vunpack.c.l.b16 %v1714
    %v2434 = vunpack.c.h.b16 %v1714
    %v2435 = vunpack.c.l.b16 %v1715
    %v2436 = vunpack.c.h.b16 %v1715
    %v2437 = vunpack.c.l.b16 %v1716
    %v2438 = vunpack.c.h.b16 %v1716
    %v2439 = vunpack.c.l.b16 %v1717
    %v2440 = vunpack.c.h.b16 %v1717
    %v2441 = vunpack.c.l.b16 %v1718
    %v2442 = vunpack.c.h.b16 %v1718
    %v2443 = vunpack.c.l.b16 %v1719
    %v2444 = vunpack.c.h.b16 %v1719
    %v2445 = vunpack.c.l.b16 %v1720
    %v2446 = vunpack.c.h.b16 %v1720
    %v2447 = vunpack.c.l.b16 %v1721
    %v2448 = vunpack.c.h.b16 %v1721
    %v2449 = vunpack.c.l.b16 %v1722
    %v2450 = vunpack.c.h.b16 %v1722
    %v2451 = vunpack.c.l.b16 %v1723
    %v2452 = vunpack.c.h.b16 %v1723
    %v2453 = vunpack.c.l.b16 %v1724
    %v2454 = vunpack.c.h.b16 %v1724
    %v2455 = vunpack.c.l.b16 %v1725
    %v2456 = vunpack.c.h.b16 %v1725
    %v2457 = vunpack.c.l.b16 %v1726
    %v2458 = vunpack.c.h.b16 %v1726
    %v2459 = vunpack.c.l.b16 %v1727
    %v2460 = vunpack.c.h.b16 %v1727
    %v2461 = vunpack.c.l.b16 %v1728
    %v2462 = vunpack.c.h.b16 %v1728
    %v2463 = vunpack.c.l.b16 %v1729
    %v2464 = vunpack.c.h.b16 %v1729
    %v2465 = vunpack.c.l.b16 %v1730
    %v2466 = vunpack.c.h.b16 %v1730
    %v2467 = vunpack.c.l.b16 %v1731
    %v2468 = vunpack.c.h.b16 %v1731
    %v2469 = vunpack.c.l.b16 %v1732
    %v2470 = vunpack.c.h.b16 %v1732
    %v2471 = vunpack.c.l.b16 %v1733
    %v2472 = vunpack.c.h.b16 %v1733
    %v2473 = vunpack.c.l.b16 %v1734
    %v2474 = vunpack.c.h.b16 %v1734
    %v2475 = vunpack.c.l.b16 %v1735
    %v2476 = vunpack.c.h.b16 %v1735
    %v2477 = vunpack.c.l.b16 %v1736
    %v2478 = vunpack.c.h.b16 %v1736
    %v2479 = vunpack.c.l.b16 %v1737
    %v2480 = vunpack.c.h.b16 %v1737
    %v2481 = vunpack.c.l.b16 %v1738
    %v2482 = vunpack.c.h.b16 %v1738
    %v2483 = vunpack.c.l.b16 %v1739
    %v2484 = vunpack.c.h.b16 %v1739
    %v2485 = vunpack.c.l.b16 %v1740
    %v2486 = vunpack.c.h.b16 %v1740
    %v2487 = vunpack.c.l.b16 %v1741
    %v2488 = vunpack.c.h.b16 %v1741
    %v2489 = vunpack.c.l.b16 %v1742
    %v2490 = vunpack.c.h.b16 %v1742
    %v2491 = vunpack.c.l.b16 %v1743
    %v2492 = vunpack.c.h.b16 %v1743
    %v2493 = vunpack.c.l.b16 %v1744
    %v2494 = vunpack.c.h.b16 %v1744
    %v2495 = vunpack.c.l.b16 %v1745
    %v2496 = vunpack.c.h.b16 %v1745
    %v2497 = vunpack.c.l.b16 %v1746
    %v2498 = vunpack.c.h.b16 %v1746
    %v2499 = vunpack.c.l.b16 %v1747
    %v2500 = vunpack.c.h.b16 %v1747
    %v2501 = vunpack.c.l.b16 %v1748
    %v2502 = vunpack.c.h.b16 %v1748
    %v2503 = vunpack.c.l.b16 %v1749
    %v2504 = vunpack.c.h.b16 %v1749
    %v2505 = vunpack.c.l.b16 %v1750
    %v2506 = vunpack.c.h.b16 %v1750
    %v2507 = vunpack.c.l.b16 %v1751
    %v2508 = vunpack.c.h.b16 %v1751
    %v2509 = vunpack.c.l.b16 %v1752
    %v2510 = vunpack.c.h.b16 %v1752
    %v2511 = vunpack.c.l.b16 %v1753
    %v2512 = vunpack.c.h.b16 %v1753
    %v2513 = vunpack.c.l.b16 %v1754
    %v2514 = vunpack.c.h.b16 %v1754
    %v2515 = vunpack.c.l.b16 %v1755
    %v2516 = vunpack.c.h.b16 %v1755
    %v2517 = vunpack.c.l.b16 %v1756
    %v2518 = vunpack.c.h.b16 %v1756
    %v2519 = vunpack.c.l.b16 %v1757
    %v2520 = vunpack.c.h.b16 %v1757
    %v2521 = vunpack.c.l.b16 %v1758
    %v2522 = vunpack.c.h.b16 %v1758
    %v2523 = vunpack.c.l.b16 %v1759
    %v2524 = vunpack.c.h.b16 %v1759
    %v2525 = vunpack.c.l.b16 %v1760
    %v2526 = vunpack.c.h.b16 %v1760
    %v2527 = vunpack.c.l.b16 %v1761
    %v2528 = vunpack.c.h.b16 %v1761
    %v2529 = vunpack.c.l.b16 %v1762
    %v2530 = vunpack.c.h.b16 %v1762
    %v2531 = vpack.c.b16 %v2023, %v2019
    %v2532 = vpack.c.b16 %v2024, %v2020
    %v2533 = vpack.c.b16 %v2025, %v2021
    %v2534 = vpack.c.b16 %v2026, %v2022
    %v2535 = vpack.c.b16 %v2031, %v2027
    %v2536 = vpack.c.b16 %v2032, %v2028
    %v2537 = vpack.c.b16 %v2033, %v2029
    %v2538 = vpack.c.b16 %v2034, %v2030
    %v2539 = vpack.c.b16 %v2039, %v2035
    %v2540 = vpack.c.b16 %v2040, %v2036
    %v2541 = vpack.c.b16 %v2041, %v2037
    %v2542 = vpack.c.b16 %v2042, %v2038
    %v2543 = vpack.c.b16 %v2047, %v2043
    %v2544 = vpack.c.b16 %v2048, %v2044
    %v2545 = vpack.c.b16 %v2049, %v2045
    %v2546 = vpack.c.b16 %v2050, %v2046
    %v2547 = vpack.c.b16 %v2055, %v2051
    %v2548 = vpack.c.b16 %v2056, %v2052
    %v2549 = vpack.c.b16 %v2057, %v2053
    %v2550 = vpack.c.b16 %v2058, %v2054
    %v2551 = vpack.c.b16 %v2063, %v2059
    %v2552 = vpack.c.b16 %v2064, %v2060
    %v2553 = vpack.c.b16 %v2065, %v2061
    %v2554 = vpack.c.b16 %v2066, %v2062
    %v2555 = vpack.c.b16 %v2071, %v2067
    %v2556 = vpack.c.b16 %v2072, %v2068
    %v2557 = vpack.c.b16 %v2073, %v2069
    %v2558 = vpack.c.b16 %v2074, %v2070
    %v2559 = vpack.c.b16 %v2079, %v2075
    %v2560 = vpack.c.b16 %v2080, %v2076
    %v2561 = vpack.c.b16 %v2081, %v2077
    %v2562 = vpack.c.b16 %v2082, %v2078
    %v2563 = vpack.c.b16 %v2087, %v2083
    %v2564 = vpack.c.b16 %v2088, %v2084
    %v2565 = vpack.c.b16 %v2089, %v2085
    %v2566 = vpack.c.b16 %v2090, %v2086
    %v2567 = vpack.c.b16 %v2095, %v2091
    %v2568 = vpack.c.b16 %v2096, %v2092
    %v2569 = vpack.c.b16 %v2097, %v2093
    %v2570 = vpack.c.b16 %v2098, %v2094
    %v2571 = vpack.c.b16 %v2103, %v2099
    %v2572 = vpack.c.b16 %v2104, %v2100
    %v2573 = vpack.c.b16 %v2105, %v2101
    %v2574 = vpack.c.b16 %v2106, %v2102
    %v2575 = vpack.c.b16 %v2111, %v2107
    %v2576 = vpack.c.b16 %v2112, %v2108
    %v2577 = vpack.c.b16 %v2113, %v2109
    %v2578 = vpack.c.b16 %v2114, %v2110
    %v2579 = vpack.c.b16 %v2119, %v2115
    %v2580 = vpack.c.b16 %v2120, %v2116
    %v2581 = vpack.c.b16 %v2121, %v2117
    %v2582 = vpack.c.b16 %v2122, %v2118
    %v2583 = vpack.c.b16 %v2127, %v2123
    %v2584 = vpack.c.b16 %v2128, %v2124
    %v2585 = vpack.c.b16 %v2129, %v2125
    %v2586 = vpack.c.b16 %v2130, %v2126
    %v2587 = vpack.c.b16 %v2135, %v2131
    %v2588 = vpack.c.b16 %v2136, %v2132
    %v2589 = vpack.c.b16 %v2137, %v2133
    %v2590 = vpack.c.b16 %v2138, %v2134
    %v2591 = vpack.c.b16 %v2143, %v2139
    %v2592 = vpack.c.b16 %v2144, %v2140
    %v2593 = vpack.c.b16 %v2145, %v2141
    %v2594 = vpack.c.b16 %v2146, %v2142
    %v2595 = vpack.c.b16 %v2151, %v2147
    %v2596 = vpack.c.b16 %v2152, %v2148
    %v2597 = vpack.c.b16 %v2153, %v2149
    %v2598 = vpack.c.b16 %v2154, %v2150
    %v2599 = vpack.c.b16 %v2159, %v2155
    %v2600 = vpack.c.b16 %v2160, %v2156
    %v2601 = vpack.c.b16 %v2161, %v2157
    %v2602 = vpack.c.b16 %v2162, %v2158
    %v2603 = vpack.c.b16 %v2167, %v2163
    %v2604 = vpack.c.b16 %v2168, %v2164
    %v2605 = vpack.c.b16 %v2169, %v2165
    %v2606 = vpack.c.b16 %v2170, %v2166
    %v2607 = vpack.c.b16 %v2175, %v2171
    %v2608 = vpack.c.b16 %v2176, %v2172
    %v2609 = vpack.c.b16 %v2177, %v2173
    %v2610 = vpack.c.b16 %v2178, %v2174
    %v2611 = vpack.c.b16 %v2183, %v2179
    %v2612 = vpack.c.b16 %v2184, %v2180
    %v2613 = vpack.c.b16 %v2185, %v2181
    %v2614 = vpack.c.b16 %v2186, %v2182
    %v2615 = vpack.c.b16 %v2191, %v2187
    %v2616 = vpack.c.b16 %v2192, %v2188
    %v2617 = vpack.c.b16 %v2193, %v2189
    %v2618 = vpack.c.b16 %v2194, %v2190
    %v2619 = vpack.c.b16 %v2199, %v2195
    %v2620 = vpack.c.b16 %v2200, %v2196
    %v2621 = vpack.c.b16 %v2201, %v2197
    %v2622 = vpack.c.b16 %v2202, %v2198
    %v2623 = vpack.c.b16 %v2207, %v2203
    %v2624 = vpack.c.b16 %v2208, %v2204
    %v2625 = vpack.c.b16 %v2209, %v2205
    %v2626 = vpack.c.b16 %v2210, %v2206
    %v2627 = vpack.c.b16 %v2215, %v2211
    %v2628 = vpack.c.b16 %v2216, %v2212
    %v2629 = vpack.c.b16 %v2217, %v2213
    %v2630 = vpack.c.b16 %v2218, %v2214
    %v2631 = vpack.c.b16 %v2223, %v2219
    %v2632 = vpack.c.b16 %v2224, %v2220
    %v2633 = vpack.c.b16 %v2225, %v2221
    %v2634 = vpack.c.b16 %v2226, %v2222
    %v2635 = vpack.c.b16 %v2231, %v2227
    %v2636 = vpack.c.b16 %v2232, %v2228
    %v2637 = vpack.c.b16 %v2233, %v2229
    %v2638 = vpack.c.b16 %v2234, %v2230
    %v2639 = vpack.c.b16 %v2239, %v2235
    %v2640 = vpack.c.b16 %v2240, %v2236
    %v2641 = vpack.c.b16 %v2241, %v2237
    %v2642 = vpack.c.b16 %v2242, %v2238
    %v2643 = vpack.c.b16 %v2247, %v2243
    %v2644 = vpack.c.b16 %v2248, %v2244
    %v2645 = vpack.c.b16 %v2249, %v2245
    %v2646 = vpack.c.b16 %v2250, %v2246
    %v2647 = vpack.c.b16 %v2255, %v2251
    %v2648 = vpack.c.b16 %v2256, %v2252
    %v2649 = vpack.c.b16 %v2257, %v2253
    %v2650 = vpack.c.b16 %v2258, %v2254
    %v2651 = vpack.c.b16 %v2263, %v2259
    %v2652 = vpack.c.b16 %v2264, %v2260
    %v2653 = vpack.c.b16 %v2265, %v2261
    %v2654 = vpack.c.b16 %v2266, %v2262
    %v2655 = vpack.c.b16 %v2271, %v2267
    %v2656 = vpack.c.b16 %v2272, %v2268
    %v2657 = vpack.c.b16 %v2273, %v2269
    %v2658 = vpack.c.b16 %v2274, %v2270
    %v2659 = vpack.c.b16 %v2279, %v2275
    %v2660 = vpack.c.b16 %v2280, %v2276
    %v2661 = vpack.c.b16 %v2281, %v2277
    %v2662 = vpack.c.b16 %v2282, %v2278
    %v2663 = vpack.c.b16 %v2287, %v2283
    %v2664 = vpack.c.b16 %v2288, %v2284
    %v2665 = vpack.c.b16 %v2289, %v2285
    %v2666 = vpack.c.b16 %v2290, %v2286
    %v2667 = vpack.c.b16 %v2295, %v2291
    %v2668 = vpack.c.b16 %v2296, %v2292
    %v2669 = vpack.c.b16 %v2297, %v2293
    %v2670 = vpack.c.b16 %v2298, %v2294
    %v2671 = vpack.c.b16 %v2303, %v2299
    %v2672 = vpack.c.b16 %v2304, %v2300
    %v2673 = vpack.c.b16 %v2305, %v2301
    %v2674 = vpack.c.b16 %v2306, %v2302
    %v2675 = vpack.c.b16 %v2311, %v2307
    %v2676 = vpack.c.b16 %v2312, %v2308
    %v2677 = vpack.c.b16 %v2313, %v2309
    %v2678 = vpack.c.b16 %v2314, %v2310
    %v2679 = vpack.c.b16 %v2319, %v2315
    %v2680 = vpack.c.b16 %v2320, %v2316
    %v2681 = vpack.c.b16 %v2321, %v2317
    %v2682 = vpack.c.b16 %v2322, %v2318
    %v2683 = vpack.c.b16 %v2327, %v2323
    %v2684 = vpack.c.b16 %v2328, %v2324
    %v2685 = vpack.c.b16 %v2329, %v2325
    %v2686 = vpack.c.b16 %v2330, %v2326
    %v2687 = vpack.c.b16 %v2335, %v2331
    %v2688 = vpack.c.b16 %v2336, %v2332
    %v2689 = vpack.c.b16 %v2337, %v2333
    %v2690 = vpack.c.b16 %v2338, %v2334
    %v2691 = vpack.c.b16 %v2343, %v2339
    %v2692 = vpack.c.b16 %v2344, %v2340
    %v2693 = vpack.c.b16 %v2345, %v2341
    %v2694 = vpack.c.b16 %v2346, %v2342
    %v2695 = vpack.c.b16 %v2351, %v2347
    %v2696 = vpack.c.b16 %v2352, %v2348
    %v2697 = vpack.c.b16 %v2353, %v2349
    %v2698 = vpack.c.b16 %v2354, %v2350
    %v2699 = vpack.c.b16 %v2359, %v2355
    %v2700 = vpack.c.b16 %v2360, %v2356
    %v2701 = vpack.c.b16 %v2361, %v2357
    %v2702 = vpack.c.b16 %v2362, %v2358
    %v2703 = vpack.c.b16 %v2367, %v2363
    %v2704 = vpack.c.b16 %v2368, %v2364
    %v2705 = vpack.c.b16 %v2369, %v2365
    %v2706 = vpack.c.b16 %v2370, %v2366
    %v2707 = vpack.c.b16 %v2375, %v2371
    %v2708 = vpack.c.b16 %v2376, %v2372
    %v2709 = vpack.c.b16 %v2377, %v2373
    %v2710 = vpack.c.b16 %v2378, %v2374
    %v2711 = vpack.c.b16 %v2383, %v2379
    %v2712 = vpack.c.b16 %v2384, %v2380
    %v2713 = vpack.c.b16 %v2385, %v2381
    %v2714 = vpack.c.b16 %v2386, %v2382
    %v2715 = vpack.c.b16 %v2391, %v2387
    %v2716 = vpack.c.b16 %v2392, %v2388
    %v2717 = vpack.c.b16 %v2393, %v2389
    %v2718 = vpack.c.b16 %v2394, %v2390
    %v2719 = vpack.c.b16 %v2399, %v2395
    %v2720 = vpack.c.b16 %v2400, %v2396
    %v2721 = vpack.c.b16 %v2401, %v2397
    %v2722 = vpack.c.b16 %v2402, %v2398
    %v2723 = vpack.c.b16 %v2407, %v2403
    %v2724 = vpack.c.b16 %v2408, %v2404
    %v2725 = vpack.c.b16 %v2409, %v2405
    %v2726 = vpack.c.b16 %v2410, %v2406
    %v2727 = vpack.c.b16 %v2415, %v2411
    %v2728 = vpack.c.b16 %v2416, %v2412
    %v2729 = vpack.c.b16 %v2417, %v2413
    %v2730 = vpack.c.b16 %v2418, %v2414
    %v2731 = vpack.c.b16 %v2423, %v2419
    %v2732 = vpack.c.b16 %v2424, %v2420
    %v2733 = vpack.c.b16 %v2425, %v2421
    %v2734 = vpack.c.b16 %v2426, %v2422
    %v2735 = vpack.c.b16 %v2431, %v2427
    %v2736 = vpack.c.b16 %v2432, %v2428
    %v2737 = vpack.c.b16 %v2433, %v2429
    %v2738 = vpack.c.b16 %v2434, %v2430
    %v2739 = vpack.c.b16 %v2439, %v2435
    %v2740 = vpack.c.b16 %v2440, %v2436
    %v2741 = vpack.c.b16 %v2441, %v2437
    %v2742 = vpack.c.b16 %v2442, %v2438
    %v2743 = vpack.c.b16 %v2447, %v2443
    %v2744 = vpack.c.b16 %v2448, %v2444
    %v2745 = vpack.c.b16 %v2449, %v2445
    %v2746 = vpack.c.b16 %v2450, %v2446
    %v2747 = vpack.c.b16 %v2455, %v2451
    %v2748 = vpack.c.b16 %v2456, %v2452
    %v2749 = vpack.c.b16 %v2457, %v2453
    %v2750 = vpack.c.b16 %v2458, %v2454
    %v2751 = vpack.c.b16 %v2463, %v2459
    %v2752 = vpack.c.b16 %v2464, %v2460
    %v2753 = vpack.c.b16 %v2465, %v2461
    %v2754 = vpack.c.b16 %v2466, %v2462
    %v2755 = vpack.c.b16 %v2471, %v2467
    %v2756 = vpack.c.b16 %v2472, %v2468
    %v2757 = vpack.c.b16 %v2473, %v2469
    %v2758 = vpack.c.b16 %v2474, %v2470
    %v2759 = vpack.c.b16 %v2479, %v2475
    %v2760 = vpack.c.b16 %v2480, %v2476
    %v2761 = vpack.c.b16 %v2481, %v2477
    %v2762 = vpack.c.b16 %v2482, %v2478
    %v2763 = vpack.c.b16 %v2487, %v2483
    %v2764 = vpack.c.b16 %v2488, %v2484
    %v2765 = vpack.c.b16 %v2489, %v2485
    %v2766 = vpack.c.b16 %v2490, %v2486
    %v2767 = vpack.c.b16 %v2495, %v2491
    %v2768 = vpack.c.b16 %v2496, %v2492
    %v2769 = vpack.c.b16 %v2497, %v2493
    %v2770 = vpack.c.b16 %v2498, %v2494
    %v2771 = vpack.c.b16 %v2503, %v2499
    %v2772 = vpack.c.b16 %v2504, %v2500
    %v2773 = vpack.c.b16 %v2505, %v2501
    %v2774 = vpack.c.b16 %v2506, %v2502
    %v2775 = vpack.c.b16 %v2511, %v2507
    %v2776 = vpack.c.b16 %v2512, %v2508
    %v2777 = vpack.c.b16 %v2513, %v2509
    %v2778 = vpack.c.b16 %v2514, %v2510
    %v2779 = vpack.c.b16 %v2519, %v2515
    %v2780 = vpack.c.b16 %v2520, %v2516
    %v2781 = vpack.c.b16 %v2521, %v2517
    %v2782 = vpack.c.b16 %v2522, %v2518
    %v2783 = vpack.c.b16 %v2527, %v2523
    %v2784 = vpack.c.b16 %v2528, %v2524
    %v2785 = vpack.c.b16 %v2529, %v2525
    %v2786 = vpack.c.b16 %v2530, %v2526
    %3043 = vmatpush.bf16.msra.mxu0 %v2559
    %3044 = vmatpush.bf16.msra.mxu0 %v2555
    %3045 = vmatpush.bf16.msra.mxu0 %v2551
    %3046 = vmatpush.bf16.msra.mxu0 %v2547
    %3047 = vmatpush.bf16.msra.mxu0 %v2543
    %3048 = vmatpush.bf16.msra.mxu0 %v2539
    %3049 = vmatpush.bf16.msra.mxu0 %v2535
    %3050 = vmatpush.bf16.msra.mxu0 %v2531
    %3051 = vmatmul.bf16.gmra.mxu0 %v1499
    %v3052 = vpop.f32.mrf.mxu0
    %v3053 = vadd.f32 0.0, %v3052
    %v3054 = vpop.f32.mrf.mxu0
    %v3055 = vadd.f32 0.0, %v3054
    %3056 = vdwg.mxu0
    %3057 = vmatpush.bf16.msra.mxu0 %v2591
    %3058 = vmatpush.bf16.msra.mxu0 %v2587
    %3059 = vmatpush.bf16.msra.mxu0 %v2583
    %3060 = vmatpush.bf16.msra.mxu0 %v2579
    %3061 = vmatpush.bf16.msra.mxu0 %v2575
    %3062 = vmatpush.bf16.msra.mxu0 %v2571
    %3063 = vmatpush.bf16.msra.mxu0 %v2567
    %3064 = vmatpush.bf16.msra.mxu0 %v2563
    %3065 = vmatmul.bf16.gmra.mxu0 %v1500
    %v3066 = vpop.f32.mrf.mxu0
    %v3067 = vadd.f32 %v3053, %v3066
    %v3068 = vpop.f32.mrf.mxu0
    %v3069 = vadd.f32 %v3055, %v3068
    %3070 = vdwg.mxu0
    %3071 = vmatpush.bf16.msra.mxu0 %v2623
    %3072 = vmatpush.bf16.msra.mxu0 %v2619
    %3073 = vmatpush.bf16.msra.mxu0 %v2615
    %3074 = vmatpush.bf16.msra.mxu0 %v2611
    %3075 = vmatpush.bf16.msra.mxu0 %v2607
    %3076 = vmatpush.bf16.msra.mxu0 %v2603
    %3077 = vmatpush.bf16.msra.mxu0 %v2599
    %3078 = vmatpush.bf16.msra.mxu0 %v2595
    %3079 = vmatmul.bf16.gmra.mxu0 %v1501
    %v3080 = vpop.f32.mrf.mxu0
    %v3081 = vadd.f32 %v3067, %v3080
    %v3082 = vpop.f32.mrf.mxu0
    %v3083 = vadd.f32 %v3069, %v3082
    %3084 = vdwg.mxu0
    %3085 = vmatpush.bf16.msra.mxu0 %v2655
    %3086 = vmatpush.bf16.msra.mxu0 %v2651
    %3087 = vmatpush.bf16.msra.mxu0 %v2647
    %3088 = vmatpush.bf16.msra.mxu0 %v2643
    %3089 = vmatpush.bf16.msra.mxu0 %v2639
    %3090 = vmatpush.bf16.msra.mxu0 %v2635
    %3091 = vmatpush.bf16.msra.mxu0 %v2631
    %3092 = vmatpush.bf16.msra.mxu0 %v2627
    %3093 = vmatmul.bf16.gmra.mxu0 %v1502
    %v3094 = vpop.f32.mrf.mxu0
    %v3095 = vadd.f32 %v3081, %v3094
    %v3096 = vpop.f32.mrf.mxu0
    %v3097 = vadd.f32 %v3083, %v3096
    %3098 = vdwg.mxu0
    %3099 = vmatpush.bf16.msra.mxu0 %v2687
    %3100 = vmatpush.bf16.msra.mxu0 %v2683
    %3101 = vmatpush.bf16.msra.mxu0 %v2679
    %3102 = vmatpush.bf16.msra.mxu0 %v2675
    %3103 = vmatpush.bf16.msra.mxu0 %v2671
    %3104 = vmatpush.bf16.msra.mxu0 %v2667
    %3105 = vmatpush.bf16.msra.mxu0 %v2663
    %3106 = vmatpush.bf16.msra.mxu0 %v2659
    %3107 = vmatmul.bf16.gmra.mxu0 %v1503
    %v3108 = vpop.f32.mrf.mxu0
    %v3109 = vadd.f32 %v3095, %v3108
    %v3110 = vpop.f32.mrf.mxu0
    %v3111 = vadd.f32 %v3097, %v3110
    %3112 = vdwg.mxu0
    %3113 = vmatpush.bf16.msra.mxu0 %v2719
    %3114 = vmatpush.bf16.msra.mxu0 %v2715
    %3115 = vmatpush.bf16.msra.mxu0 %v2711
    %3116 = vmatpush.bf16.msra.mxu0 %v2707
    %3117 = vmatpush.bf16.msra.mxu0 %v2703
    %3118 = vmatpush.bf16.msra.mxu0 %v2699
    %3119 = vmatpush.bf16.msra.mxu0 %v2695
    %3120 = vmatpush.bf16.msra.mxu0 %v2691
    %3121 = vmatmul.bf16.gmra.mxu0 %v1504
    %v3122 = vpop.f32.mrf.mxu0
    %v3123 = vadd.f32 %v3109, %v3122
    %v3124 = vpop.f32.mrf.mxu0
    %v3125 = vadd.f32 %v3111, %v3124
    %3126 = vdwg.mxu0
    %3127 = vmatpush.bf16.msra.mxu0 %v2751
    %3128 = vmatpush.bf16.msra.mxu0 %v2747
    %3129 = vmatpush.bf16.msra.mxu0 %v2743
    %3130 = vmatpush.bf16.msra.mxu0 %v2739
    %3131 = vmatpush.bf16.msra.mxu0 %v2735
    %3132 = vmatpush.bf16.msra.mxu0 %v2731
    %3133 = vmatpush.bf16.msra.mxu0 %v2727
    %3134 = vmatpush.bf16.msra.mxu0 %v2723
    %3135 = vmatmul.bf16.gmra.mxu0 %v1505
    %v3136 = vpop.f32.mrf.mxu0
    %v3137 = vadd.f32 %v3123, %v3136
    %v3138 = vpop.f32.mrf.mxu0
    %v3139 = vadd.f32 %v3125, %v3138
    %3140 = vdwg.mxu0
    %3141 = vmatpush.bf16.msra.mxu0 %v2783
    %3142 = vmatpush.bf16.msra.mxu0 %v2779
    %3143 = vmatpush.bf16.msra.mxu0 %v2775
    %3144 = vmatpush.bf16.msra.mxu0 %v2771
    %3145 = vmatpush.bf16.msra.mxu0 %v2767
    %3146 = vmatpush.bf16.msra.mxu0 %v2763
    %3147 = vmatpush.bf16.msra.mxu0 %v2759
    %3148 = vmatpush.bf16.msra.mxu0 %v2755
    %3149 = vmatmul.bf16.gmra.mxu0 %v1506
    %v3150 = vpop.f32.mrf.mxu0
    %v3151 = vadd.f32 %v3137, %v3150
    %v3152 = vpop.f32.mrf.mxu0
    %v3153 = vadd.f32 %v3139, %v3152
    %3154 = vdwg.mxu0
    %3155 = vmatpush.bf16.msra.mxu0 %v2560
    %3156 = vmatpush.bf16.msra.mxu0 %v2556
    %3157 = vmatpush.bf16.msra.mxu0 %v2552
    %3158 = vmatpush.bf16.msra.mxu0 %v2548
    %3159 = vmatpush.bf16.msra.mxu0 %v2544
    %3160 = vmatpush.bf16.msra.mxu0 %v2540
    %3161 = vmatpush.bf16.msra.mxu0 %v2536
    %3162 = vmatpush.bf16.msra.mxu0 %v2532
    %3163 = vmatmul.bf16.gmra.mxu0 %v1499
    %v3164 = vpop.f32.mrf.mxu0
    %v3165 = vadd.f32 0.0, %v3164
    %v3166 = vpop.f32.mrf.mxu0
    %v3167 = vadd.f32 0.0, %v3166
    %3168 = vdwg.mxu0
    %3169 = vmatpush.bf16.msra.mxu0 %v2592
    %3170 = vmatpush.bf16.msra.mxu0 %v2588
    %3171 = vmatpush.bf16.msra.mxu0 %v2584
    %3172 = vmatpush.bf16.msra.mxu0 %v2580
    %3173 = vmatpush.bf16.msra.mxu0 %v2576
    %3174 = vmatpush.bf16.msra.mxu0 %v2572
    %3175 = vmatpush.bf16.msra.mxu0 %v2568
    %3176 = vmatpush.bf16.msra.mxu0 %v2564
    %3177 = vmatmul.bf16.gmra.mxu0 %v1500
    %v3178 = vpop.f32.mrf.mxu0
    %v3179 = vadd.f32 %v3165, %v3178
    %v3180 = vpop.f32.mrf.mxu0
    %v3181 = vadd.f32 %v3167, %v3180
    %3182 = vdwg.mxu0
    %3183 = vmatpush.bf16.msra.mxu0 %v2624
    %3184 = vmatpush.bf16.msra.mxu0 %v2620
    %3185 = vmatpush.bf16.msra.mxu0 %v2616
    %3186 = vmatpush.bf16.msra.mxu0 %v2612
    %3187 = vmatpush.bf16.msra.mxu0 %v2608
    %3188 = vmatpush.bf16.msra.mxu0 %v2604
    %3189 = vmatpush.bf16.msra.mxu0 %v2600
    %3190 = vmatpush.bf16.msra.mxu0 %v2596
    %3191 = vmatmul.bf16.gmra.mxu0 %v1501
    %v3192 = vpop.f32.mrf.mxu0
    %v3193 = vadd.f32 %v3179, %v3192
    %v3194 = vpop.f32.mrf.mxu0
    %v3195 = vadd.f32 %v3181, %v3194
    %3196 = vdwg.mxu0
    %3197 = vmatpush.bf16.msra.mxu0 %v2656
    %3198 = vmatpush.bf16.msra.mxu0 %v2652
    %3199 = vmatpush.bf16.msra.mxu0 %v2648
    %3200 = vmatpush.bf16.msra.mxu0 %v2644
    %3201 = vmatpush.bf16.msra.mxu0 %v2640
    %3202 = vmatpush.bf16.msra.mxu0 %v2636
    %3203 = vmatpush.bf16.msra.mxu0 %v2632
    %3204 = vmatpush.bf16.msra.mxu0 %v2628
    %3205 = vmatmul.bf16.gmra.mxu0 %v1502
    %v3206 = vpop.f32.mrf.mxu0
    %v3207 = vadd.f32 %v3193, %v3206
    %v3208 = vpop.f32.mrf.mxu0
    %v3209 = vadd.f32 %v3195, %v3208
    %3210 = vdwg.mxu0
    %3211 = vmatpush.bf16.msra.mxu0 %v2688
    %3212 = vmatpush.bf16.msra.mxu0 %v2684
    %3213 = vmatpush.bf16.msra.mxu0 %v2680
    %3214 = vmatpush.bf16.msra.mxu0 %v2676
    %3215 = vmatpush.bf16.msra.mxu0 %v2672
    %3216 = vmatpush.bf16.msra.mxu0 %v2668
    %3217 = vmatpush.bf16.msra.mxu0 %v2664
    %3218 = vmatpush.bf16.msra.mxu0 %v2660
    %3219 = vmatmul.bf16.gmra.mxu0 %v1503
    %v3220 = vpop.f32.mrf.mxu0
    %v3221 = vadd.f32 %v3207, %v3220
    %v3222 = vpop.f32.mrf.mxu0
    %v3223 = vadd.f32 %v3209, %v3222
    %3224 = vdwg.mxu0
    %3225 = vmatpush.bf16.msra.mxu0 %v2720
    %3226 = vmatpush.bf16.msra.mxu0 %v2716
    %3227 = vmatpush.bf16.msra.mxu0 %v2712
    %3228 = vmatpush.bf16.msra.mxu0 %v2708
    %3229 = vmatpush.bf16.msra.mxu0 %v2704
    %3230 = vmatpush.bf16.msra.mxu0 %v2700
    %3231 = vmatpush.bf16.msra.mxu0 %v2696
    %3232 = vmatpush.bf16.msra.mxu0 %v2692
    %3233 = vmatmul.bf16.gmra.mxu0 %v1504
    %v3234 = vpop.f32.mrf.mxu0
    %v3235 = vadd.f32 %v3221, %v3234
    %v3236 = vpop.f32.mrf.mxu0
    %v3237 = vadd.f32 %v3223, %v3236
    %3238 = vdwg.mxu0
    %3239 = vmatpush.bf16.msra.mxu0 %v2752
    %3240 = vmatpush.bf16.msra.mxu0 %v2748
    %3241 = vmatpush.bf16.msra.mxu0 %v2744
    %3242 = vmatpush.bf16.msra.mxu0 %v2740
    %3243 = vmatpush.bf16.msra.mxu0 %v2736
    %3244 = vmatpush.bf16.msra.mxu0 %v2732
    %3245 = vmatpush.bf16.msra.mxu0 %v2728
    %3246 = vmatpush.bf16.msra.mxu0 %v2724
    %3247 = vmatmul.bf16.gmra.mxu0 %v1505
    %v3248 = vpop.f32.mrf.mxu0
    %v3249 = vadd.f32 %v3235, %v3248
    %v3250 = vpop.f32.mrf.mxu0
    %v3251 = vadd.f32 %v3237, %v3250
    %3252 = vdwg.mxu0
    %3253 = vmatpush.bf16.msra.mxu0 %v2784
    %3254 = vmatpush.bf16.msra.mxu0 %v2780
    %3255 = vmatpush.bf16.msra.mxu0 %v2776
    %3256 = vmatpush.bf16.msra.mxu0 %v2772
    %3257 = vmatpush.bf16.msra.mxu0 %v2768
    %3258 = vmatpush.bf16.msra.mxu0 %v2764
    %3259 = vmatpush.bf16.msra.mxu0 %v2760
    %3260 = vmatpush.bf16.msra.mxu0 %v2756
    %3261 = vmatmul.bf16.gmra.mxu0 %v1506
    %v3262 = vpop.f32.mrf.mxu0
    %v3263 = vadd.f32 %v3249, %v3262
    %v3264 = vpop.f32.mrf.mxu0
    %v3265 = vadd.f32 %v3251, %v3264
    %3266 = vdwg.mxu0
    %3267 = vmatpush.bf16.msra.mxu0 %v2561
    %3268 = vmatpush.bf16.msra.mxu0 %v2557
    %3269 = vmatpush.bf16.msra.mxu0 %v2553
    %3270 = vmatpush.bf16.msra.mxu0 %v2549
    %3271 = vmatpush.bf16.msra.mxu0 %v2545
    %3272 = vmatpush.bf16.msra.mxu0 %v2541
    %3273 = vmatpush.bf16.msra.mxu0 %v2537
    %3274 = vmatpush.bf16.msra.mxu0 %v2533
    %3275 = vmatmul.bf16.gmra.mxu0 %v1499
    %v3276 = vpop.f32.mrf.mxu0
    %v3277 = vadd.f32 0.0, %v3276
    %v3278 = vpop.f32.mrf.mxu0
    %v3279 = vadd.f32 0.0, %v3278
    %3280 = vdwg.mxu0
    %3281 = vmatpush.bf16.msra.mxu0 %v2593
    %3282 = vmatpush.bf16.msra.mxu0 %v2589
    %3283 = vmatpush.bf16.msra.mxu0 %v2585
    %3284 = vmatpush.bf16.msra.mxu0 %v2581
    %3285 = vmatpush.bf16.msra.mxu0 %v2577
    %3286 = vmatpush.bf16.msra.mxu0 %v2573
    %3287 = vmatpush.bf16.msra.mxu0 %v2569
    %3288 = vmatpush.bf16.msra.mxu0 %v2565
    %3289 = vmatmul.bf16.gmra.mxu0 %v1500
    %v3290 = vpop.f32.mrf.mxu0
    %v3291 = vadd.f32 %v3277, %v3290
    %v3292 = vpop.f32.mrf.mxu0
    %v3293 = vadd.f32 %v3279, %v3292
    %3294 = vdwg.mxu0
    %3295 = vmatpush.bf16.msra.mxu0 %v2625
    %3296 = vmatpush.bf16.msra.mxu0 %v2621
    %3297 = vmatpush.bf16.msra.mxu0 %v2617
    %3298 = vmatpush.bf16.msra.mxu0 %v2613
    %3299 = vmatpush.bf16.msra.mxu0 %v2609
    %3300 = vmatpush.bf16.msra.mxu0 %v2605
    %3301 = vmatpush.bf16.msra.mxu0 %v2601
    %3302 = vmatpush.bf16.msra.mxu0 %v2597
    %3303 = vmatmul.bf16.gmra.mxu0 %v1501
    %v3304 = vpop.f32.mrf.mxu0
    %v3305 = vadd.f32 %v3291, %v3304
    %v3306 = vpop.f32.mrf.mxu0
    %v3307 = vadd.f32 %v3293, %v3306
    %3308 = vdwg.mxu0
    %3309 = vmatpush.bf16.msra.mxu0 %v2657
    %3310 = vmatpush.bf16.msra.mxu0 %v2653
    %3311 = vmatpush.bf16.msra.mxu0 %v2649
    %3312 = vmatpush.bf16.msra.mxu0 %v2645
    %3313 = vmatpush.bf16.msra.mxu0 %v2641
    %3314 = vmatpush.bf16.msra.mxu0 %v2637
    %3315 = vmatpush.bf16.msra.mxu0 %v2633
    %3316 = vmatpush.bf16.msra.mxu0 %v2629
    %3317 = vmatmul.bf16.gmra.mxu0 %v1502
    %v3318 = vpop.f32.mrf.mxu0
    %v3319 = vadd.f32 %v3305, %v3318
    %v3320 = vpop.f32.mrf.mxu0
    %v3321 = vadd.f32 %v3307, %v3320
    %3322 = vdwg.mxu0
    %3323 = vmatpush.bf16.msra.mxu0 %v2689
    %3324 = vmatpush.bf16.msra.mxu0 %v2685
    %3325 = vmatpush.bf16.msra.mxu0 %v2681
    %3326 = vmatpush.bf16.msra.mxu0 %v2677
    %3327 = vmatpush.bf16.msra.mxu0 %v2673
    %3328 = vmatpush.bf16.msra.mxu0 %v2669
    %3329 = vmatpush.bf16.msra.mxu0 %v2665
    %3330 = vmatpush.bf16.msra.mxu0 %v2661
    %3331 = vmatmul.bf16.gmra.mxu0 %v1503
    %v3332 = vpop.f32.mrf.mxu0
    %v3333 = vadd.f32 %v3319, %v3332
    %v3334 = vpop.f32.mrf.mxu0
    %v3335 = vadd.f32 %v3321, %v3334
    %3336 = vdwg.mxu0
    %3337 = vmatpush.bf16.msra.mxu0 %v2721
    %3338 = vmatpush.bf16.msra.mxu0 %v2717
    %3339 = vmatpush.bf16.msra.mxu0 %v2713
    %3340 = vmatpush.bf16.msra.mxu0 %v2709
    %3341 = vmatpush.bf16.msra.mxu0 %v2705
    %3342 = vmatpush.bf16.msra.mxu0 %v2701
    %3343 = vmatpush.bf16.msra.mxu0 %v2697
    %3344 = vmatpush.bf16.msra.mxu0 %v2693
    %3345 = vmatmul.bf16.gmra.mxu0 %v1504
    %v3346 = vpop.f32.mrf.mxu0
    %v3347 = vadd.f32 %v3333, %v3346
    %v3348 = vpop.f32.mrf.mxu0
    %v3349 = vadd.f32 %v3335, %v3348
    %3350 = vdwg.mxu0
    %3351 = vmatpush.bf16.msra.mxu0 %v2753
    %3352 = vmatpush.bf16.msra.mxu0 %v2749
    %3353 = vmatpush.bf16.msra.mxu0 %v2745
    %3354 = vmatpush.bf16.msra.mxu0 %v2741
    %3355 = vmatpush.bf16.msra.mxu0 %v2737
    %3356 = vmatpush.bf16.msra.mxu0 %v2733
    %3357 = vmatpush.bf16.msra.mxu0 %v2729
    %3358 = vmatpush.bf16.msra.mxu0 %v2725
    %3359 = vmatmul.bf16.gmra.mxu0 %v1505
    %v3360 = vpop.f32.mrf.mxu0
    %v3361 = vadd.f32 %v3347, %v3360
    %v3362 = vpop.f32.mrf.mxu0
    %v3363 = vadd.f32 %v3349, %v3362
    %3364 = vdwg.mxu0
    %3365 = vmatpush.bf16.msra.mxu0 %v2785
    %3366 = vmatpush.bf16.msra.mxu0 %v2781
    %3367 = vmatpush.bf16.msra.mxu0 %v2777
    %3368 = vmatpush.bf16.msra.mxu0 %v2773
    %3369 = vmatpush.bf16.msra.mxu0 %v2769
    %3370 = vmatpush.bf16.msra.mxu0 %v2765
    %3371 = vmatpush.bf16.msra.mxu0 %v2761
    %3372 = vmatpush.bf16.msra.mxu0 %v2757
    %3373 = vmatmul.bf16.gmra.mxu0 %v1506
    %v3374 = vpop.f32.mrf.mxu0
    %v3375 = vadd.f32 %v3361, %v3374
    %v3376 = vpop.f32.mrf.mxu0
    %v3377 = vadd.f32 %v3363, %v3376
    %3378 = vdwg.mxu0
    %3379 = vmatpush.bf16.msra.mxu0 %v2562
    %3380 = vmatpush.bf16.msra.mxu0 %v2558
    %3381 = vmatpush.bf16.msra.mxu0 %v2554
    %3382 = vmatpush.bf16.msra.mxu0 %v2550
    %3383 = vmatpush.bf16.msra.mxu0 %v2546
    %3384 = vmatpush.bf16.msra.mxu0 %v2542
    %3385 = vmatpush.bf16.msra.mxu0 %v2538
    %3386 = vmatpush.bf16.msra.mxu0 %v2534
    %3387 = vmatmul.bf16.gmra.mxu0 %v1499
    %v3388 = vpop.f32.mrf.mxu0
    %v3389 = vadd.f32 0.0, %v3388
    %v3390 = vpop.f32.mrf.mxu0
    %v3391 = vadd.f32 0.0, %v3390
    %3392 = vdwg.mxu0
    %3393 = vmatpush.bf16.msra.mxu0 %v2594
    %3394 = vmatpush.bf16.msra.mxu0 %v2590
    %3395 = vmatpush.bf16.msra.mxu0 %v2586
    %3396 = vmatpush.bf16.msra.mxu0 %v2582
    %3397 = vmatpush.bf16.msra.mxu0 %v2578
    %3398 = vmatpush.bf16.msra.mxu0 %v2574
    %3399 = vmatpush.bf16.msra.mxu0 %v2570
    %3400 = vmatpush.bf16.msra.mxu0 %v2566
    %3401 = vmatmul.bf16.gmra.mxu0 %v1500
    %v3402 = vpop.f32.mrf.mxu0
    %v3403 = vadd.f32 %v3389, %v3402
    %v3404 = vpop.f32.mrf.mxu0
    %v3405 = vadd.f32 %v3391, %v3404
    %3406 = vdwg.mxu0
    %3407 = vmatpush.bf16.msra.mxu0 %v2626
    %3408 = vmatpush.bf16.msra.mxu0 %v2622
    %3409 = vmatpush.bf16.msra.mxu0 %v2618
    %3410 = vmatpush.bf16.msra.mxu0 %v2614
    %3411 = vmatpush.bf16.msra.mxu0 %v2610
    %3412 = vmatpush.bf16.msra.mxu0 %v2606
    %3413 = vmatpush.bf16.msra.mxu0 %v2602
    %3414 = vmatpush.bf16.msra.mxu0 %v2598
    %3415 = vmatmul.bf16.gmra.mxu0 %v1501
    %v3416 = vpop.f32.mrf.mxu0
    %v3417 = vadd.f32 %v3403, %v3416
    %v3418 = vpop.f32.mrf.mxu0
    %v3419 = vadd.f32 %v3405, %v3418
    %3420 = vdwg.mxu0
    %3421 = vmatpush.bf16.msra.mxu0 %v2658
    %3422 = vmatpush.bf16.msra.mxu0 %v2654
    %3423 = vmatpush.bf16.msra.mxu0 %v2650
    %3424 = vmatpush.bf16.msra.mxu0 %v2646
    %3425 = vmatpush.bf16.msra.mxu0 %v2642
    %3426 = vmatpush.bf16.msra.mxu0 %v2638
    %3427 = vmatpush.bf16.msra.mxu0 %v2634
    %3428 = vmatpush.bf16.msra.mxu0 %v2630
    %3429 = vmatmul.bf16.gmra.mxu0 %v1502
    %v3430 = vpop.f32.mrf.mxu0
    %v3431 = vadd.f32 %v3417, %v3430
    %v3432 = vpop.f32.mrf.mxu0
    %v3433 = vadd.f32 %v3419, %v3432
    %3434 = vdwg.mxu0
    %3435 = vmatpush.bf16.msra.mxu0 %v2690
    %3436 = vmatpush.bf16.msra.mxu0 %v2686
    %3437 = vmatpush.bf16.msra.mxu0 %v2682
    %3438 = vmatpush.bf16.msra.mxu0 %v2678
    %3439 = vmatpush.bf16.msra.mxu0 %v2674
    %3440 = vmatpush.bf16.msra.mxu0 %v2670
    %3441 = vmatpush.bf16.msra.mxu0 %v2666
    %3442 = vmatpush.bf16.msra.mxu0 %v2662
    %3443 = vmatmul.bf16.gmra.mxu0 %v1503
    %v3444 = vpop.f32.mrf.mxu0
    %v3445 = vadd.f32 %v3431, %v3444
    %v3446 = vpop.f32.mrf.mxu0
    %v3447 = vadd.f32 %v3433, %v3446
    %3448 = vdwg.mxu0
    %3449 = vmatpush.bf16.msra.mxu0 %v2722
    %3450 = vmatpush.bf16.msra.mxu0 %v2718
    %3451 = vmatpush.bf16.msra.mxu0 %v2714
    %3452 = vmatpush.bf16.msra.mxu0 %v2710
    %3453 = vmatpush.bf16.msra.mxu0 %v2706
    %3454 = vmatpush.bf16.msra.mxu0 %v2702
    %3455 = vmatpush.bf16.msra.mxu0 %v2698
    %3456 = vmatpush.bf16.msra.mxu0 %v2694
    %3457 = vmatmul.bf16.gmra.mxu0 %v1504
    %v3458 = vpop.f32.mrf.mxu0
    %v3459 = vadd.f32 %v3445, %v3458
    %v3460 = vpop.f32.mrf.mxu0
    %v3461 = vadd.f32 %v3447, %v3460
    %3462 = vdwg.mxu0
    %3463 = vmatpush.bf16.msra.mxu0 %v2754
    %3464 = vmatpush.bf16.msra.mxu0 %v2750
    %3465 = vmatpush.bf16.msra.mxu0 %v2746
    %3466 = vmatpush.bf16.msra.mxu0 %v2742
    %3467 = vmatpush.bf16.msra.mxu0 %v2738
    %3468 = vmatpush.bf16.msra.mxu0 %v2734
    %3469 = vmatpush.bf16.msra.mxu0 %v2730
    %3470 = vmatpush.bf16.msra.mxu0 %v2726
    %3471 = vmatmul.bf16.gmra.mxu0 %v1505
    %v3472 = vpop.f32.mrf.mxu0
    %v3473 = vadd.f32 %v3459, %v3472
    %v3474 = vpop.f32.mrf.mxu0
    %v3475 = vadd.f32 %v3461, %v3474
    %3476 = vdwg.mxu0
    %3477 = vmatpush.bf16.msra.mxu0 %v2786
    %3478 = vmatpush.bf16.msra.mxu0 %v2782
    %3479 = vmatpush.bf16.msra.mxu0 %v2778
    %3480 = vmatpush.bf16.msra.mxu0 %v2774
    %3481 = vmatpush.bf16.msra.mxu0 %v2770
    %3482 = vmatpush.bf16.msra.mxu0 %v2766
    %3483 = vmatpush.bf16.msra.mxu0 %v2762
    %3484 = vmatpush.bf16.msra.mxu0 %v2758
    %3485 = vmatmul.bf16.gmra.mxu0 %v1506
    %v3486 = vpop.f32.mrf.mxu0
    %v3487 = vadd.f32 %v3473, %v3486
    %v3488 = vpop.f32.mrf.mxu0
    %v3489 = vadd.f32 %v3475, %v3488
    %3490 = vdwg.mxu0
    %v3491 = vpack.c.bf16 %v3263, %v3151
    %v3492 = vpack.c.bf16 %v3487, %v3375
    %v3493 = vpack.c.bf16 %v3265, %v3153
    %v3494 = vpack.c.bf16 %v3489, %v3377
    %v3495 = vld [vmem:[#allocation10] sm:$0xf]
    %3497 = vst [vmem:[#allocation1] ss:$9 sm:$0xff] %v3495
    %v3498 = vld [vmem:[#allocation1] sm:$0xff]
    %v3499 = vld [vmem:[#allocation1 + $0x9] sm:$0xff]
    %v3500 = vld [vmem:[#allocation1 + $0x12] sm:$0xff]
    %v3501 = vld [vmem:[#allocation1 + $0x1b] sm:$0xff]
    %v3502 = vpack.i.b16 %v3498, %v3498
    %v3504 = vperm.slane %v3502, 0
    %v3505 = vpack.i.b16 %v3499, %v3499
    %v3507 = vperm.slane %v3505, 0
    %v3508 = vpack.i.b16 %v3500, %v3500
    %v3510 = vperm.slane %v3508, 0
    %v3511 = vpack.i.b16 %v3501, %v3501
    %v3513 = vperm.slane %v3511, 0
    %v3514 = vunpack.c.l.bf16 %v3491
    %v3515 = vunpack.c.h.bf16 %v3491
    %v3516 = vunpack.c.l.bf16 %v3492
    %v3517 = vunpack.c.h.bf16 %v3492
    %v3518 = vunpack.c.l.bf16 %v3493
    %v3519 = vunpack.c.h.bf16 %v3493
    %v3520 = vunpack.c.l.bf16 %v3494
    %v3521 = vunpack.c.h.bf16 %v3494
    %v3522 = vunpack.c.l.bf16 %v3504
    %v3523 = vunpack.c.l.bf16 %v3507
    %v3524 = vunpack.c.l.bf16 %v3510
    %v3525 = vunpack.c.l.bf16 %v3513
    %v3526 = vadd.f32 %v3514, %v3522
    %v3527 = vadd.f32 %v3515, %v3523
    %v3528 = vadd.f32 %v3516, %v3524
    %v3529 = vadd.f32 %v3517, %v3525
    %v3530 = vadd.f32 %v3518, %v3522
    %v3531 = vadd.f32 %v3519, %v3523
    %v3532 = vadd.f32 %v3520, %v3524
    %v3533 = vadd.f32 %v3521, %v3525
    %v3534 = vpack.c.bf16 %v3527, %v3526
    %v3535 = vpack.c.bf16 %v3529, %v3528
    %v3536 = vpack.c.bf16 %v3531, %v3530
    %v3537 = vpack.c.bf16 %v3533, %v3532
    %v3538 = vunpack.c.l.bf16 %v3534
    %v3539 = vunpack.c.h.bf16 %v3534
    %v3540 = vunpack.c.l.bf16 %v3535
    %v3541 = vunpack.c.h.bf16 %v3535
    %v3542 = vunpack.c.l.bf16 %v3536
    %v3543 = vunpack.c.h.bf16 %v3536
    %v3544 = vunpack.c.l.bf16 %v3537
    %v3545 = vunpack.c.h.bf16 %v3537
    %v3546 = vmul.f32 %v3538, 0.20019531
    %v3547 = vmul.f32 %v3539, 0.20019531
    %v3548 = vmul.f32 %v3540, 0.20019531
    %v3549 = vmul.f32 %v3541, 0.20019531
    %v3550 = vmul.f32 %v3542, 0.20019531
    %v3551 = vmul.f32 %v3543, 0.20019531
    %v3552 = vmul.f32 %v3544, 0.20019531
    %v3553 = vmul.f32 %v3545, 0.20019531
    %v3554 = vpack.c.bf16 %v3547, %v3546
    %v3555 = vpack.c.bf16 %v3549, %v3548
    %v3556 = vpack.c.bf16 %v3551, %v3550
    %v3557 = vpack.c.bf16 %v3553, %v3552
    %v3558 = vunpack.c.l.bf16 %v3554
    %v3559 = vunpack.c.h.bf16 %v3554
    %v3560 = vunpack.c.l.bf16 %v3555
    %v3561 = vunpack.c.h.bf16 %v3555
    %v3562 = vunpack.c.l.bf16 %v3556
    %v3563 = vunpack.c.h.bf16 %v3556
    %v3564 = vunpack.c.l.bf16 %v3557
    %v3565 = vunpack.c.h.bf16 %v3557
    %v3566 = vmax.f32 %v3538, %v3558
    %v3567 = vmax.f32 %v3539, %v3559
    %v3568 = vmax.f32 %v3540, %v3560
    %v3569 = vmax.f32 %v3541, %v3561
    %v3570 = vmax.f32 %v3542, %v3562
    %v3571 = vmax.f32 %v3543, %v3563
    %v3572 = vmax.f32 %v3544, %v3564
    %v3573 = vmax.f32 %v3545, %v3565
    %v3574 = vpack.c.bf16 %v3570, %v3566
    %v3575 = vpack.c.bf16 %v3571, %v3567
    %v3576 = vpack.c.bf16 %v3572, %v3568
    %v3577 = vpack.c.bf16 %v3573, %v3569
    %v3578 = vld [vmem:[#allocation11] sm:$0xff]
    %v3579 = vld [vmem:[#allocation11 + $0x8] sm:$0xff]
    %v3580 = vld [vmem:[#allocation11 + $0x10] sm:$0xff]
    %v3581 = vld [vmem:[#allocation11 + $0x18] sm:$0xff]
    %v3582 = vld [vmem:[#allocation11 + $0x20] sm:$0xff]
    %v3583 = vld [vmem:[#allocation11 + $0x28] sm:$0xff]
    %v3584 = vld [vmem:[#allocation11 + $0x30] sm:$0xff]
    %v3585 = vld [vmem:[#allocation11 + $0x38] sm:$0xff]
    %v3586 = vld [vmem:[#allocation11 + $0x40] sm:$0xff]
    %v3587 = vld [vmem:[#allocation11 + $0x48] sm:$0xff]
    %v3588 = vld [vmem:[#allocation11 + $0x50] sm:$0xff]
    %v3589 = vld [vmem:[#allocation11 + $0x58] sm:$0xff]
    %v3590 = vld [vmem:[#allocation11 + $0x60] sm:$0xff]
    %v3591 = vld [vmem:[#allocation11 + $0x68] sm:$0xff]
    %v3592 = vld [vmem:[#allocation11 + $0x70] sm:$0xff]
    %v3593 = vld [vmem:[#allocation11 + $0x78] sm:$0xff]
    %v3594 = vld [vmem:[#allocation11 + $0x80] sm:$0xff]
    %v3595 = vld [vmem:[#allocation11 + $0x88] sm:$0xff]
    %v3596 = vld [vmem:[#allocation11 + $0x90] sm:$0xff]
    %v3597 = vld [vmem:[#allocation11 + $0x98] sm:$0xff]
    %v3598 = vld [vmem:[#allocation11 + $0xa0] sm:$0xff]
    %v3599 = vld [vmem:[#allocation11 + $0xa8] sm:$0xff]
    %v3600 = vld [vmem:[#allocation11 + $0xb0] sm:$0xff]
    %v3601 = vld [vmem:[#allocation11 + $0xb8] sm:$0xff]
    %v3602 = vld [vmem:[#allocation11 + $0xc0] sm:$0xff]
    %v3603 = vld [vmem:[#allocation11 + $0xc8] sm:$0xff]
    %v3604 = vld [vmem:[#allocation11 + $0xd0] sm:$0xff]
    %v3605 = vld [vmem:[#allocation11 + $0xd8] sm:$0xff]
    %v3606 = vld [vmem:[#allocation11 + $0xe0] sm:$0xff]
    %v3607 = vld [vmem:[#allocation11 + $0xe8] sm:$0xff]
    %v3608 = vld [vmem:[#allocation11 + $0xf0] sm:$0xff]
    %v3609 = vld [vmem:[#allocation11 + $0xf8] sm:$0xff]
    %v3610 = vld [vmem:[#allocation11 + $0x100] sm:$0xff]
    %v3611 = vld [vmem:[#allocation11 + $0x108] sm:$0xff]
    %v3612 = vld [vmem:[#allocation11 + $0x110] sm:$0xff]
    %v3613 = vld [vmem:[#allocation11 + $0x118] sm:$0xff]
    %v3614 = vld [vmem:[#allocation11 + $0x120] sm:$0xff]
    %v3615 = vld [vmem:[#allocation11 + $0x128] sm:$0xff]
    %v3616 = vld [vmem:[#allocation11 + $0x130] sm:$0xff]
    %v3617 = vld [vmem:[#allocation11 + $0x138] sm:$0xff]
    %v3618 = vld [vmem:[#allocation11 + $0x140] sm:$0xff]
    %v3619 = vld [vmem:[#allocation11 + $0x148] sm:$0xff]
    %v3620 = vld [vmem:[#allocation11 + $0x150] sm:$0xff]
    %v3621 = vld [vmem:[#allocation11 + $0x158] sm:$0xff]
    %v3622 = vld [vmem:[#allocation11 + $0x160] sm:$0xff]
    %v3623 = vld [vmem:[#allocation11 + $0x168] sm:$0xff]
    %v3624 = vld [vmem:[#allocation11 + $0x170] sm:$0xff]
    %v3625 = vld [vmem:[#allocation11 + $0x178] sm:$0xff]
    %v3626 = vld [vmem:[#allocation11 + $0x180] sm:$0xff]
    %v3627 = vld [vmem:[#allocation11 + $0x188] sm:$0xff]
    %v3628 = vld [vmem:[#allocation11 + $0x190] sm:$0xff]
    %v3629 = vld [vmem:[#allocation11 + $0x198] sm:$0xff]
    %v3630 = vld [vmem:[#allocation11 + $0x1a0] sm:$0xff]
    %v3631 = vld [vmem:[#allocation11 + $0x1a8] sm:$0xff]
    %v3632 = vld [vmem:[#allocation11 + $0x1b0] sm:$0xff]
    %v3633 = vld [vmem:[#allocation11 + $0x1b8] sm:$0xff]
    %v3634 = vld [vmem:[#allocation11 + $0x1c0] sm:$0xff]
    %v3635 = vld [vmem:[#allocation11 + $0x1c8] sm:$0xff]
    %v3636 = vld [vmem:[#allocation11 + $0x1d0] sm:$0xff]
    %v3637 = vld [vmem:[#allocation11 + $0x1d8] sm:$0xff]
    %v3638 = vld [vmem:[#allocation11 + $0x1e0] sm:$0xff]
    %v3639 = vld [vmem:[#allocation11 + $0x1e8] sm:$0xff]
    %v3640 = vld [vmem:[#allocation11 + $0x1f0] sm:$0xff]
    %v3641 = vld [vmem:[#allocation11 + $0x1f8] sm:$0xff]
    %v3706 = vunpack.c.l.b16 %v3578
    %v3707 = vunpack.c.h.b16 %v3578
    %v3708 = vunpack.c.l.b16 %v3579
    %v3709 = vunpack.c.h.b16 %v3579
    %v3710 = vunpack.c.l.b16 %v3580
    %v3711 = vunpack.c.h.b16 %v3580
    %v3712 = vunpack.c.l.b16 %v3581
    %v3713 = vunpack.c.h.b16 %v3581
    %v3714 = vunpack.c.l.b16 %v3582
    %v3715 = vunpack.c.h.b16 %v3582
    %v3716 = vunpack.c.l.b16 %v3583
    %v3717 = vunpack.c.h.b16 %v3583
    %v3718 = vunpack.c.l.b16 %v3584
    %v3719 = vunpack.c.h.b16 %v3584
    %v3720 = vunpack.c.l.b16 %v3585
    %v3721 = vunpack.c.h.b16 %v3585
    %v3722 = vunpack.c.l.b16 %v3586
    %v3723 = vunpack.c.h.b16 %v3586
    %v3724 = vunpack.c.l.b16 %v3587
    %v3725 = vunpack.c.h.b16 %v3587
    %v3726 = vunpack.c.l.b16 %v3588
    %v3727 = vunpack.c.h.b16 %v3588
    %v3728 = vunpack.c.l.b16 %v3589
    %v3729 = vunpack.c.h.b16 %v3589
    %v3730 = vunpack.c.l.b16 %v3590
    %v3731 = vunpack.c.h.b16 %v3590
    %v3732 = vunpack.c.l.b16 %v3591
    %v3733 = vunpack.c.h.b16 %v3591
    %v3734 = vunpack.c.l.b16 %v3592
    %v3735 = vunpack.c.h.b16 %v3592
    %v3736 = vunpack.c.l.b16 %v3593
    %v3737 = vunpack.c.h.b16 %v3593
    %v3738 = vunpack.c.l.b16 %v3594
    %v3739 = vunpack.c.h.b16 %v3594
    %v3740 = vunpack.c.l.b16 %v3595
    %v3741 = vunpack.c.h.b16 %v3595
    %v3742 = vunpack.c.l.b16 %v3596
    %v3743 = vunpack.c.h.b16 %v3596
    %v3744 = vunpack.c.l.b16 %v3597
    %v3745 = vunpack.c.h.b16 %v3597
    %v3746 = vunpack.c.l.b16 %v3598
    %v3747 = vunpack.c.h.b16 %v3598
    %v3748 = vunpack.c.l.b16 %v3599
    %v3749 = vunpack.c.h.b16 %v3599
    %v3750 = vunpack.c.l.b16 %v3600
    %v3751 = vunpack.c.h.b16 %v3600
    %v3752 = vunpack.c.l.b16 %v3601
    %v3753 = vunpack.c.h.b16 %v3601
    %v3754 = vunpack.c.l.b16 %v3602
    %v3755 = vunpack.c.h.b16 %v3602
    %v3756 = vunpack.c.l.b16 %v3603
    %v3757 = vunpack.c.h.b16 %v3603
    %v3758 = vunpack.c.l.b16 %v3604
    %v3759 = vunpack.c.h.b16 %v3604
    %v3760 = vunpack.c.l.b16 %v3605
    %v3761 = vunpack.c.h.b16 %v3605
    %v3762 = vunpack.c.l.b16 %v3606
    %v3763 = vunpack.c.h.b16 %v3606
    %v3764 = vunpack.c.l.b16 %v3607
    %v3765 = vunpack.c.h.b16 %v3607
    %v3766 = vunpack.c.l.b16 %v3608
    %v3767 = vunpack.c.h.b16 %v3608
    %v3768 = vunpack.c.l.b16 %v3609
    %v3769 = vunpack.c.h.b16 %v3609
    %v3770 = vunpack.c.l.b16 %v3610
    %v3771 = vunpack.c.h.b16 %v3610
    %v3772 = vunpack.c.l.b16 %v3611
    %v3773 = vunpack.c.h.b16 %v3611
    %v3774 = vunpack.c.l.b16 %v3612
    %v3775 = vunpack.c.h.b16 %v3612
    %v3776 = vunpack.c.l.b16 %v3613
    %v3777 = vunpack.c.h.b16 %v3613
    %v3778 = vunpack.c.l.b16 %v3614
    %v3779 = vunpack.c.h.b16 %v3614
    %v3780 = vunpack.c.l.b16 %v3615
    %v3781 = vunpack.c.h.b16 %v3615
    %v3782 = vunpack.c.l.b16 %v3616
    %v3783 = vunpack.c.h.b16 %v3616
    %v3784 = vunpack.c.l.b16 %v3617
    %v3785 = vunpack.c.h.b16 %v3617
    %v3786 = vunpack.c.l.b16 %v3618
    %v3787 = vunpack.c.h.b16 %v3618
    %v3788 = vunpack.c.l.b16 %v3619
    %v3789 = vunpack.c.h.b16 %v3619
    %v3790 = vunpack.c.l.b16 %v3620
    %v3791 = vunpack.c.h.b16 %v3620
    %v3792 = vunpack.c.l.b16 %v3621
    %v3793 = vunpack.c.h.b16 %v3621
    %v3794 = vunpack.c.l.b16 %v3622
    %v3795 = vunpack.c.h.b16 %v3622
    %v3796 = vunpack.c.l.b16 %v3623
    %v3797 = vunpack.c.h.b16 %v3623
    %v3798 = vunpack.c.l.b16 %v3624
    %v3799 = vunpack.c.h.b16 %v3624
    %v3800 = vunpack.c.l.b16 %v3625
    %v3801 = vunpack.c.h.b16 %v3625
    %v3802 = vunpack.c.l.b16 %v3626
    %v3803 = vunpack.c.h.b16 %v3626
    %v3804 = vunpack.c.l.b16 %v3627
    %v3805 = vunpack.c.h.b16 %v3627
    %v3806 = vunpack.c.l.b16 %v3628
    %v3807 = vunpack.c.h.b16 %v3628
    %v3808 = vunpack.c.l.b16 %v3629
    %v3809 = vunpack.c.h.b16 %v3629
    %v3810 = vunpack.c.l.b16 %v3630
    %v3811 = vunpack.c.h.b16 %v3630
    %v3812 = vunpack.c.l.b16 %v3631
    %v3813 = vunpack.c.h.b16 %v3631
    %v3814 = vunpack.c.l.b16 %v3632
    %v3815 = vunpack.c.h.b16 %v3632
    %v3816 = vunpack.c.l.b16 %v3633
    %v3817 = vunpack.c.h.b16 %v3633
    %v3818 = vunpack.c.l.b16 %v3634
    %v3819 = vunpack.c.h.b16 %v3634
    %v3820 = vunpack.c.l.b16 %v3635
    %v3821 = vunpack.c.h.b16 %v3635
    %v3822 = vunpack.c.l.b16 %v3636
    %v3823 = vunpack.c.h.b16 %v3636
    %v3824 = vunpack.c.l.b16 %v3637
    %v3825 = vunpack.c.h.b16 %v3637
    %v3826 = vunpack.c.l.b16 %v3638
    %v3827 = vunpack.c.h.b16 %v3638
    %v3828 = vunpack.c.l.b16 %v3639
    %v3829 = vunpack.c.h.b16 %v3639
    %v3830 = vunpack.c.l.b16 %v3640
    %v3831 = vunpack.c.h.b16 %v3640
    %v3832 = vunpack.c.l.b16 %v3641
    %v3833 = vunpack.c.h.b16 %v3641
    %v3834 = vpack.c.b16 %v3708, %v3706
    %v3835 = vpack.c.b16 %v3709, %v3707
    %v3836 = vpack.c.b16 %v3712, %v3710
    %v3837 = vpack.c.b16 %v3713, %v3711
    %v3838 = vpack.c.b16 %v3716, %v3714
    %v3839 = vpack.c.b16 %v3717, %v3715
    %v3840 = vpack.c.b16 %v3720, %v3718
    %v3841 = vpack.c.b16 %v3721, %v3719
    %v3842 = vpack.c.b16 %v3724, %v3722
    %v3843 = vpack.c.b16 %v3725, %v3723
    %v3844 = vpack.c.b16 %v3728, %v3726
    %v3845 = vpack.c.b16 %v3729, %v3727
    %v3846 = vpack.c.b16 %v3732, %v3730
    %v3847 = vpack.c.b16 %v3733, %v3731
    %v3848 = vpack.c.b16 %v3736, %v3734
    %v3849 = vpack.c.b16 %v3737, %v3735
    %v3850 = vpack.c.b16 %v3740, %v3738
    %v3851 = vpack.c.b16 %v3741, %v3739
    %v3852 = vpack.c.b16 %v3744, %v3742
    %v3853 = vpack.c.b16 %v3745, %v3743
    %v3854 = vpack.c.b16 %v3748, %v3746
    %v3855 = vpack.c.b16 %v3749, %v3747
    %v3856 = vpack.c.b16 %v3752, %v3750
    %v3857 = vpack.c.b16 %v3753, %v3751
    %v3858 = vpack.c.b16 %v3756, %v3754
    %v3859 = vpack.c.b16 %v3757, %v3755
    %v3860 = vpack.c.b16 %v3760, %v3758
    %v3861 = vpack.c.b16 %v3761, %v3759
    %v3862 = vpack.c.b16 %v3764, %v3762
    %v3863 = vpack.c.b16 %v3765, %v3763
    %v3864 = vpack.c.b16 %v3768, %v3766
    %v3865 = vpack.c.b16 %v3769, %v3767
    %v3866 = vpack.c.b16 %v3772, %v3770
    %v3867 = vpack.c.b16 %v3773, %v3771
    %v3868 = vpack.c.b16 %v3776, %v3774
    %v3869 = vpack.c.b16 %v3777, %v3775
    %v3870 = vpack.c.b16 %v3780, %v3778
    %v3871 = vpack.c.b16 %v3781, %v3779
    %v3872 = vpack.c.b16 %v3784, %v3782
    %v3873 = vpack.c.b16 %v3785, %v3783
    %v3874 = vpack.c.b16 %v3788, %v3786
    %v3875 = vpack.c.b16 %v3789, %v3787
    %v3876 = vpack.c.b16 %v3792, %v3790
    %v3877 = vpack.c.b16 %v3793, %v3791
    %v3878 = vpack.c.b16 %v3796, %v3794
    %v3879 = vpack.c.b16 %v3797, %v3795
    %v3880 = vpack.c.b16 %v3800, %v3798
    %v3881 = vpack.c.b16 %v3801, %v3799
    %v3882 = vpack.c.b16 %v3804, %v3802
    %v3883 = vpack.c.b16 %v3805, %v3803
    %v3884 = vpack.c.b16 %v3808, %v3806
    %v3885 = vpack.c.b16 %v3809, %v3807
    %v3886 = vpack.c.b16 %v3812, %v3810
    %v3887 = vpack.c.b16 %v3813, %v3811
    %v3888 = vpack.c.b16 %v3816, %v3814
    %v3889 = vpack.c.b16 %v3817, %v3815
    %v3890 = vpack.c.b16 %v3820, %v3818
    %v3891 = vpack.c.b16 %v3821, %v3819
    %v3892 = vpack.c.b16 %v3824, %v3822
    %v3893 = vpack.c.b16 %v3825, %v3823
    %v3894 = vpack.c.b16 %v3828, %v3826
    %v3895 = vpack.c.b16 %v3829, %v3827
    %v3896 = vpack.c.b16 %v3832, %v3830
    %v3897 = vpack.c.b16 %v3833, %v3831
    %3962 = vmatpush.bf16.msra.mxu0 %v3848
    %3963 = vmatpush.bf16.msra.mxu0 %v3846
    %3964 = vmatpush.bf16.msra.mxu0 %v3844
    %3965 = vmatpush.bf16.msra.mxu0 %v3842
    %3966 = vmatpush.bf16.msra.mxu0 %v3840
    %3967 = vmatpush.bf16.msra.mxu0 %v3838
    %3968 = vmatpush.bf16.msra.mxu0 %v3836
    %3969 = vmatpush.bf16.msra.mxu0 %v3834
    %3970 = vmatmul.bf16.gmra.mxu0 %v3574
    %v3971 = vpop.f32.mrf.mxu0
    %v3972 = vadd.f32 0.0, %v3971
    %v3973 = vpop.f32.mrf.mxu0
    %v3974 = vadd.f32 0.0, %v3973
    %3975 = vdwg.mxu0
    %3976 = vmatpush.bf16.msra.mxu0 %v3864
    %3977 = vmatpush.bf16.msra.mxu0 %v3862
    %3978 = vmatpush.bf16.msra.mxu0 %v3860
    %3979 = vmatpush.bf16.msra.mxu0 %v3858
    %3980 = vmatpush.bf16.msra.mxu0 %v3856
    %3981 = vmatpush.bf16.msra.mxu0 %v3854
    %3982 = vmatpush.bf16.msra.mxu0 %v3852
    %3983 = vmatpush.bf16.msra.mxu0 %v3850
    %3984 = vmatmul.bf16.gmra.mxu0 %v3575
    %v3985 = vpop.f32.mrf.mxu0
    %v3986 = vadd.f32 %v3972, %v3985
    %v3987 = vpop.f32.mrf.mxu0
    %v3988 = vadd.f32 %v3974, %v3987
    %3989 = vdwg.mxu0
    %3990 = vmatpush.bf16.msra.mxu0 %v3880
    %3991 = vmatpush.bf16.msra.mxu0 %v3878
    %3992 = vmatpush.bf16.msra.mxu0 %v3876
    %3993 = vmatpush.bf16.msra.mxu0 %v3874
    %3994 = vmatpush.bf16.msra.mxu0 %v3872
    %3995 = vmatpush.bf16.msra.mxu0 %v3870
    %3996 = vmatpush.bf16.msra.mxu0 %v3868
    %3997 = vmatpush.bf16.msra.mxu0 %v3866
    %3998 = vmatmul.bf16.gmra.mxu0 %v3576
    %v3999 = vpop.f32.mrf.mxu0
    %v4000 = vadd.f32 %v3986, %v3999
    %v4001 = vpop.f32.mrf.mxu0
    %v4002 = vadd.f32 %v3988, %v4001
    %4003 = vdwg.mxu0
    %4004 = vmatpush.bf16.msra.mxu0 %v3896
    %4005 = vmatpush.bf16.msra.mxu0 %v3894
    %4006 = vmatpush.bf16.msra.mxu0 %v3892
    %4007 = vmatpush.bf16.msra.mxu0 %v3890
    %4008 = vmatpush.bf16.msra.mxu0 %v3888
    %4009 = vmatpush.bf16.msra.mxu0 %v3886
    %4010 = vmatpush.bf16.msra.mxu0 %v3884
    %4011 = vmatpush.bf16.msra.mxu0 %v3882
    %4012 = vmatmul.bf16.gmra.mxu0 %v3577
    %v4013 = vpop.f32.mrf.mxu0
    %v4014 = vadd.f32 %v4000, %v4013
    %v4015 = vpop.f32.mrf.mxu0
    %v4016 = vadd.f32 %v4002, %v4015
    %4017 = vdwg.mxu0
    %4018 = vmatpush.bf16.msra.mxu0 %v3849
    %4019 = vmatpush.bf16.msra.mxu0 %v3847
    %4020 = vmatpush.bf16.msra.mxu0 %v3845
    %4021 = vmatpush.bf16.msra.mxu0 %v3843
    %4022 = vmatpush.bf16.msra.mxu0 %v3841
    %4023 = vmatpush.bf16.msra.mxu0 %v3839
    %4024 = vmatpush.bf16.msra.mxu0 %v3837
    %4025 = vmatpush.bf16.msra.mxu0 %v3835
    %4026 = vmatmul.bf16.gmra.mxu0 %v3574
    %v4027 = vpop.f32.mrf.mxu0
    %v4028 = vadd.f32 0.0, %v4027
    %v4029 = vpop.f32.mrf.mxu0
    %v4030 = vadd.f32 0.0, %v4029
    %4031 = vdwg.mxu0
    %4032 = vmatpush.bf16.msra.mxu0 %v3865
    %4033 = vmatpush.bf16.msra.mxu0 %v3863
    %4034 = vmatpush.bf16.msra.mxu0 %v3861
    %4035 = vmatpush.bf16.msra.mxu0 %v3859
    %4036 = vmatpush.bf16.msra.mxu0 %v3857
    %4037 = vmatpush.bf16.msra.mxu0 %v3855
    %4038 = vmatpush.bf16.msra.mxu0 %v3853
    %4039 = vmatpush.bf16.msra.mxu0 %v3851
    %4040 = vmatmul.bf16.gmra.mxu0 %v3575
    %v4041 = vpop.f32.mrf.mxu0
    %v4042 = vadd.f32 %v4028, %v4041
    %v4043 = vpop.f32.mrf.mxu0
    %v4044 = vadd.f32 %v4030, %v4043
    %4045 = vdwg.mxu0
    %4046 = vmatpush.bf16.msra.mxu0 %v3881
    %4047 = vmatpush.bf16.msra.mxu0 %v3879
    %4048 = vmatpush.bf16.msra.mxu0 %v3877
    %4049 = vmatpush.bf16.msra.mxu0 %v3875
    %4050 = vmatpush.bf16.msra.mxu0 %v3873
    %4051 = vmatpush.bf16.msra.mxu0 %v3871
    %4052 = vmatpush.bf16.msra.mxu0 %v3869
    %4053 = vmatpush.bf16.msra.mxu0 %v3867
    %4054 = vmatmul.bf16.gmra.mxu0 %v3576
    %v4055 = vpop.f32.mrf.mxu0
    %v4056 = vadd.f32 %v4042, %v4055
    %v4057 = vpop.f32.mrf.mxu0
    %v4058 = vadd.f32 %v4044, %v4057
    %4059 = vdwg.mxu0
    %4060 = vmatpush.bf16.msra.mxu0 %v3897
    %4061 = vmatpush.bf16.msra.mxu0 %v3895
    %4062 = vmatpush.bf16.msra.mxu0 %v3893
    %4063 = vmatpush.bf16.msra.mxu0 %v3891
    %4064 = vmatpush.bf16.msra.mxu0 %v3889
    %4065 = vmatpush.bf16.msra.mxu0 %v3887
    %4066 = vmatpush.bf16.msra.mxu0 %v3885
    %4067 = vmatpush.bf16.msra.mxu0 %v3883
    %4068 = vmatmul.bf16.gmra.mxu0 %v3577
    %v4069 = vpop.f32.mrf.mxu0
    %v4070 = vadd.f32 %v4056, %v4069
    %v4071 = vpop.f32.mrf.mxu0
    %v4072 = vadd.f32 %v4058, %v4071
    %4073 = vdwg.mxu0
    %v4074 = vpack.c.bf16 %v4070, %v4014
    %v4075 = vpack.c.bf16 %v4072, %v4016
    %v4076 = vld [vmem:[%s6] sm:$0x3]
    %4078 = vst [vmem:[#allocation1] ss:$9 sm:$0xff] %v4076
    %v4079 = vld [vmem:[#allocation1] sm:$0xff]
    %v4080 = vld [vmem:[#allocation1 + $0x9] sm:$0xff]
    %v4081 = vpack.i.b16 %v4079, %v4079
    %v4083 = vperm.slane %v4081, 0
    %v4084 = vpack.i.b16 %v4080, %v4080
    %v4086 = vperm.slane %v4084, 0
    %v4087 = vunpack.c.l.bf16 %v4074
    %v4088 = vunpack.c.h.bf16 %v4074
    %v4089 = vunpack.c.l.bf16 %v4075
    %v4090 = vunpack.c.h.bf16 %v4075
    %v4091 = vunpack.c.l.bf16 %v4083
    %v4092 = vunpack.c.l.bf16 %v4086
    %v4093 = vadd.f32 %v4087, %v4091
    %v4094 = vadd.f32 %v4088, %v4092
    %v4095 = vadd.f32 %v4089, %v4091
    %v4096 = vadd.f32 %v4090, %v4092
    %v4097 = vpack.c.bf16 %v4094, %v4093
    %v4098 = vpack.c.bf16 %v4096, %v4095
    %v4099 = vunpack.c.l.bf16 %v4097
    %v4100 = vunpack.c.h.bf16 %v4097
    %v4101 = vunpack.c.l.bf16 %v4098
    %v4102 = vunpack.c.h.bf16 %v4098
    %v4103 = vmul.f32 %v4099, 0.20019531
    %v4104 = vmul.f32 %v4100, 0.20019531
    %v4105 = vmul.f32 %v4101, 0.20019531
    %v4106 = vmul.f32 %v4102, 0.20019531
    %v4107 = vpack.c.bf16 %v4104, %v4103
    %v4108 = vpack.c.bf16 %v4106, %v4105
    %v4109 = vunpack.c.l.bf16 %v4107
    %v4110 = vunpack.c.h.bf16 %v4107
    %v4111 = vunpack.c.l.bf16 %v4108
    %v4112 = vunpack.c.h.bf16 %v4108
    %v4113 = vmax.f32 %v4099, %v4109
    %v4114 = vmax.f32 %v4100, %v4110
    %v4115 = vmax.f32 %v4101, %v4111
    %v4116 = vmax.f32 %v4102, %v4112
    %v4117 = vpack.c.bf16 %v4115, %v4113
    %v4118 = vpack.c.bf16 %v4116, %v4114
    %v4119 = vld [vmem:[#allocation13] sm:$0xf]
    %v4120 = vld [vmem:[#allocation13 + $0x4] sm:$0xf]
    %v4121 = vld [vmem:[#allocation13 + $0x8] sm:$0xf]
    %v4122 = vld [vmem:[#allocation13 + $0xc] sm:$0xf]
    %v4123 = vld [vmem:[#allocation13 + $0x10] sm:$0xf]
    %v4124 = vld [vmem:[#allocation13 + $0x14] sm:$0xf]
    %v4125 = vld [vmem:[#allocation13 + $0x18] sm:$0xf]
    %v4126 = vld [vmem:[#allocation13 + $0x1c] sm:$0xf]
    %v4127 = vld [vmem:[#allocation13 + $0x20] sm:$0xf]
    %v4128 = vld [vmem:[#allocation13 + $0x24] sm:$0xf]
    %v4129 = vld [vmem:[#allocation13 + $0x28] sm:$0xf]
    %v4130 = vld [vmem:[#allocation13 + $0x2c] sm:$0xf]
    %v4131 = vld [vmem:[#allocation13 + $0x30] sm:$0xf]
    %v4132 = vld [vmem:[#allocation13 + $0x34] sm:$0xf]
    %v4133 = vld [vmem:[#allocation13 + $0x38] sm:$0xf]
    %v4134 = vld [vmem:[#allocation13 + $0x3c] sm:$0xf]
    %v4135 = vld [vmem:[#allocation13 + $0x40] sm:$0xf]
    %v4136 = vld [vmem:[#allocation13 + $0x44] sm:$0xf]
    %v4137 = vld [vmem:[#allocation13 + $0x48] sm:$0xf]
    %v4138 = vld [vmem:[#allocation13 + $0x4c] sm:$0xf]
    %v4139 = vld [vmem:[#allocation13 + $0x50] sm:$0xf]
    %v4140 = vld [vmem:[#allocation13 + $0x54] sm:$0xf]
    %v4141 = vld [vmem:[#allocation13 + $0x58] sm:$0xf]
    %v4142 = vld [vmem:[#allocation13 + $0x5c] sm:$0xf]
    %v4143 = vld [vmem:[#allocation13 + $0x60] sm:$0xf]
    %v4144 = vld [vmem:[#allocation13 + $0x64] sm:$0xf]
    %v4145 = vld [vmem:[#allocation13 + $0x68] sm:$0xf]
    %v4146 = vld [vmem:[#allocation13 + $0x6c] sm:$0xf]
    %v4147 = vld [vmem:[#allocation13 + $0x70] sm:$0xf]
    %v4148 = vld [vmem:[#allocation13 + $0x74] sm:$0xf]
    %v4149 = vld [vmem:[#allocation13 + $0x78] sm:$0xf]
    %v4150 = vld [vmem:[#allocation13 + $0x7c] sm:$0xf]
    %v4183 = vunpack.c.l.b16 %v4119
    %v4184 = vunpack.c.l.b16 %v4120
    %v4185 = vunpack.c.l.b16 %v4121
    %v4186 = vunpack.c.l.b16 %v4122
    %v4187 = vunpack.c.l.b16 %v4123
    %v4188 = vunpack.c.l.b16 %v4124
    %v4189 = vunpack.c.l.b16 %v4125
    %v4190 = vunpack.c.l.b16 %v4126
    %v4191 = vunpack.c.l.b16 %v4127
    %v4192 = vunpack.c.l.b16 %v4128
    %v4193 = vunpack.c.l.b16 %v4129
    %v4194 = vunpack.c.l.b16 %v4130
    %v4195 = vunpack.c.l.b16 %v4131
    %v4196 = vunpack.c.l.b16 %v4132
    %v4197 = vunpack.c.l.b16 %v4133
    %v4198 = vunpack.c.l.b16 %v4134
    %v4199 = vunpack.c.l.b16 %v4135
    %v4200 = vunpack.c.l.b16 %v4136
    %v4201 = vunpack.c.l.b16 %v4137
    %v4202 = vunpack.c.l.b16 %v4138
    %v4203 = vunpack.c.l.b16 %v4139
    %v4204 = vunpack.c.l.b16 %v4140
    %v4205 = vunpack.c.l.b16 %v4141
    %v4206 = vunpack.c.l.b16 %v4142
    %v4207 = vunpack.c.l.b16 %v4143
    %v4208 = vunpack.c.l.b16 %v4144
    %v4209 = vunpack.c.l.b16 %v4145
    %v4210 = vunpack.c.l.b16 %v4146
    %v4211 = vunpack.c.l.b16 %v4147
    %v4212 = vunpack.c.l.b16 %v4148
    %v4213 = vunpack.c.l.b16 %v4149
    %v4214 = vunpack.c.l.b16 %v4150
    %v4215 = vpack.c.b16 %v4184, %v4183
    %v4216 = vpack.c.b16 %v4186, %v4185
    %v4217 = vpack.c.b16 %v4188, %v4187
    %v4218 = vpack.c.b16 %v4190, %v4189
    %v4219 = vpack.c.b16 %v4192, %v4191
    %v4220 = vpack.c.b16 %v4194, %v4193
    %v4221 = vpack.c.b16 %v4196, %v4195
    %v4222 = vpack.c.b16 %v4198, %v4197
    %v4223 = vpack.c.b16 %v4200, %v4199
    %v4224 = vpack.c.b16 %v4202, %v4201
    %v4225 = vpack.c.b16 %v4204, %v4203
    %v4226 = vpack.c.b16 %v4206, %v4205
    %v4227 = vpack.c.b16 %v4208, %v4207
    %v4228 = vpack.c.b16 %v4210, %v4209
    %v4229 = vpack.c.b16 %v4212, %v4211
    %v4230 = vpack.c.b16 %v4214, %v4213
    %4247 = vmatpush.bf16.msra.mxu0 %v4222
    %4248 = vmatpush.bf16.msra.mxu0 %v4221
    %4249 = vmatpush.bf16.msra.mxu0 %v4220
    %4250 = vmatpush.bf16.msra.mxu0 %v4219
    %4251 = vmatpush.bf16.msra.mxu0 %v4218
    %4252 = vmatpush.bf16.msra.mxu0 %v4217
    %4253 = vmatpush.bf16.msra.mxu0 %v4216
    %4254 = vmatpush.bf16.msra.mxu0 %v4215
    %4255 = vmatmul.bf16.gmra.mxu0 %v4117
    %v4256 = vpop.f32.mrf.mxu0
    %v4257 = vadd.f32 0.0, %v4256
    %v4258 = vpop.f32.mrf.mxu0
    %v4259 = vadd.f32 0.0, %v4258
    %4260 = vdwg.mxu0
    %4261 = vmatpush.bf16.msra.mxu0 %v4230
    %4262 = vmatpush.bf16.msra.mxu0 %v4229
    %4263 = vmatpush.bf16.msra.mxu0 %v4228
    %4264 = vmatpush.bf16.msra.mxu0 %v4227
    %4265 = vmatpush.bf16.msra.mxu0 %v4226
    %4266 = vmatpush.bf16.msra.mxu0 %v4225
    %4267 = vmatpush.bf16.msra.mxu0 %v4224
    %4268 = vmatpush.bf16.msra.mxu0 %v4223
    %4269 = vmatmul.bf16.gmra.mxu0 %v4118
    %v4270 = vpop.f32.mrf.mxu0
    %v4271 = vadd.f32 %v4257, %v4270
    %v4272 = vpop.f32.mrf.mxu0
    %v4273 = vadd.f32 %v4259, %v4272
    %4274 = vdwg.mxu0
    %v4275 = vpack.c.bf16 %v4271, %v4271
    %v4276 = vpack.c.bf16 %v4273, %v4273
    %v4277 = vld [vmem:[%s8] sm:$0x1]
    %v4279 = vpack.i.b16 %v4277, %v4277
    %v4281 = vperm.slane %v4279, 0
    %v4282 = vunpack.c.l.bf16 %v4275
    %v4283 = vunpack.c.l.bf16 %v4276
    %v4284 = vunpack.c.l.bf16 %v4281
    %v4285 = vadd.f32 %v4282, %v4284
    %v4286 = vadd.f32 %v4283, %v4284
    %v4287 = vpack.c.bf16 %v4286, %v4285
    %v4288 = vld [vmem:[#allocation14] sm:$0xf]
    %v4289 = vld [vmem:[#allocation14 + $0x4] sm:$0xf]
    %v4290 = vld [vmem:[#allocation14 + $0x8] sm:$0xf]
    %v4291 = vld [vmem:[#allocation14 + $0xc] sm:$0xf]
    %v4292 = vld [vmem:[#allocation14 + $0x10] sm:$0xf]
    %v4293 = vld [vmem:[#allocation14 + $0x14] sm:$0xf]
    %v4294 = vld [vmem:[#allocation14 + $0x18] sm:$0xf]
    %v4295 = vld [vmem:[#allocation14 + $0x1c] sm:$0xf]
    %v4296 = vld [vmem:[#allocation14 + $0x20] sm:$0xf]
    %v4297 = vld [vmem:[#allocation14 + $0x24] sm:$0xf]
    %v4298 = vld [vmem:[#allocation14 + $0x28] sm:$0xf]
    %v4299 = vld [vmem:[#allocation14 + $0x2c] sm:$0xf]
    %v4300 = vld [vmem:[#allocation14 + $0x30] sm:$0xf]
    %v4301 = vld [vmem:[#allocation14 + $0x34] sm:$0xf]
    %v4302 = vld [vmem:[#allocation14 + $0x38] sm:$0xf]
    %v4303 = vld [vmem:[#allocation14 + $0x3c] sm:$0xf]
    %v4304 = vld [vmem:[%s10] sm:$0x1]
    %v4306 = vperm.slane %v4304, 0
    %v4324 = vunpack.c.l.b16 %v4288
    %v4325 = vunpack.c.l.b16 %v4289
    %v4326 = vunpack.c.l.b16 %v4290
    %v4327 = vunpack.c.l.b16 %v4291
    %v4328 = vunpack.c.l.b16 %v4292
    %v4329 = vunpack.c.l.b16 %v4293
    %v4330 = vunpack.c.l.b16 %v4294
    %v4331 = vunpack.c.l.b16 %v4295
    %v4332 = vunpack.c.l.b16 %v4296
    %v4333 = vunpack.c.l.b16 %v4297
    %v4334 = vunpack.c.l.b16 %v4298
    %v4335 = vunpack.c.l.b16 %v4299
    %v4336 = vunpack.c.l.b16 %v4300
    %v4337 = vunpack.c.l.b16 %v4301
    %v4338 = vunpack.c.l.b16 %v4302
    %v4339 = vunpack.c.l.b16 %v4303
    %v4340 = vpack.c.b16 %v4325, %v4324
    %v4341 = vpack.c.b16 %v4327, %v4326
    %v4342 = vpack.c.b16 %v4329, %v4328
    %v4343 = vpack.c.b16 %v4331, %v4330
    %v4344 = vpack.c.b16 %v4333, %v4332
    %v4345 = vpack.c.b16 %v4335, %v4334
    %v4346 = vpack.c.b16 %v4337, %v4336
    %v4347 = vpack.c.b16 %v4339, %v4338
    %4356 = vmatpush.bf16.msra.mxu0 %v4347
    %4357 = vmatpush.bf16.msra.mxu0 %v4346
    %4358 = vmatpush.bf16.msra.mxu0 %v4345
    %4359 = vmatpush.bf16.msra.mxu0 %v4344
    %4360 = vmatpush.bf16.msra.mxu0 %v4343
    %4361 = vmatpush.bf16.msra.mxu0 %v4342
    %4362 = vmatpush.bf16.msra.mxu0 %v4341
    %4363 = vmatpush.bf16.msra.mxu0 %v4340
    %4364 = vmatmul.bf16.gmra.mxu0 %v4287
    %v4365 = vpop.f32.mrf.mxu0
    %v4366 = vadd.f32 %v4306, %v4365
    %v4367 = vpop.f32.mrf.mxu0
    %v4368 = vadd.f32 %v4306, %v4367
    %4369 = vdwg.mxu0
    %v4370 = vxor.u32 %v4366, 2147483648
    %v4371 = vxor.u32 %v4368, 2147483648
    %v4372 = vmul.f32 %v4370, 1.442695
    %v4373 = vpow.pop %v4372
    %v4374 = vmul.f32 %v4371, 1.442695
    %v4375 = vpow.pop %v4374
    %v4376 = vadd.f32 %v4373, 1.0
    %v4377 = vadd.f32 %v4375, 1.0
    %v4378 = vrcp.pop %v4376
    %v4379 = vmul.f32 %v4376, %v4378
    %v4380 = vsub.f32 1.0, %v4379
    %v4381 = vmul.f32 %v4378, %v4380
    %v4382 = vadd.f32 %v4378, %v4381
    %vm4383 = vweird.f32 %v4376
    %vm4384 = vweird.f32 %v4378
    %vm4385 = vmor %vm4383, %vm4384
    %v4386 = vsel %vm4385, %v4378, %v4382
    %v4387 = vand.u32 2147483647, %v4376
    %vm4388 = vcmp.eq.f32.partialorder %v4387, 8.507059e+37
    %v4389 = vand.u32 %v4376, 2147483648
    %v4390 = vor.u32 1.1754944e-38, %v4389
    %v4391 = vsel %vm4388, %v4390, %v4386
    %v4392 = vmul.f32 1.0, %v4391
    %v4393 = vrcp.pop %v4377
    %v4394 = vmul.f32 %v4377, %v4393
    %v4395 = vsub.f32 1.0, %v4394
    %v4396 = vmul.f32 %v4393, %v4395
    %v4397 = vadd.f32 %v4393, %v4396
    %vm4398 = vweird.f32 %v4377
    %vm4399 = vweird.f32 %v4393
    %vm4400 = vmor %vm4398, %vm4399
    %v4401 = vsel %vm4400, %v4393, %v4397
    %v4402 = vand.u32 2147483647, %v4377
    %vm4403 = vcmp.eq.f32.partialorder %v4402, 8.507059e+37
    %v4404 = vand.u32 %v4377, 2147483648
    %v4405 = vor.u32 1.1754944e-38, %v4404
    %v4406 = vsel %vm4403, %v4405, %v4401
    %v4407 = vmul.f32 1.0, %v4406
    %4408 = vst [vmem:[#allocation16] sm:$0xff] %v4392
    %4409 = vst [vmem:[#allocation16 + $0x8] sm:$0xff] %v4407
    // Predicated region
    $region78: #{_run_mlp.1} parent=1 // pred_check
      _
    $region79: #{_run_mlp.1} parent=1 // pred_check_branch
      %4411 = sbr.rel (0) target = $region81
    $region80: #{_run_mlp.1} parent=1 // pred_region
      %4413 = vsyncadd [#allocation4], 0
      %s4414 = sshll.u32 [#allocation16], 4
      %s4415 = int_to_ptr.vmem [resolvable:$true] %s4414
      %s4416 = sshll.u32 %s11, 4
      %s4417 = int_to_ptr.hbm [resolvable:$true] %s4416
      %4422 = dma.vmem_to_hbm [thread:$0]  %s4415, 256, %s4417, [#allocation4], 128, 128, 8
    $region81: #{_run_mlp.1} parent=1 // pred_fallthru
      _
    // Predicated region
    $region82: #{_run_mlp.1} parent=1 // pred_check
      _
    $region83: #{_run_mlp.1} parent=1 // pred_check_branch
      %4424 = sbr.rel (0) target = $region85
    $region84: #{_run_mlp.1} parent=1 // pred_region
      %4426 = dma.done [#allocation4], 256
    $region85: #{_run_mlp.1} parent=1 // pred_fallthru
      _
    %4427 = vsyncpa [#allocation3], 1
    %4428 = vsyncpa [#allocation6], 1
    %4429 = vsyncpa [#allocation9], 1
    %4430 = vsyncpa [#allocation12], 1
    %4431 = vsyncpa [#allocation15], 1
    %4432 = vsyncpa [#allocation4], 1

</llo_original>
